<compile_context>
chip_gen: v6e
topology: v6e:2x2x1
jax: 0.10.0
libtpu: 0.0.40
codegen_flags: <defaults>
</compile_context>

<pallas_src>
import functools

import numpy as np
import jax
import jax.numpy as jnp
from jax.experimental import pallas as pl
from jax.experimental.pallas import tpu as pltpu


def _round_up(x, m):
    return (x + m - 1) // m * m


# ---------------------------------------------------------------------------
# Fused 5-layer MLP kernel:
#   out = W5 @ relu(W4 @ relu(W3 @ relu(W2 @ relu(W1 @ x + b1) + b2) + b3) + b4) + b5
# The tm-row batch tile is processed as `num_chunks` independent dataflow
# chains so matmuls of one chunk overlap the VPU epilogue of the other.
# ---------------------------------------------------------------------------
def _nn2_fused_kernel(x_ref,
                      w1_ref, b1_ref, w2_ref, b2_ref, w3_ref, b3_ref,
                      w4_ref, b4_ref, w5_ref, b5_ref,
                      o_ref, *, num_chunks):
    def layer(h, w_ref, b_ref, relu):
        # bf16 x bf16 MXU matmul, f32 accumulation, f32 bias (+ ReLU) epilogue.
        y = jnp.dot(h, w_ref[...], preferred_element_type=jnp.float32)
        y = y + b_ref[...]
        if relu:
            y = jnp.maximum(y, 0.0)
        return y

    tm = x_ref.shape[0]
    chunk = tm // num_chunks
    for c in range(num_chunks):                              # static unroll
        rows = pl.ds(c * chunk, chunk)
        # f32 -> bf16 cast happens here (input is left in f32 in HBM).
        h = x_ref[rows, :].astype(jnp.bfloat16)              # (chunk, 784)
        h = layer(h, w1_ref, b1_ref, True).astype(jnp.bfloat16)   # (chunk, 1024)
        h = layer(h, w2_ref, b2_ref, True).astype(jnp.bfloat16)   # (chunk, 512)
        h = layer(h, w3_ref, b3_ref, True).astype(jnp.bfloat16)   # (chunk, 256)
        h = layer(h, w4_ref, b4_ref, True).astype(jnp.bfloat16)   # (chunk, 128)
        o_ref[rows, :] = layer(h, w5_ref, b5_ref, False).astype(o_ref.dtype)


# ---------------------------------------------------------------------------
# Wrapper: pick batch tile, build BlockSpecs, single pallas_call
# ---------------------------------------------------------------------------
def nn2_forward(params, x, *, num_classes, tm_max=512):
    N = x.shape[0]
    x2d = x.reshape(N, -1)                       # Flatten(start_dim=1)
    assert x2d.shape[1] == 28 * 28, x2d.shape
    # NOTE: no dtype cast here -- the kernel casts to bf16 internally.

    # Batch tiling: sublane-friendly padding; cap tm so larger batches produce
    # >= 2 grid steps (second TensorCore on v7x via "parallel" semantics).
    Mp = _round_up(max(N, 1), 16)
    tm = min(tm_max, Mp)
    if Mp > 128:
        tm = min(tm, _round_up(pl.cdiv(Mp, 2), 16))
    Mp = _round_up(Mp, tm)
    x_p = x2d if Mp == N else jnp.pad(x2d, ((0, Mp - N), (0, 0)))

    K = x_p.shape[1]                             # 784 (full-dim block, no pad)
    n_out_p = params["w5"].shape[1]              # classifier width padded to 128

    # Two interleaved dataflow chains when the tile is large enough that both
    # halves are still sublane-aligned (>=16 rows each).
    num_chunks = 2 if (tm >= 256 and tm % 32 == 0) else 1

    def resident(arr):
        # Whole array lives in VMEM, constant block index across the batch grid
        # (never re-DMA'd between grid steps).
        return pl.BlockSpec(arr.shape, lambda i: (0, 0))

    in_specs = [pl.BlockSpec((tm, K), lambda i: (i, 0))]
    args = [x_p]
    weight_bytes = 0
    flops_per_row = 0
    for li in range(1, 6):
        w = params[f"w{li}"]
        b = params[f"b{li}"]
        in_specs += [resident(w), resident(b)]
        args += [w, b]
        weight_bytes += w.size * w.dtype.itemsize + b.size * b.dtype.itemsize
        flops_per_row += 2 * w.shape[0] * w.shape[1]

    cost = pl.CostEstimate(
        flops=int(flops_per_row) * int(Mp),
        transcendentals=0,
        bytes_accessed=int(weight_bytes
                           + x_p.size * x_p.dtype.itemsize
                           + Mp * n_out_p * 4),
    )

    out = pl.pallas_call(
        functools.partial(_nn2_fused_kernel, num_chunks=num_chunks),
        out_shape=jax.ShapeDtypeStruct((Mp, n_out_p), jnp.float32),
        grid_spec=pltpu.PrefetchScalarGridSpec(
            num_scalar_prefetch=0,
            grid=(Mp // tm,),
            in_specs=in_specs,
            out_specs=pl.BlockSpec((tm, n_out_p), lambda i: (i, 0)),
        ),
        compiler_params=pltpu.CompilerParams(
            dimension_semantics=("parallel",),
            # Big tiles + ~3 MB resident (double-buffered) weights exceed the
            # 16 MiB default scoped VMEM on v5e; raise the limit explicitly.
            vmem_limit_bytes=40 * 1024 * 1024,
        ),
        cost_estimate=cost,
    )(*args)
    return out[:N, :num_classes]


# ---------------------------------------------------------------------------
# Parameter init (PyTorch-default-style U(-1/sqrt(fan_in), +1/sqrt(fan_in))).
# Weights stored once in (in, out) layout, output dim padded to 128, bf16.
# ---------------------------------------------------------------------------
def init_params(key, num_classes):
    dims = [28 * 28, 1024, 512, 256, 128, num_classes]
    ks = jax.random.split(key, 10)
    params = {}
    for li in range(5):
        fan_in, fan_out = dims[li], dims[li + 1]
        bound = 1.0 / np.sqrt(fan_in)
        w = jax.random.uniform(ks[2 * li], (fan_in, fan_out),
                               jnp.float32, -bound, bound)
        b = jax.random.uniform(ks[2 * li + 1], (fan_out,),
                               jnp.float32, -bound, bound)
        fan_out_p = _round_up(fan_out, 128)
        # One-time pad to a lane multiple + cast weight to bf16 (at init, not
        # per forward).
        w = jnp.pad(w, ((0, 0), (0, fan_out_p - fan_out))).astype(jnp.bfloat16)
        b = jnp.pad(b, (0, fan_out_p - fan_out)).astype(jnp.float32)
        params[f"w{li + 1}"] = w
        params[f"b{li + 1}"] = b.reshape(1, fan_out_p)
    return params


# Pure-JAX reference (same bf16 weights, f32 math) for a sanity check.
def _reference(params, x, num_classes):
    h = x.reshape(x.shape[0], -1).astype(jnp.float32)
    for li in range(1, 6):
        w = params[f"w{li}"].astype(jnp.float32)
        b = params[f"b{li}"].astype(jnp.float32)
        h = h @ w + b
        if li < 5:
            h = jnp.maximum(h, 0.0)
    return h[:, :num_classes]


if __name__ == "__main__":
    num_classes = 10
    key = jax.random.PRNGKey(0)
    k_param, k_x, k_xb = jax.random.split(key, 3)
    params = init_params(k_param, num_classes)

    fwd = jax.jit(functools.partial(nn2_forward, num_classes=num_classes))

    # Small batch (matches the PyTorch module's MNIST-like input): single grid
    # step, single in-kernel chain, batch-pad path.
    x = jax.random.normal(k_x, (2, 1, 28, 28), dtype=jnp.float32)
    out = jax.block_until_ready(fwd(params, x))
    assert out.shape == (2, num_classes), out.shape
    assert bool(jnp.all(jnp.isfinite(out)))
    ref = _reference(params, x, num_classes)
    np.testing.assert_allclose(np.asarray(out), np.asarray(ref),
                               rtol=5e-2, atol=5e-2)

    # Larger batch: exercises tm=512 tiles, 2-step "parallel" grid (megacore),
    # dual interleaved in-kernel chains, and the no-pad fast path.
    xb = jax.random.normal(k_xb, (1024, 1, 28, 28), dtype=jnp.float32)
    outb = jax.block_until_ready(fwd(params, xb))
    assert outb.shape == (1024, num_classes), outb.shape
    refb = _reference(params, xb, num_classes)
    np.testing.assert_allclose(np.asarray(outb), np.asarray(refb),
                               rtol=5e-2, atol=5e-2)

    print("KERNEL_OK")
</pallas_src>

<mosaic_0001>
module attributes {stable_mosaic.version = 11 : i64} {
  func.func @_nn2_fused_kernel(%arg0: i32, %arg1: memref<16x784xf32, #tpu.memory_space<vmem>>, %arg2: memref<784x1024xbf16, #tpu.memory_space<vmem>>, %arg3: memref<1x1024xf32, #tpu.memory_space<vmem>>, %arg4: memref<1024x512xbf16, #tpu.memory_space<vmem>>, %arg5: memref<1x512xf32, #tpu.memory_space<vmem>>, %arg6: memref<512x256xbf16, #tpu.memory_space<vmem>>, %arg7: memref<1x256xf32, #tpu.memory_space<vmem>>, %arg8: memref<256x128xbf16, #tpu.memory_space<vmem>>, %arg9: memref<1x128xf32, #tpu.memory_space<vmem>>, %arg10: memref<128x128xbf16, #tpu.memory_space<vmem>>, %arg11: memref<1x128xf32, #tpu.memory_space<vmem>>, %arg12: memref<16x128xf32, #tpu.memory_space<vmem>>) attributes {dimension_semantics = [#tpu.dimension_semantics<parallel>], iteration_bounds = array<i64: 1>, scalar_prefetch = 0 : i64, scratch_operands = 0 : i64, tpu.core_type = #tpu.core_type<tc>, window_params = [{transform_indices = @transform_0, window_bounds = array<i64: 16, 784>}, {pipeline_mode = #tpu.pipeline_mode<synchronous>, transform_indices = @transform_1, window_bounds = array<i64: 784, 1024>}, {pipeline_mode = #tpu.pipeline_mode<synchronous>, transform_indices = @transform_2, window_bounds = array<i64: 1, 1024>}, {pipeline_mode = #tpu.pipeline_mode<synchronous>, transform_indices = @transform_3, window_bounds = array<i64: 1024, 512>}, {pipeline_mode = #tpu.pipeline_mode<synchronous>, transform_indices = @transform_4, window_bounds = array<i64: 1, 512>}, {pipeline_mode = #tpu.pipeline_mode<synchronous>, transform_indices = @transform_5, window_bounds = array<i64: 512, 256>}, {pipeline_mode = #tpu.pipeline_mode<synchronous>, transform_indices = @transform_6, window_bounds = array<i64: 1, 256>}, {pipeline_mode = #tpu.pipeline_mode<synchronous>, transform_indices = @transform_7, window_bounds = array<i64: 256, 128>}, {pipeline_mode = #tpu.pipeline_mode<synchronous>, transform_indices = @transform_8, window_bounds = array<i64: 1, 128>}, {pipeline_mode = #tpu.pipeline_mode<synchronous>, transform_indices = @transform_9, window_bounds = array<i64: 128, 128>}, {pipeline_mode = #tpu.pipeline_mode<synchronous>, transform_indices = @transform_10, window_bounds = array<i64: 1, 128>}, {transform_indices = @transform_11, window_bounds = array<i64: 16, 128>}]} {
    %c0 = arith.constant 0 : index
    %c0_0 = arith.constant 0 : index
    %0 = vector.load %arg1[%c0, %c0_0] : memref<16x784xf32, #tpu.memory_space<vmem>>, vector<16x784xf32>
    %1 = arith.truncf %0 : vector<16x784xf32> to vector<16x784xbf16>
    %c0_1 = arith.constant 0 : index
    %c0_2 = arith.constant 0 : index
    %2 = vector.load %arg2[%c0_1, %c0_2] : memref<784x1024xbf16, #tpu.memory_space<vmem>>, vector<784x1024xbf16>
    %cst = arith.constant dense<0.000000e+00> : vector<16x1024xf32>
    %3 = tpu.matmul %1, %2, %cst {dimension_numbers = #tpu.dot_dimension_numbers<[1], [0], [0], [1], [0, 0, 1, 1], [], []>} : vector<16x784xbf16>, vector<784x1024xbf16>, vector<16x1024xf32> -> vector<16x1024xf32>
    %c0_3 = arith.constant 0 : index
    %c0_4 = arith.constant 0 : index
    %4 = vector.load %arg3[%c0_3, %c0_4] : memref<1x1024xf32, #tpu.memory_space<vmem>>, vector<1x1024xf32>
    %5 = vector.broadcast %4 : vector<1x1024xf32> to vector<16x1024xf32>
    %6 = arith.addf %3, %5 : vector<16x1024xf32>
    %cst_5 = arith.constant 0.000000e+00 : f32
    %7 = vector.broadcast %cst_5 : f32 to vector<16x1024xf32>
    %8 = arith.maximumf %6, %7 : vector<16x1024xf32>
    %9 = arith.truncf %8 : vector<16x1024xf32> to vector<16x1024xbf16>
    %c0_6 = arith.constant 0 : index
    %c0_7 = arith.constant 0 : index
    %10 = vector.load %arg4[%c0_6, %c0_7] : memref<1024x512xbf16, #tpu.memory_space<vmem>>, vector<1024x512xbf16>
    %cst_8 = arith.constant dense<0.000000e+00> : vector<16x512xf32>
    %11 = tpu.matmul %9, %10, %cst_8 {dimension_numbers = #tpu.dot_dimension_numbers<[1], [0], [0], [1], [0, 0, 1, 1], [], []>} : vector<16x1024xbf16>, vector<1024x512xbf16>, vector<16x512xf32> -> vector<16x512xf32>
    %c0_9 = arith.constant 0 : index
    %c0_10 = arith.constant 0 : index
    %12 = vector.load %arg5[%c0_9, %c0_10] : memref<1x512xf32, #tpu.memory_space<vmem>>, vector<1x512xf32>
    %13 = vector.broadcast %12 : vector<1x512xf32> to vector<16x512xf32>
    %14 = arith.addf %11, %13 : vector<16x512xf32>
    %cst_11 = arith.constant 0.000000e+00 : f32
    %15 = vector.broadcast %cst_11 : f32 to vector<16x512xf32>
    %16 = arith.maximumf %14, %15 : vector<16x512xf32>
    %17 = arith.truncf %16 : vector<16x512xf32> to vector<16x512xbf16>
    %c0_12 = arith.constant 0 : index
    %c0_13 = arith.constant 0 : index
    %18 = vector.load %arg6[%c0_12, %c0_13] : memref<512x256xbf16, #tpu.memory_space<vmem>>, vector<512x256xbf16>
    %cst_14 = arith.constant dense<0.000000e+00> : vector<16x256xf32>
    %19 = tpu.matmul %17, %18, %cst_14 {dimension_numbers = #tpu.dot_dimension_numbers<[1], [0], [0], [1], [0, 0, 1, 1], [], []>} : vector<16x512xbf16>, vector<512x256xbf16>, vector<16x256xf32> -> vector<16x256xf32>
    %c0_15 = arith.constant 0 : index
    %c0_16 = arith.constant 0 : index
    %20 = vector.load %arg7[%c0_15, %c0_16] : memref<1x256xf32, #tpu.memory_space<vmem>>, vector<1x256xf32>
    %21 = vector.broadcast %20 : vector<1x256xf32> to vector<16x256xf32>
    %22 = arith.addf %19, %21 : vector<16x256xf32>
    %cst_17 = arith.constant 0.000000e+00 : f32
    %23 = vector.broadcast %cst_17 : f32 to vector<16x256xf32>
    %24 = arith.maximumf %22, %23 : vector<16x256xf32>
    %25 = arith.truncf %24 : vector<16x256xf32> to vector<16x256xbf16>
    %c0_18 = arith.constant 0 : index
    %c0_19 = arith.constant 0 : index
    %26 = vector.load %arg8[%c0_18, %c0_19] : memref<256x128xbf16, #tpu.memory_space<vmem>>, vector<256x128xbf16>
    %cst_20 = arith.constant dense<0.000000e+00> : vector<16x128xf32>
    %27 = tpu.matmul %25, %26, %cst_20 {dimension_numbers = #tpu.dot_dimension_numbers<[1], [0], [0], [1], [0, 0, 1, 1], [], []>} : vector<16x256xbf16>, vector<256x128xbf16>, vector<16x128xf32> -> vector<16x128xf32>
    %c0_21 = arith.constant 0 : index
    %c0_22 = arith.constant 0 : index
    %28 = vector.load %arg9[%c0_21, %c0_22] : memref<1x128xf32, #tpu.memory_space<vmem>>, vector<1x128xf32>
    %29 = vector.broadcast %28 : vector<1x128xf32> to vector<16x128xf32>
    %30 = arith.addf %27, %29 : vector<16x128xf32>
    %cst_23 = arith.constant 0.000000e+00 : f32
    %31 = vector.broadcast %cst_23 : f32 to vector<16x128xf32>
    %32 = arith.maximumf %30, %31 : vector<16x128xf32>
    %33 = arith.truncf %32 : vector<16x128xf32> to vector<16x128xbf16>
    %c0_24 = arith.constant 0 : index
    %c0_25 = arith.constant 0 : index
    %34 = vector.load %arg10[%c0_24, %c0_25] : memref<128x128xbf16, #tpu.memory_space<vmem>>, vector<128x128xbf16>
    %cst_26 = arith.constant dense<0.000000e+00> : vector<16x128xf32>
    %35 = tpu.matmul %33, %34, %cst_26 {dimension_numbers = #tpu.dot_dimension_numbers<[1], [0], [0], [1], [0, 0, 1, 1], [], []>} : vector<16x128xbf16>, vector<128x128xbf16>, vector<16x128xf32> -> vector<16x128xf32>
    %c0_27 = arith.constant 0 : index
    %c0_28 = arith.constant 0 : index
    %36 = vector.load %arg11[%c0_27, %c0_28] : memref<1x128xf32, #tpu.memory_space<vmem>>, vector<1x128xf32>
    %37 = vector.broadcast %36 : vector<1x128xf32> to vector<16x128xf32>
    %38 = arith.addf %35, %37 : vector<16x128xf32>
    %c0_29 = arith.constant 0 : index
    %c0_30 = arith.constant 0 : index
    %39 = vector.load %arg12[%c0_29, %c0_30] : memref<16x128xf32, #tpu.memory_space<vmem>>, vector<16x128xf32>
    tpu.vector_store %arg12[%c0_29, %c0_30], %38 {strides = array<i32>} : memref<16x128xf32, #tpu.memory_space<vmem>>, vector<16x128xf32>,
    return
  }
  func.func @transform_0(%arg0: i32) -> (i32, i32) {
    %c0_i32 = arith.constant 0 : i32
    %c0_i32_0 = arith.constant 0 : i32
    return %arg0, %c0_i32 : i32, i32
  }
  func.func @transform_1(%arg0: i32) -> (i32, i32) {
    %c0_i32 = arith.constant 0 : i32
    %c0_i32_0 = arith.constant 0 : i32
    %c0_i32_1 = arith.constant 0 : i32
    return %c0_i32, %c0_i32_0 : i32, i32
  }
  func.func @transform_2(%arg0: i32) -> (i32, i32) {
    %c0_i32 = arith.constant 0 : i32
    %c0_i32_0 = arith.constant 0 : i32
    %c0_i32_1 = arith.constant 0 : i32
    return %c0_i32, %c0_i32_0 : i32, i32
  }
  func.func @transform_3(%arg0: i32) -> (i32, i32) {
    %c0_i32 = arith.constant 0 : i32
    %c0_i32_0 = arith.constant 0 : i32
    %c0_i32_1 = arith.constant 0 : i32
    return %c0_i32, %c0_i32_0 : i32, i32
  }
  func.func @transform_4(%arg0: i32) -> (i32, i32) {
    %c0_i32 = arith.constant 0 : i32
    %c0_i32_0 = arith.constant 0 : i32
    %c0_i32_1 = arith.constant 0 : i32
    return %c0_i32, %c0_i32_0 : i32, i32
  }
  func.func @transform_5(%arg0: i32) -> (i32, i32) {
    %c0_i32 = arith.constant 0 : i32
    %c0_i32_0 = arith.constant 0 : i32
    %c0_i32_1 = arith.constant 0 : i32
    return %c0_i32, %c0_i32_0 : i32, i32
  }
  func.func @transform_6(%arg0: i32) -> (i32, i32) {
    %c0_i32 = arith.constant 0 : i32
    %c0_i32_0 = arith.constant 0 : i32
    %c0_i32_1 = arith.constant 0 : i32
    return %c0_i32, %c0_i32_0 : i32, i32
  }
  func.func @transform_7(%arg0: i32) -> (i32, i32) {
    %c0_i32 = arith.constant 0 : i32
    %c0_i32_0 = arith.constant 0 : i32
    %c0_i32_1 = arith.constant 0 : i32
    return %c0_i32, %c0_i32_0 : i32, i32
  }
  func.func @transform_8(%arg0: i32) -> (i32, i32) {
    %c0_i32 = arith.constant 0 : i32
    %c0_i32_0 = arith.constant 0 : i32
    %c0_i32_1 = arith.constant 0 : i32
    return %c0_i32, %c0_i32_0 : i32, i32
  }
  func.func @transform_9(%arg0: i32) -> (i32, i32) {
    %c0_i32 = arith.constant 0 : i32
    %c0_i32_0 = arith.constant 0 : i32
    %c0_i32_1 = arith.constant 0 : i32
    return %c0_i32, %c0_i32_0 : i32, i32
  }
  func.func @transform_10(%arg0: i32) -> (i32, i32) {
    %c0_i32 = arith.constant 0 : i32
    %c0_i32_0 = arith.constant 0 : i32
    %c0_i32_1 = arith.constant 0 : i32
    return %c0_i32, %c0_i32_0 : i32, i32
  }
  func.func @transform_11(%arg0: i32) -> (i32, i32) {
    %c0_i32 = arith.constant 0 : i32
    %c0_i32_0 = arith.constant 0 : i32
    return %arg0, %c0_i32 : i32, i32
  }
}

</mosaic_0001>

<llo_original>
// kernel: nn2_forward.1
$region0: #{nn2_forward.1}
  #allocation0 [shape = 'u32[]', space=smem, size = 0x4, offset = 0x4, fixed_abs, tag = 'smem constant byte address 0x4 - core index']
  #allocation1 [shape = 'u32[144,128]{1,0:T(1,128)}', space=vmem, size = 0x12000, scoped, tag = 'internal scratch']
  %s0 = inlined_call_operand.vmem [shape: f32[16,784], index: 0, kind: input, shape index: {}]
  %s1 = inlined_call_operand.hbm [shape: bf16[784,1024], index: 1, kind: input, shape index: {}]
  %s2 = inlined_call_operand.hbm [shape: f32[1,1024], index: 2, kind: input, shape index: {}]
  %s3 = inlined_call_operand.hbm [shape: bf16[1024,512], index: 3, kind: input, shape index: {}]
  %s4 = inlined_call_operand.hbm [shape: f32[1,512], index: 4, kind: input, shape index: {}]
  %s5 = inlined_call_operand.hbm [shape: bf16[512,256], index: 5, kind: input, shape index: {}]
  %s6 = inlined_call_operand.hbm [shape: f32[1,256], index: 6, kind: input, shape index: {}]
  %s7 = inlined_call_operand.hbm [shape: bf16[256,128], index: 7, kind: input, shape index: {}]
  %s8 = inlined_call_operand.hbm [shape: f32[1,128], index: 8, kind: input, shape index: {}]
  %s9 = inlined_call_operand.hbm [shape: bf16[128,128], index: 9, kind: input, shape index: {}]
  %s10 = inlined_call_operand.hbm [shape: f32[1,128], index: 10, kind: input, shape index: {}]
  %s11 = inlined_call_operand.vmem [shape: f32[16,128], index: 11, kind: output, shape index: {}]
  %s12 = sld [smem:[#allocation0]]
  $region94: #{nn2_forward.1} parent=0
    _
  %s14 = ssub.s32 1, %s12
  %s15 = scalar_select 0, %s14, %s12
  $region1: #{nn2_forward.1} parent=0
    #allocation2 [shape = 'u8[1605632]{0}', space=vmem, size = 0x188000, scoped, tag = 'input window, operand 1, single buffered']
    #allocation3 [shape = 's32[1]{0}', space=sflag, size = 0x4, scoped, tag = 'scoped memory for nn2_forward.1']
    #allocation4 [shape = 'u8[4096]{0}', space=vmem, size = 0x1000, scoped, tag = 'input window, operand 2, single buffered']
    #allocation5 [shape = 's32[1]{0}', space=sflag, size = 0x4, scoped, tag = 'scoped memory for nn2_forward.1']
    #allocation6 [shape = 'u8[1048576]{0}', space=vmem, size = 0x100000, scoped, tag = 'input window, operand 3, single buffered']
    #allocation7 [shape = 'u8[2048]{0}', space=vmem, size = 0x800, scoped, tag = 'input window, operand 4, single buffered']
    #allocation8 [shape = 's32[1]{0}', space=sflag, size = 0x4, scoped, tag = 'scoped memory for nn2_forward.1']
    #allocation9 [shape = 'u8[262144]{0}', space=vmem, size = 0x40000, scoped, tag = 'input window, operand 5, single buffered']
    #allocation10 [shape = 'u8[1024]{0}', space=vmem, size = 0x400, scoped, tag = 'input window, operand 6, single buffered']
    #allocation11 [shape = 's32[1]{0}', space=sflag, size = 0x4, scoped, tag = 'scoped memory for nn2_forward.1']
    #allocation12 [shape = 'u8[65536]{0}', space=vmem, size = 0x10000, scoped, tag = 'input window, operand 7, single buffered']
    #allocation13 [shape = 'u8[512]{0}', space=vmem, size = 0x400, scoped, tag = 'input window, operand 8, single buffered']
    #allocation14 [shape = 's32[1]{0}', space=sflag, size = 0x4, scoped, tag = 'scoped memory for nn2_forward.1']
    #allocation15 [shape = 'u8[32768]{0}', space=vmem, size = 0x8000, scoped, tag = 'input window, operand 9, single buffered']
    #allocation16 [shape = 'u8[512]{0}', space=vmem, size = 0x400, scoped, tag = 'input window, operand 10, single buffered']
    #allocation17 [shape = 's32[1]{0}', space=sflag, size = 0x4, scoped, tag = 'scoped memory for nn2_forward.1']
    %16 = vsyncpa [#allocation3], 0
    %17 = vsyncpa [#allocation5], 0
    %18 = vsyncpa [#allocation8], 0
    %19 = vsyncpa [#allocation11], 0
    %20 = vsyncpa [#allocation14], 0
    %21 = vsyncpa [#allocation17], 0
    // Predicated region
    $region2: #{nn2_forward.1} parent=1 // pred_check
      _
    $region3: #{nn2_forward.1} parent=1 // pred_check_branch
      %23 = sbr.rel (0) target = $region5
    $region4: #{nn2_forward.1} parent=1 // pred_region
      _
    $region5: #{nn2_forward.1} parent=1 // pred_fallthru
      _
    // Predicated region
    $region6: #{nn2_forward.1} parent=1 // pred_check
      _
    $region7: #{nn2_forward.1} parent=1 // pred_check_branch
      %25 = sbr.rel (0) target = $region9
    $region8: #{nn2_forward.1} parent=1 // pred_region
      %s27 = ssub.s32 50176, 50176
      %28 = vsyncadd [#allocation3], %s27
      %s29 = sshll.u32 [#allocation2], 4
      %s30 = int_to_ptr.vmem [resolvable:$true] %s29
      %35 = dma.hbm_to_vmem [thread:$0]  %s1, 50176, %s30, [#allocation3], 512, 512, 32
    $region9: #{nn2_forward.1} parent=1 // pred_fallthru
      _
    // Predicated region
    $region10: #{nn2_forward.1} parent=1 // pred_check
      _
    $region11: #{nn2_forward.1} parent=1 // pred_check_branch
      %37 = sbr.rel (0) target = $region13
    $region12: #{nn2_forward.1} parent=1 // pred_region
      %s39 = ssub.s32 128, 128
      %40 = vsyncadd [#allocation5], %s39
      %s42 = sshll.u32 [#allocation4], 4
      %s43 = int_to_ptr.vmem [resolvable:$true] %s42
      %45 = dma.hbm_to_vmem [thread:$0]  %s2, 128, %s43, [#allocation5]
    $region13: #{nn2_forward.1} parent=1 // pred_fallthru
      _
    // Predicated region
    $region14: #{nn2_forward.1} parent=1 // pred_check
      _
    $region15: #{nn2_forward.1} parent=1 // pred_check_branch
      %47 = sbr.rel (0) target = $region17
    $region16: #{nn2_forward.1} parent=1 // pred_region
      %s49 = ssub.s32 32768, 32768
      %50 = vsyncadd [#allocation5], %s49
      %s51 = sshll.u32 [#allocation6], 4
      %s52 = int_to_ptr.vmem [resolvable:$true] %s51
      %57 = dma.hbm_to_vmem [thread:$0]  %s3, 32768, %s52, [#allocation5], 256, 256, 16
    $region17: #{nn2_forward.1} parent=1 // pred_fallthru
      _
    // Predicated region
    $region18: #{nn2_forward.1} parent=1 // pred_check
      _
    $region19: #{nn2_forward.1} parent=1 // pred_check_branch
      %59 = sbr.rel (0) target = $region21
    $region20: #{nn2_forward.1} parent=1 // pred_region
      %s61 = ssub.s32 64, 64
      %62 = vsyncadd [#allocation8], %s61
      %s64 = sshll.u32 [#allocation7], 4
      %s65 = int_to_ptr.vmem [resolvable:$true] %s64
      %67 = dma.hbm_to_vmem [thread:$0]  %s4, 64, %s65, [#allocation8]
    $region21: #{nn2_forward.1} parent=1 // pred_fallthru
      _
    // Predicated region
    $region22: #{nn2_forward.1} parent=1 // pred_check
      _
    $region23: #{nn2_forward.1} parent=1 // pred_check_branch
      %69 = sbr.rel (0) target = $region25
    $region24: #{nn2_forward.1} parent=1 // pred_region
      %s71 = ssub.s32 8192, 8192
      %72 = vsyncadd [#allocation8], %s71
      %s73 = sshll.u32 [#allocation9], 4
      %s74 = int_to_ptr.vmem [resolvable:$true] %s73
      %79 = dma.hbm_to_vmem [thread:$0]  %s5, 8192, %s74, [#allocation8], 128, 128, 8
    $region25: #{nn2_forward.1} parent=1 // pred_fallthru
      _
    // Predicated region
    $region26: #{nn2_forward.1} parent=1 // pred_check
      _
    $region27: #{nn2_forward.1} parent=1 // pred_check_branch
      %81 = sbr.rel (0) target = $region29
    $region28: #{nn2_forward.1} parent=1 // pred_region
      %s83 = ssub.s32 32, 32
      %84 = vsyncadd [#allocation11], %s83
      %s86 = sshll.u32 [#allocation10], 4
      %s87 = int_to_ptr.vmem [resolvable:$true] %s86
      %89 = dma.hbm_to_vmem [thread:$0]  %s6, 32, %s87, [#allocation11]
    $region29: #{nn2_forward.1} parent=1 // pred_fallthru
      _
    // Predicated region
    $region30: #{nn2_forward.1} parent=1 // pred_check
      _
    $region31: #{nn2_forward.1} parent=1 // pred_check_branch
      %91 = sbr.rel (0) target = $region33
    $region32: #{nn2_forward.1} parent=1 // pred_region
      %s93 = ssub.s32 2048, 2048
      %94 = vsyncadd [#allocation11], %s93
      %s95 = sshll.u32 [#allocation12], 4
      %s96 = int_to_ptr.vmem [resolvable:$true] %s95
      %101 = dma.hbm_to_vmem [thread:$0]  %s7, 2048, %s96, [#allocation11], 64, 64, 4
    $region33: #{nn2_forward.1} parent=1 // pred_fallthru
      _
    // Predicated region
    $region34: #{nn2_forward.1} parent=1 // pred_check
      _
    $region35: #{nn2_forward.1} parent=1 // pred_check_branch
      %103 = sbr.rel (0) target = $region37
    $region36: #{nn2_forward.1} parent=1 // pred_region
      %s105 = ssub.s32 16, 16
      %106 = vsyncadd [#allocation14], %s105
      %s108 = sshll.u32 [#allocation13], 4
      %s109 = int_to_ptr.vmem [resolvable:$true] %s108
      %111 = dma.hbm_to_vmem [thread:$0]  %s8, 16, %s109, [#allocation14]
    $region37: #{nn2_forward.1} parent=1 // pred_fallthru
      _
    // Predicated region
    $region38: #{nn2_forward.1} parent=1 // pred_check
      _
    $region39: #{nn2_forward.1} parent=1 // pred_check_branch
      %113 = sbr.rel (0) target = $region41
    $region40: #{nn2_forward.1} parent=1 // pred_region
      %s115 = ssub.s32 1024, 1024
      %116 = vsyncadd [#allocation14], %s115
      %s117 = sshll.u32 [#allocation15], 4
      %s118 = int_to_ptr.vmem [resolvable:$true] %s117
      %123 = dma.hbm_to_vmem [thread:$0]  %s9, 1024, %s118, [#allocation14], 64, 64, 4
    $region41: #{nn2_forward.1} parent=1 // pred_fallthru
      _
    // Predicated region
    $region42: #{nn2_forward.1} parent=1 // pred_check
      _
    $region43: #{nn2_forward.1} parent=1 // pred_check_branch
      %125 = sbr.rel (0) target = $region45
    $region44: #{nn2_forward.1} parent=1 // pred_region
      %s127 = ssub.s32 16, 16
      %128 = vsyncadd [#allocation17], %s127
      %s130 = sshll.u32 [#allocation16], 4
      %s131 = int_to_ptr.vmem [resolvable:$true] %s130
      %133 = dma.hbm_to_vmem [thread:$0]  %s10, 16, %s131, [#allocation17]
    $region45: #{nn2_forward.1} parent=1 // pred_fallthru
      _
    // Predicated region
    $region46: #{nn2_forward.1} parent=1 // pred_check
      _
    $region47: #{nn2_forward.1} parent=1 // pred_check_branch
      %135 = sbr.rel (0) target = $region49
    $region48: #{nn2_forward.1} parent=1 // pred_region
      %136 = dma.done [#allocation3], 50176
    $region49: #{nn2_forward.1} parent=1 // pred_fallthru
      _
    // Predicated region
    $region50: #{nn2_forward.1} parent=1 // pred_check
      _
    $region51: #{nn2_forward.1} parent=1 // pred_check_branch
      %138 = sbr.rel (0) target = $region53
    $region52: #{nn2_forward.1} parent=1 // pred_region
      %139 = dma.done [#allocation5], 128
    $region53: #{nn2_forward.1} parent=1 // pred_fallthru
      _
    // Predicated region
    $region54: #{nn2_forward.1} parent=1 // pred_check
      _
    $region55: #{nn2_forward.1} parent=1 // pred_check_branch
      %141 = sbr.rel (0) target = $region57
    $region56: #{nn2_forward.1} parent=1 // pred_region
      %142 = dma.done [#allocation5], 32768
    $region57: #{nn2_forward.1} parent=1 // pred_fallthru
      _
    // Predicated region
    $region58: #{nn2_forward.1} parent=1 // pred_check
      _
    $region59: #{nn2_forward.1} parent=1 // pred_check_branch
      %144 = sbr.rel (0) target = $region61
    $region60: #{nn2_forward.1} parent=1 // pred_region
      %145 = dma.done [#allocation8], 64
    $region61: #{nn2_forward.1} parent=1 // pred_fallthru
      _
    // Predicated region
    $region62: #{nn2_forward.1} parent=1 // pred_check
      _
    $region63: #{nn2_forward.1} parent=1 // pred_check_branch
      %147 = sbr.rel (0) target = $region65
    $region64: #{nn2_forward.1} parent=1 // pred_region
      %148 = dma.done [#allocation8], 8192
    $region65: #{nn2_forward.1} parent=1 // pred_fallthru
      _
    // Predicated region
    $region66: #{nn2_forward.1} parent=1 // pred_check
      _
    $region67: #{nn2_forward.1} parent=1 // pred_check_branch
      %150 = sbr.rel (0) target = $region69
    $region68: #{nn2_forward.1} parent=1 // pred_region
      %151 = dma.done [#allocation11], 32
    $region69: #{nn2_forward.1} parent=1 // pred_fallthru
      _
    // Predicated region
    $region70: #{nn2_forward.1} parent=1 // pred_check
      _
    $region71: #{nn2_forward.1} parent=1 // pred_check_branch
      %153 = sbr.rel (0) target = $region73
    $region72: #{nn2_forward.1} parent=1 // pred_region
      %154 = dma.done [#allocation11], 2048
    $region73: #{nn2_forward.1} parent=1 // pred_fallthru
      _
    // Predicated region
    $region74: #{nn2_forward.1} parent=1 // pred_check
      _
    $region75: #{nn2_forward.1} parent=1 // pred_check_branch
      %156 = sbr.rel (0) target = $region77
    $region76: #{nn2_forward.1} parent=1 // pred_region
      %157 = dma.done [#allocation14], 16
    $region77: #{nn2_forward.1} parent=1 // pred_fallthru
      _
    // Predicated region
    $region78: #{nn2_forward.1} parent=1 // pred_check
      _
    $region79: #{nn2_forward.1} parent=1 // pred_check_branch
      %159 = sbr.rel (0) target = $region81
    $region80: #{nn2_forward.1} parent=1 // pred_region
      %160 = dma.done [#allocation14], 1024
    $region81: #{nn2_forward.1} parent=1 // pred_fallthru
      _
    // Predicated region
    $region82: #{nn2_forward.1} parent=1 // pred_check
      _
    $region83: #{nn2_forward.1} parent=1 // pred_check_branch
      %162 = sbr.rel (0) target = $region85
    $region84: #{nn2_forward.1} parent=1 // pred_region
      %163 = dma.done [#allocation17], 16
    $region85: #{nn2_forward.1} parent=1 // pred_fallthru
      _
    %v165 = vld [vmem:[%s0] sm:$0xff]
    %v166 = vld [vmem:[%s0 + $0x8] sm:$0xff]
    %v167 = vld [vmem:[%s0 + $0x10] sm:$0xff]
    %v168 = vld [vmem:[%s0 + $0x18] sm:$0xff]
    %v169 = vld [vmem:[%s0 + $0x20] sm:$0xff]
    %v170 = vld [vmem:[%s0 + $0x28] sm:$0xff]
    %v171 = vld [vmem:[%s0 + $0x30] sm:$0xff]
    %v172 = vld [vmem:[%s0 + $0x38] sm:$0xff]
    %v173 = vld [vmem:[%s0 + $0x40] sm:$0xff]
    %v174 = vld [vmem:[%s0 + $0x48] sm:$0xff]
    %v175 = vld [vmem:[%s0 + $0x50] sm:$0xff]
    %v176 = vld [vmem:[%s0 + $0x58] sm:$0xff]
    %v177 = vld [vmem:[%s0 + $0x60] sm:$0xff]
    %v178 = vld [vmem:[%s0 + $0x68] sm:$0xff]
    %v179 = vpack.c.bf16 %v172, %v165
    %v180 = vpack.c.bf16 %v173, %v166
    %v181 = vpack.c.bf16 %v174, %v167
    %v182 = vpack.c.bf16 %v175, %v168
    %v183 = vpack.c.bf16 %v176, %v169
    %v184 = vpack.c.bf16 %v177, %v170
    %v185 = vpack.c.bf16 %v178, %v171
    %v186 = vld [vmem:[#allocation2] sm:$0xff]
    %v187 = vld [vmem:[#allocation2 + $0x8] sm:$0xff]
    %v188 = vld [vmem:[#allocation2 + $0x10] sm:$0xff]
    %v189 = vld [vmem:[#allocation2 + $0x18] sm:$0xff]
    %v190 = vld [vmem:[#allocation2 + $0x20] sm:$0xff]
    %v191 = vld [vmem:[#allocation2 + $0x28] sm:$0xff]
    %v192 = vld [vmem:[#allocation2 + $0x30] sm:$0xff]
    %v193 = vld [vmem:[#allocation2 + $0x38] sm:$0xff]
    %v194 = vld [vmem:[#allocation2 + $0x40] sm:$0xff]
    %v195 = vld [vmem:[#allocation2 + $0x48] sm:$0xff]
    %v196 = vld [vmem:[#allocation2 + $0x50] sm:$0xff]
    %v197 = vld [vmem:[#allocation2 + $0x58] sm:$0xff]
    %v198 = vld [vmem:[#allocation2 + $0x60] sm:$0xff]
    %v199 = vld [vmem:[#allocation2 + $0x68] sm:$0xff]
    %v200 = vld [vmem:[#allocation2 + $0x70] sm:$0xff]
    %v201 = vld [vmem:[#allocation2 + $0x78] sm:$0xff]
    %v202 = vld [vmem:[#allocation2 + $0x80] sm:$0xff]
    %v203 = vld [vmem:[#allocation2 + $0x88] sm:$0xff]
    %v204 = vld [vmem:[#allocation2 + $0x90] sm:$0xff]
    %v205 = vld [vmem:[#allocation2 + $0x98] sm:$0xff]
    %v206 = vld [vmem:[#allocation2 + $0xa0] sm:$0xff]
    %v207 = vld [vmem:[#allocation2 + $0xa8] sm:$0xff]
    %v208 = vld [vmem:[#allocation2 + $0xb0] sm:$0xff]
    %v209 = vld [vmem:[#allocation2 + $0xb8] sm:$0xff]
    %v210 = vld [vmem:[#allocation2 + $0xc0] sm:$0xff]
    %v211 = vld [vmem:[#allocation2 + $0xc8] sm:$0xff]
    %v212 = vld [vmem:[#allocation2 + $0xd0] sm:$0xff]
    %v213 = vld [vmem:[#allocation2 + $0xd8] sm:$0xff]
    %v214 = vld [vmem:[#allocation2 + $0xe0] sm:$0xff]
    %v215 = vld [vmem:[#allocation2 + $0xe8] sm:$0xff]
    %v216 = vld [vmem:[#allocation2 + $0xf0] sm:$0xff]
    %v217 = vld [vmem:[#allocation2 + $0xf8] sm:$0xff]
    %v218 = vld [vmem:[#allocation2 + $0x100] sm:$0xff]
    %v219 = vld [vmem:[#allocation2 + $0x108] sm:$0xff]
    %v220 = vld [vmem:[#allocation2 + $0x110] sm:$0xff]
    %v221 = vld [vmem:[#allocation2 + $0x118] sm:$0xff]
    %v222 = vld [vmem:[#allocation2 + $0x120] sm:$0xff]
    %v223 = vld [vmem:[#allocation2 + $0x128] sm:$0xff]
    %v224 = vld [vmem:[#allocation2 + $0x130] sm:$0xff]
    %v225 = vld [vmem:[#allocation2 + $0x138] sm:$0xff]
    %v226 = vld [vmem:[#allocation2 + $0x140] sm:$0xff]
    %v227 = vld [vmem:[#allocation2 + $0x148] sm:$0xff]
    %v228 = vld [vmem:[#allocation2 + $0x150] sm:$0xff]
    %v229 = vld [vmem:[#allocation2 + $0x158] sm:$0xff]
    %v230 = vld [vmem:[#allocation2 + $0x160] sm:$0xff]
    %v231 = vld [vmem:[#allocation2 + $0x168] sm:$0xff]
    %v232 = vld [vmem:[#allocation2 + $0x170] sm:$0xff]
    %v233 = vld [vmem:[#allocation2 + $0x178] sm:$0xff]
    %v234 = vld [vmem:[#allocation2 + $0x180] sm:$0xff]
    %v235 = vld [vmem:[#allocation2 + $0x188] sm:$0xff]
    %v236 = vld [vmem:[#allocation2 + $0x190] sm:$0xff]
    %v237 = vld [vmem:[#allocation2 + $0x198] sm:$0xff]
    %v238 = vld [vmem:[#allocation2 + $0x1a0] sm:$0xff]
    %v239 = vld [vmem:[#allocation2 + $0x1a8] sm:$0xff]
    %v240 = vld [vmem:[#allocation2 + $0x1b0] sm:$0xff]
    %v241 = vld [vmem:[#allocation2 + $0x1b8] sm:$0xff]
    %v242 = vld [vmem:[#allocation2 + $0x1c0] sm:$0xff]
    %v243 = vld [vmem:[#allocation2 + $0x1c8] sm:$0xff]
    %v244 = vld [vmem:[#allocation2 + $0x1d0] sm:$0xff]
    %v245 = vld [vmem:[#allocation2 + $0x1d8] sm:$0xff]
    %v246 = vld [vmem:[#allocation2 + $0x1e0] sm:$0xff]
    %v247 = vld [vmem:[#allocation2 + $0x1e8] sm:$0xff]
    %v248 = vld [vmem:[#allocation2 + $0x1f0] sm:$0xff]
    %v249 = vld [vmem:[#allocation2 + $0x1f8] sm:$0xff]
    %v250 = vld [vmem:[#allocation2 + $0x200] sm:$0xff]
    %v251 = vld [vmem:[#allocation2 + $0x208] sm:$0xff]
    %v252 = vld [vmem:[#allocation2 + $0x210] sm:$0xff]
    %v253 = vld [vmem:[#allocation2 + $0x218] sm:$0xff]
    %v254 = vld [vmem:[#allocation2 + $0x220] sm:$0xff]
    %v255 = vld [vmem:[#allocation2 + $0x228] sm:$0xff]
    %v256 = vld [vmem:[#allocation2 + $0x230] sm:$0xff]
    %v257 = vld [vmem:[#allocation2 + $0x238] sm:$0xff]
    %v258 = vld [vmem:[#allocation2 + $0x240] sm:$0xff]
    %v259 = vld [vmem:[#allocation2 + $0x248] sm:$0xff]
    %v260 = vld [vmem:[#allocation2 + $0x250] sm:$0xff]
    %v261 = vld [vmem:[#allocation2 + $0x258] sm:$0xff]
    %v262 = vld [vmem:[#allocation2 + $0x260] sm:$0xff]
    %v263 = vld [vmem:[#allocation2 + $0x268] sm:$0xff]
    %v264 = vld [vmem:[#allocation2 + $0x270] sm:$0xff]
    %v265 = vld [vmem:[#allocation2 + $0x278] sm:$0xff]
    %v266 = vld [vmem:[#allocation2 + $0x280] sm:$0xff]
    %v267 = vld [vmem:[#allocation2 + $0x288] sm:$0xff]
    %v268 = vld [vmem:[#allocation2 + $0x290] sm:$0xff]
    %v269 = vld [vmem:[#allocation2 + $0x298] sm:$0xff]
    %v270 = vld [vmem:[#allocation2 + $0x2a0] sm:$0xff]
    %v271 = vld [vmem:[#allocation2 + $0x2a8] sm:$0xff]
    %v272 = vld [vmem:[#allocation2 + $0x2b0] sm:$0xff]
    %v273 = vld [vmem:[#allocation2 + $0x2b8] sm:$0xff]
    %v274 = vld [vmem:[#allocation2 + $0x2c0] sm:$0xff]
    %v275 = vld [vmem:[#allocation2 + $0x2c8] sm:$0xff]
    %v276 = vld [vmem:[#allocation2 + $0x2d0] sm:$0xff]
    %v277 = vld [vmem:[#allocation2 + $0x2d8] sm:$0xff]
    %v278 = vld [vmem:[#allocation2 + $0x2e0] sm:$0xff]
    %v279 = vld [vmem:[#allocation2 + $0x2e8] sm:$0xff]
    %v280 = vld [vmem:[#allocation2 + $0x2f0] sm:$0xff]
    %v281 = vld [vmem:[#allocation2 + $0x2f8] sm:$0xff]
    %v282 = vld [vmem:[#allocation2 + $0x300] sm:$0xff]
    %v283 = vld [vmem:[#allocation2 + $0x308] sm:$0xff]
    %v284 = vld [vmem:[#allocation2 + $0x310] sm:$0xff]
    %v285 = vld [vmem:[#allocation2 + $0x318] sm:$0xff]
    %v286 = vld [vmem:[#allocation2 + $0x320] sm:$0xff]
    %v287 = vld [vmem:[#allocation2 + $0x328] sm:$0xff]
    %v288 = vld [vmem:[#allocation2 + $0x330] sm:$0xff]
    %v289 = vld [vmem:[#allocation2 + $0x338] sm:$0xff]
    %v290 = vld [vmem:[#allocation2 + $0x340] sm:$0xff]
    %v291 = vld [vmem:[#allocation2 + $0x348] sm:$0xff]
    %v292 = vld [vmem:[#allocation2 + $0x350] sm:$0xff]
    %v293 = vld [vmem:[#allocation2 + $0x358] sm:$0xff]
    %v294 = vld [vmem:[#allocation2 + $0x360] sm:$0xff]
    %v295 = vld [vmem:[#allocation2 + $0x368] sm:$0xff]
    %v296 = vld [vmem:[#allocation2 + $0x370] sm:$0xff]
    %v297 = vld [vmem:[#allocation2 + $0x378] sm:$0xff]
    %v298 = vld [vmem:[#allocation2 + $0x380] sm:$0xff]
    %v299 = vld [vmem:[#allocation2 + $0x388] sm:$0xff]
    %v300 = vld [vmem:[#allocation2 + $0x390] sm:$0xff]
    %v301 = vld [vmem:[#allocation2 + $0x398] sm:$0xff]
    %v302 = vld [vmem:[#allocation2 + $0x3a0] sm:$0xff]
    %v303 = vld [vmem:[#allocation2 + $0x3a8] sm:$0xff]
    %v304 = vld [vmem:[#allocation2 + $0x3b0] sm:$0xff]
    %v305 = vld [vmem:[#allocation2 + $0x3b8] sm:$0xff]
    %v306 = vld [vmem:[#allocation2 + $0x3c0] sm:$0xff]
    %v307 = vld [vmem:[#allocation2 + $0x3c8] sm:$0xff]
    %v308 = vld [vmem:[#allocation2 + $0x3d0] sm:$0xff]
    %v309 = vld [vmem:[#allocation2 + $0x3d8] sm:$0xff]
    %v310 = vld [vmem:[#allocation2 + $0x3e0] sm:$0xff]
    %v311 = vld [vmem:[#allocation2 + $0x3e8] sm:$0xff]
    %v312 = vld [vmem:[#allocation2 + $0x3f0] sm:$0xff]
    %v313 = vld [vmem:[#allocation2 + $0x3f8] sm:$0xff]
    %v314 = vld [vmem:[#allocation2 + $0x400] sm:$0xff]
    %v315 = vld [vmem:[#allocation2 + $0x408] sm:$0xff]
    %v316 = vld [vmem:[#allocation2 + $0x410] sm:$0xff]
    %v317 = vld [vmem:[#allocation2 + $0x418] sm:$0xff]
    %v318 = vld [vmem:[#allocation2 + $0x420] sm:$0xff]
    %v319 = vld [vmem:[#allocation2 + $0x428] sm:$0xff]
    %v320 = vld [vmem:[#allocation2 + $0x430] sm:$0xff]
    %v321 = vld [vmem:[#allocation2 + $0x438] sm:$0xff]
    %v322 = vld [vmem:[#allocation2 + $0x440] sm:$0xff]
    %v323 = vld [vmem:[#allocation2 + $0x448] sm:$0xff]
    %v324 = vld [vmem:[#allocation2 + $0x450] sm:$0xff]
    %v325 = vld [vmem:[#allocation2 + $0x458] sm:$0xff]
    %v326 = vld [vmem:[#allocation2 + $0x460] sm:$0xff]
    %v327 = vld [vmem:[#allocation2 + $0x468] sm:$0xff]
    %v328 = vld [vmem:[#allocation2 + $0x470] sm:$0xff]
    %v329 = vld [vmem:[#allocation2 + $0x478] sm:$0xff]
    %v330 = vld [vmem:[#allocation2 + $0x480] sm:$0xff]
    %v331 = vld [vmem:[#allocation2 + $0x488] sm:$0xff]
    %v332 = vld [vmem:[#allocation2 + $0x490] sm:$0xff]
    %v333 = vld [vmem:[#allocation2 + $0x498] sm:$0xff]
    %v334 = vld [vmem:[#allocation2 + $0x4a0] sm:$0xff]
    %v335 = vld [vmem:[#allocation2 + $0x4a8] sm:$0xff]
    %v336 = vld [vmem:[#allocation2 + $0x4b0] sm:$0xff]
    %v337 = vld [vmem:[#allocation2 + $0x4b8] sm:$0xff]
    %v338 = vld [vmem:[#allocation2 + $0x4c0] sm:$0xff]
    %v339 = vld [vmem:[#allocation2 + $0x4c8] sm:$0xff]
    %v340 = vld [vmem:[#allocation2 + $0x4d0] sm:$0xff]
    %v341 = vld [vmem:[#allocation2 + $0x4d8] sm:$0xff]
    %v342 = vld [vmem:[#allocation2 + $0x4e0] sm:$0xff]
    %v343 = vld [vmem:[#allocation2 + $0x4e8] sm:$0xff]
    %v344 = vld [vmem:[#allocation2 + $0x4f0] sm:$0xff]
    %v345 = vld [vmem:[#allocation2 + $0x4f8] sm:$0xff]
    %v346 = vld [vmem:[#allocation2 + $0x500] sm:$0xff]
    %v347 = vld [vmem:[#allocation2 + $0x508] sm:$0xff]
    %v348 = vld [vmem:[#allocation2 + $0x510] sm:$0xff]
    %v349 = vld [vmem:[#allocation2 + $0x518] sm:$0xff]
    %v350 = vld [vmem:[#allocation2 + $0x520] sm:$0xff]
    %v351 = vld [vmem:[#allocation2 + $0x528] sm:$0xff]
    %v352 = vld [vmem:[#allocation2 + $0x530] sm:$0xff]
    %v353 = vld [vmem:[#allocation2 + $0x538] sm:$0xff]
    %v354 = vld [vmem:[#allocation2 + $0x540] sm:$0xff]
    %v355 = vld [vmem:[#allocation2 + $0x548] sm:$0xff]
    %v356 = vld [vmem:[#allocation2 + $0x550] sm:$0xff]
    %v357 = vld [vmem:[#allocation2 + $0x558] sm:$0xff]
    %v358 = vld [vmem:[#allocation2 + $0x560] sm:$0xff]
    %v359 = vld [vmem:[#allocation2 + $0x568] sm:$0xff]
    %v360 = vld [vmem:[#allocation2 + $0x570] sm:$0xff]
    %v361 = vld [vmem:[#allocation2 + $0x578] sm:$0xff]
    %v362 = vld [vmem:[#allocation2 + $0x580] sm:$0xff]
    %v363 = vld [vmem:[#allocation2 + $0x588] sm:$0xff]
    %v364 = vld [vmem:[#allocation2 + $0x590] sm:$0xff]
    %v365 = vld [vmem:[#allocation2 + $0x598] sm:$0xff]
    %v366 = vld [vmem:[#allocation2 + $0x5a0] sm:$0xff]
    %v367 = vld [vmem:[#allocation2 + $0x5a8] sm:$0xff]
    %v368 = vld [vmem:[#allocation2 + $0x5b0] sm:$0xff]
    %v369 = vld [vmem:[#allocation2 + $0x5b8] sm:$0xff]
    %v370 = vld [vmem:[#allocation2 + $0x5c0] sm:$0xff]
    %v371 = vld [vmem:[#allocation2 + $0x5c8] sm:$0xff]
    %v372 = vld [vmem:[#allocation2 + $0x5d0] sm:$0xff]
    %v373 = vld [vmem:[#allocation2 + $0x5d8] sm:$0xff]
    %v374 = vld [vmem:[#allocation2 + $0x5e0] sm:$0xff]
    %v375 = vld [vmem:[#allocation2 + $0x5e8] sm:$0xff]
    %v376 = vld [vmem:[#allocation2 + $0x5f0] sm:$0xff]
    %v377 = vld [vmem:[#allocation2 + $0x5f8] sm:$0xff]
    %v378 = vld [vmem:[#allocation2 + $0x600] sm:$0xff]
    %v379 = vld [vmem:[#allocation2 + $0x608] sm:$0xff]
    %v380 = vld [vmem:[#allocation2 + $0x610] sm:$0xff]
    %v381 = vld [vmem:[#allocation2 + $0x618] sm:$0xff]
    %v382 = vld [vmem:[#allocation2 + $0x620] sm:$0xff]
    %v383 = vld [vmem:[#allocation2 + $0x628] sm:$0xff]
    %v384 = vld [vmem:[#allocation2 + $0x630] sm:$0xff]
    %v385 = vld [vmem:[#allocation2 + $0x638] sm:$0xff]
    %v386 = vld [vmem:[#allocation2 + $0x640] sm:$0xff]
    %v387 = vld [vmem:[#allocation2 + $0x648] sm:$0xff]
    %v388 = vld [vmem:[#allocation2 + $0x650] sm:$0xff]
    %v389 = vld [vmem:[#allocation2 + $0x658] sm:$0xff]
    %v390 = vld [vmem:[#allocation2 + $0x660] sm:$0xff]
    %v391 = vld [vmem:[#allocation2 + $0x668] sm:$0xff]
    %v392 = vld [vmem:[#allocation2 + $0x670] sm:$0xff]
    %v393 = vld [vmem:[#allocation2 + $0x678] sm:$0xff]
    %v394 = vld [vmem:[#allocation2 + $0x680] sm:$0xff]
    %v395 = vld [vmem:[#allocation2 + $0x688] sm:$0xff]
    %v396 = vld [vmem:[#allocation2 + $0x690] sm:$0xff]
    %v397 = vld [vmem:[#allocation2 + $0x698] sm:$0xff]
    %v398 = vld [vmem:[#allocation2 + $0x6a0] sm:$0xff]
    %v399 = vld [vmem:[#allocation2 + $0x6a8] sm:$0xff]
    %v400 = vld [vmem:[#allocation2 + $0x6b0] sm:$0xff]
    %v401 = vld [vmem:[#allocation2 + $0x6b8] sm:$0xff]
    %v402 = vld [vmem:[#allocation2 + $0x6c0] sm:$0xff]
    %v403 = vld [vmem:[#allocation2 + $0x6c8] sm:$0xff]
    %v404 = vld [vmem:[#allocation2 + $0x6d0] sm:$0xff]
    %v405 = vld [vmem:[#allocation2 + $0x6d8] sm:$0xff]
    %v406 = vld [vmem:[#allocation2 + $0x6e0] sm:$0xff]
    %v407 = vld [vmem:[#allocation2 + $0x6e8] sm:$0xff]
    %v408 = vld [vmem:[#allocation2 + $0x6f0] sm:$0xff]
    %v409 = vld [vmem:[#allocation2 + $0x6f8] sm:$0xff]
    %v410 = vld [vmem:[#allocation2 + $0x700] sm:$0xff]
    %v411 = vld [vmem:[#allocation2 + $0x708] sm:$0xff]
    %v412 = vld [vmem:[#allocation2 + $0x710] sm:$0xff]
    %v413 = vld [vmem:[#allocation2 + $0x718] sm:$0xff]
    %v414 = vld [vmem:[#allocation2 + $0x720] sm:$0xff]
    %v415 = vld [vmem:[#allocation2 + $0x728] sm:$0xff]
    %v416 = vld [vmem:[#allocation2 + $0x730] sm:$0xff]
    %v417 = vld [vmem:[#allocation2 + $0x738] sm:$0xff]
    %v418 = vld [vmem:[#allocation2 + $0x740] sm:$0xff]
    %v419 = vld [vmem:[#allocation2 + $0x748] sm:$0xff]
    %v420 = vld [vmem:[#allocation2 + $0x750] sm:$0xff]
    %v421 = vld [vmem:[#allocation2 + $0x758] sm:$0xff]
    %v422 = vld [vmem:[#allocation2 + $0x760] sm:$0xff]
    %v423 = vld [vmem:[#allocation2 + $0x768] sm:$0xff]
    %v424 = vld [vmem:[#allocation2 + $0x770] sm:$0xff]
    %v425 = vld [vmem:[#allocation2 + $0x778] sm:$0xff]
    %v426 = vld [vmem:[#allocation2 + $0x780] sm:$0xff]
    %v427 = vld [vmem:[#allocation2 + $0x788] sm:$0xff]
    %v428 = vld [vmem:[#allocation2 + $0x790] sm:$0xff]
    %v429 = vld [vmem:[#allocation2 + $0x798] sm:$0xff]
    %v430 = vld [vmem:[#allocation2 + $0x7a0] sm:$0xff]
    %v431 = vld [vmem:[#allocation2 + $0x7a8] sm:$0xff]
    %v432 = vld [vmem:[#allocation2 + $0x7b0] sm:$0xff]
    %v433 = vld [vmem:[#allocation2 + $0x7b8] sm:$0xff]
    %v434 = vld [vmem:[#allocation2 + $0x7c0] sm:$0xff]
    %v435 = vld [vmem:[#allocation2 + $0x7c8] sm:$0xff]
    %v436 = vld [vmem:[#allocation2 + $0x7d0] sm:$0xff]
    %v437 = vld [vmem:[#allocation2 + $0x7d8] sm:$0xff]
    %v438 = vld [vmem:[#allocation2 + $0x7e0] sm:$0xff]
    %v439 = vld [vmem:[#allocation2 + $0x7e8] sm:$0xff]
    %v440 = vld [vmem:[#allocation2 + $0x7f0] sm:$0xff]
    %v441 = vld [vmem:[#allocation2 + $0x7f8] sm:$0xff]
    %v442 = vld [vmem:[#allocation2 + $0x800] sm:$0xff]
    %v443 = vld [vmem:[#allocation2 + $0x808] sm:$0xff]
    %v444 = vld [vmem:[#allocation2 + $0x810] sm:$0xff]
    %v445 = vld [vmem:[#allocation2 + $0x818] sm:$0xff]
    %v446 = vld [vmem:[#allocation2 + $0x820] sm:$0xff]
    %v447 = vld [vmem:[#allocation2 + $0x828] sm:$0xff]
    %v448 = vld [vmem:[#allocation2 + $0x830] sm:$0xff]
    %v449 = vld [vmem:[#allocation2 + $0x838] sm:$0xff]
    %v450 = vld [vmem:[#allocation2 + $0x840] sm:$0xff]
    %v451 = vld [vmem:[#allocation2 + $0x848] sm:$0xff]
    %v452 = vld [vmem:[#allocation2 + $0x850] sm:$0xff]
    %v453 = vld [vmem:[#allocation2 + $0x858] sm:$0xff]
    %v454 = vld [vmem:[#allocation2 + $0x860] sm:$0xff]
    %v455 = vld [vmem:[#allocation2 + $0x868] sm:$0xff]
    %v456 = vld [vmem:[#allocation2 + $0x870] sm:$0xff]
    %v457 = vld [vmem:[#allocation2 + $0x878] sm:$0xff]
    %v458 = vld [vmem:[#allocation2 + $0x880] sm:$0xff]
    %v459 = vld [vmem:[#allocation2 + $0x888] sm:$0xff]
    %v460 = vld [vmem:[#allocation2 + $0x890] sm:$0xff]
    %v461 = vld [vmem:[#allocation2 + $0x898] sm:$0xff]
    %v462 = vld [vmem:[#allocation2 + $0x8a0] sm:$0xff]
    %v463 = vld [vmem:[#allocation2 + $0x8a8] sm:$0xff]
    %v464 = vld [vmem:[#allocation2 + $0x8b0] sm:$0xff]
    %v465 = vld [vmem:[#allocation2 + $0x8b8] sm:$0xff]
    %v466 = vld [vmem:[#allocation2 + $0x8c0] sm:$0xff]
    %v467 = vld [vmem:[#allocation2 + $0x8c8] sm:$0xff]
    %v468 = vld [vmem:[#allocation2 + $0x8d0] sm:$0xff]
    %v469 = vld [vmem:[#allocation2 + $0x8d8] sm:$0xff]
    %v470 = vld [vmem:[#allocation2 + $0x8e0] sm:$0xff]
    %v471 = vld [vmem:[#allocation2 + $0x8e8] sm:$0xff]
    %v472 = vld [vmem:[#allocation2 + $0x8f0] sm:$0xff]
    %v473 = vld [vmem:[#allocation2 + $0x8f8] sm:$0xff]
    %v474 = vld [vmem:[#allocation2 + $0x900] sm:$0xff]
    %v475 = vld [vmem:[#allocation2 + $0x908] sm:$0xff]
    %v476 = vld [vmem:[#allocation2 + $0x910] sm:$0xff]
    %v477 = vld [vmem:[#allocation2 + $0x918] sm:$0xff]
    %v478 = vld [vmem:[#allocation2 + $0x920] sm:$0xff]
    %v479 = vld [vmem:[#allocation2 + $0x928] sm:$0xff]
    %v480 = vld [vmem:[#allocation2 + $0x930] sm:$0xff]
    %v481 = vld [vmem:[#allocation2 + $0x938] sm:$0xff]
    %v482 = vld [vmem:[#allocation2 + $0x940] sm:$0xff]
    %v483 = vld [vmem:[#allocation2 + $0x948] sm:$0xff]
    %v484 = vld [vmem:[#allocation2 + $0x950] sm:$0xff]
    %v485 = vld [vmem:[#allocation2 + $0x958] sm:$0xff]
    %v486 = vld [vmem:[#allocation2 + $0x960] sm:$0xff]
    %v487 = vld [vmem:[#allocation2 + $0x968] sm:$0xff]
    %v488 = vld [vmem:[#allocation2 + $0x970] sm:$0xff]
    %v489 = vld [vmem:[#allocation2 + $0x978] sm:$0xff]
    %v490 = vld [vmem:[#allocation2 + $0x980] sm:$0xff]
    %v491 = vld [vmem:[#allocation2 + $0x988] sm:$0xff]
    %v492 = vld [vmem:[#allocation2 + $0x990] sm:$0xff]
    %v493 = vld [vmem:[#allocation2 + $0x998] sm:$0xff]
    %v494 = vld [vmem:[#allocation2 + $0x9a0] sm:$0xff]
    %v495 = vld [vmem:[#allocation2 + $0x9a8] sm:$0xff]
    %v496 = vld [vmem:[#allocation2 + $0x9b0] sm:$0xff]
    %v497 = vld [vmem:[#allocation2 + $0x9b8] sm:$0xff]
    %v498 = vld [vmem:[#allocation2 + $0x9c0] sm:$0xff]
    %v499 = vld [vmem:[#allocation2 + $0x9c8] sm:$0xff]
    %v500 = vld [vmem:[#allocation2 + $0x9d0] sm:$0xff]
    %v501 = vld [vmem:[#allocation2 + $0x9d8] sm:$0xff]
    %v502 = vld [vmem:[#allocation2 + $0x9e0] sm:$0xff]
    %v503 = vld [vmem:[#allocation2 + $0x9e8] sm:$0xff]
    %v504 = vld [vmem:[#allocation2 + $0x9f0] sm:$0xff]
    %v505 = vld [vmem:[#allocation2 + $0x9f8] sm:$0xff]
    %v506 = vld [vmem:[#allocation2 + $0xa00] sm:$0xff]
    %v507 = vld [vmem:[#allocation2 + $0xa08] sm:$0xff]
    %v508 = vld [vmem:[#allocation2 + $0xa10] sm:$0xff]
    %v509 = vld [vmem:[#allocation2 + $0xa18] sm:$0xff]
    %v510 = vld [vmem:[#allocation2 + $0xa20] sm:$0xff]
    %v511 = vld [vmem:[#allocation2 + $0xa28] sm:$0xff]
    %v512 = vld [vmem:[#allocation2 + $0xa30] sm:$0xff]
    %v513 = vld [vmem:[#allocation2 + $0xa38] sm:$0xff]
    %v514 = vld [vmem:[#allocation2 + $0xa40] sm:$0xff]
    %v515 = vld [vmem:[#allocation2 + $0xa48] sm:$0xff]
    %v516 = vld [vmem:[#allocation2 + $0xa50] sm:$0xff]
    %v517 = vld [vmem:[#allocation2 + $0xa58] sm:$0xff]
    %v518 = vld [vmem:[#allocation2 + $0xa60] sm:$0xff]
    %v519 = vld [vmem:[#allocation2 + $0xa68] sm:$0xff]
    %v520 = vld [vmem:[#allocation2 + $0xa70] sm:$0xff]
    %v521 = vld [vmem:[#allocation2 + $0xa78] sm:$0xff]
    %v522 = vld [vmem:[#allocation2 + $0xa80] sm:$0xff]
    %v523 = vld [vmem:[#allocation2 + $0xa88] sm:$0xff]
    %v524 = vld [vmem:[#allocation2 + $0xa90] sm:$0xff]
    %v525 = vld [vmem:[#allocation2 + $0xa98] sm:$0xff]
    %v526 = vld [vmem:[#allocation2 + $0xaa0] sm:$0xff]
    %v527 = vld [vmem:[#allocation2 + $0xaa8] sm:$0xff]
    %v528 = vld [vmem:[#allocation2 + $0xab0] sm:$0xff]
    %v529 = vld [vmem:[#allocation2 + $0xab8] sm:$0xff]
    %v530 = vld [vmem:[#allocation2 + $0xac0] sm:$0xff]
    %v531 = vld [vmem:[#allocation2 + $0xac8] sm:$0xff]
    %v532 = vld [vmem:[#allocation2 + $0xad0] sm:$0xff]
    %v533 = vld [vmem:[#allocation2 + $0xad8] sm:$0xff]
    %v534 = vld [vmem:[#allocation2 + $0xae0] sm:$0xff]
    %v535 = vld [vmem:[#allocation2 + $0xae8] sm:$0xff]
    %v536 = vld [vmem:[#allocation2 + $0xaf0] sm:$0xff]
    %v537 = vld [vmem:[#allocation2 + $0xaf8] sm:$0xff]
    %v538 = vld [vmem:[#allocation2 + $0xb00] sm:$0xff]
    %v539 = vld [vmem:[#allocation2 + $0xb08] sm:$0xff]
    %v540 = vld [vmem:[#allocation2 + $0xb10] sm:$0xff]
    %v541 = vld [vmem:[#allocation2 + $0xb18] sm:$0xff]
    %v542 = vld [vmem:[#allocation2 + $0xb20] sm:$0xff]
    %v543 = vld [vmem:[#allocation2 + $0xb28] sm:$0xff]
    %v544 = vld [vmem:[#allocation2 + $0xb30] sm:$0xff]
    %v545 = vld [vmem:[#allocation2 + $0xb38] sm:$0xff]
    %v546 = vld [vmem:[#allocation2 + $0xb40] sm:$0xff]
    %v547 = vld [vmem:[#allocation2 + $0xb48] sm:$0xff]
    %v548 = vld [vmem:[#allocation2 + $0xb50] sm:$0xff]
    %v549 = vld [vmem:[#allocation2 + $0xb58] sm:$0xff]
    %v550 = vld [vmem:[#allocation2 + $0xb60] sm:$0xff]
    %v551 = vld [vmem:[#allocation2 + $0xb68] sm:$0xff]
    %v552 = vld [vmem:[#allocation2 + $0xb70] sm:$0xff]
    %v553 = vld [vmem:[#allocation2 + $0xb78] sm:$0xff]
    %v554 = vld [vmem:[#allocation2 + $0xb80] sm:$0xff]
    %v555 = vld [vmem:[#allocation2 + $0xb88] sm:$0xff]
    %v556 = vld [vmem:[#allocation2 + $0xb90] sm:$0xff]
    %v557 = vld [vmem:[#allocation2 + $0xb98] sm:$0xff]
    %v558 = vld [vmem:[#allocation2 + $0xba0] sm:$0xff]
    %v559 = vld [vmem:[#allocation2 + $0xba8] sm:$0xff]
    %v560 = vld [vmem:[#allocation2 + $0xbb0] sm:$0xff]
    %v561 = vld [vmem:[#allocation2 + $0xbb8] sm:$0xff]
    %v562 = vld [vmem:[#allocation2 + $0xbc0] sm:$0xff]
    %v563 = vld [vmem:[#allocation2 + $0xbc8] sm:$0xff]
    %v564 = vld [vmem:[#allocation2 + $0xbd0] sm:$0xff]
    %v565 = vld [vmem:[#allocation2 + $0xbd8] sm:$0xff]
    %v566 = vld [vmem:[#allocation2 + $0xbe0] sm:$0xff]
    %v567 = vld [vmem:[#allocation2 + $0xbe8] sm:$0xff]
    %v568 = vld [vmem:[#allocation2 + $0xbf0] sm:$0xff]
    %v569 = vld [vmem:[#allocation2 + $0xbf8] sm:$0xff]
    %v570 = vld [vmem:[#allocation2 + $0xc00] sm:$0xff]
    %v571 = vld [vmem:[#allocation2 + $0xc08] sm:$0xff]
    %v572 = vld [vmem:[#allocation2 + $0xc10] sm:$0xff]
    %v573 = vld [vmem:[#allocation2 + $0xc18] sm:$0xff]
    %v574 = vld [vmem:[#allocation2 + $0xc20] sm:$0xff]
    %v575 = vld [vmem:[#allocation2 + $0xc28] sm:$0xff]
    %v576 = vld [vmem:[#allocation2 + $0xc30] sm:$0xff]
    %v577 = vld [vmem:[#allocation2 + $0xc38] sm:$0xff]
    %v578 = vld [vmem:[#allocation4] sm:$0xff]
    %v580 = vlaneseq
    %v581 = vshrl.u32 %v580, 7
    %v582 = vsub.s32 0, %v581
    %v583 = vrot.slane %v578, %v582
    %v584 = vlaneseq
    %v585 = vshrl.u32 %v584, 7
    %v586 = vsub.s32 1, %v585
    %v587 = vrot.slane %v578, %v586
    %v588 = vlaneseq
    %v589 = vshrl.u32 %v588, 7
    %v590 = vsub.s32 2, %v589
    %v591 = vrot.slane %v578, %v590
    %v592 = vlaneseq
    %v593 = vshrl.u32 %v592, 7
    %v594 = vsub.s32 3, %v593
    %v595 = vrot.slane %v578, %v594
    %v596 = vlaneseq
    %v597 = vshrl.u32 %v596, 7
    %v598 = vsub.s32 4, %v597
    %v599 = vrot.slane %v578, %v598
    %v600 = vlaneseq
    %v601 = vshrl.u32 %v600, 7
    %v602 = vsub.s32 5, %v601
    %v603 = vrot.slane %v578, %v602
    %v604 = vlaneseq
    %v605 = vshrl.u32 %v604, 7
    %v606 = vsub.s32 6, %v605
    %v607 = vrot.slane %v578, %v606
    %v608 = vlaneseq
    %v609 = vshrl.u32 %v608, 7
    %v610 = vsub.s32 7, %v609
    %v611 = vrot.slane %v578, %v610
    %v1012 = vunpack.c.l.b16 %v186
    %v1013 = vunpack.c.h.b16 %v186
    %v1014 = vunpack.c.l.b16 %v187
    %v1015 = vunpack.c.h.b16 %v187
    %v1016 = vunpack.c.l.b16 %v188
    %v1017 = vunpack.c.h.b16 %v188
    %v1018 = vunpack.c.l.b16 %v189
    %v1019 = vunpack.c.h.b16 %v189
    %v1020 = vunpack.c.l.b16 %v190
    %v1021 = vunpack.c.h.b16 %v190
    %v1022 = vunpack.c.l.b16 %v191
    %v1023 = vunpack.c.h.b16 %v191
    %v1024 = vunpack.c.l.b16 %v192
    %v1025 = vunpack.c.h.b16 %v192
    %v1026 = vunpack.c.l.b16 %v193
    %v1027 = vunpack.c.h.b16 %v193
    %v1028 = vunpack.c.l.b16 %v194
    %v1029 = vunpack.c.h.b16 %v194
    %v1030 = vunpack.c.l.b16 %v195
    %v1031 = vunpack.c.h.b16 %v195
    %v1032 = vunpack.c.l.b16 %v196
    %v1033 = vunpack.c.h.b16 %v196
    %v1034 = vunpack.c.l.b16 %v197
    %v1035 = vunpack.c.h.b16 %v197
    %v1036 = vunpack.c.l.b16 %v198
    %v1037 = vunpack.c.h.b16 %v198
    %v1038 = vunpack.c.l.b16 %v199
    %v1039 = vunpack.c.h.b16 %v199
    %v1040 = vunpack.c.l.b16 %v200
    %v1041 = vunpack.c.h.b16 %v200
    %v1042 = vunpack.c.l.b16 %v201
    %v1043 = vunpack.c.h.b16 %v201
    %v1044 = vunpack.c.l.b16 %v202
    %v1045 = vunpack.c.h.b16 %v202
    %v1046 = vunpack.c.l.b16 %v203
    %v1047 = vunpack.c.h.b16 %v203
    %v1048 = vunpack.c.l.b16 %v204
    %v1049 = vunpack.c.h.b16 %v204
    %v1050 = vunpack.c.l.b16 %v205
    %v1051 = vunpack.c.h.b16 %v205
    %v1052 = vunpack.c.l.b16 %v206
    %v1053 = vunpack.c.h.b16 %v206
    %v1054 = vunpack.c.l.b16 %v207
    %v1055 = vunpack.c.h.b16 %v207
    %v1056 = vunpack.c.l.b16 %v208
    %v1057 = vunpack.c.h.b16 %v208
    %v1058 = vunpack.c.l.b16 %v209
    %v1059 = vunpack.c.h.b16 %v209
    %v1060 = vunpack.c.l.b16 %v210
    %v1061 = vunpack.c.h.b16 %v210
    %v1062 = vunpack.c.l.b16 %v211
    %v1063 = vunpack.c.h.b16 %v211
    %v1064 = vunpack.c.l.b16 %v212
    %v1065 = vunpack.c.h.b16 %v212
    %v1066 = vunpack.c.l.b16 %v213
    %v1067 = vunpack.c.h.b16 %v213
    %v1068 = vunpack.c.l.b16 %v214
    %v1069 = vunpack.c.h.b16 %v214
    %v1070 = vunpack.c.l.b16 %v215
    %v1071 = vunpack.c.h.b16 %v215
    %v1072 = vunpack.c.l.b16 %v216
    %v1073 = vunpack.c.h.b16 %v216
    %v1074 = vunpack.c.l.b16 %v217
    %v1075 = vunpack.c.h.b16 %v217
    %v1076 = vunpack.c.l.b16 %v218
    %v1077 = vunpack.c.h.b16 %v218
    %v1078 = vunpack.c.l.b16 %v219
    %v1079 = vunpack.c.h.b16 %v219
    %v1080 = vunpack.c.l.b16 %v220
    %v1081 = vunpack.c.h.b16 %v220
    %v1082 = vunpack.c.l.b16 %v221
    %v1083 = vunpack.c.h.b16 %v221
    %v1084 = vunpack.c.l.b16 %v222
    %v1085 = vunpack.c.h.b16 %v222
    %v1086 = vunpack.c.l.b16 %v223
    %v1087 = vunpack.c.h.b16 %v223
    %v1088 = vunpack.c.l.b16 %v224
    %v1089 = vunpack.c.h.b16 %v224
    %v1090 = vunpack.c.l.b16 %v225
    %v1091 = vunpack.c.h.b16 %v225
    %v1092 = vunpack.c.l.b16 %v226
    %v1093 = vunpack.c.h.b16 %v226
    %v1094 = vunpack.c.l.b16 %v227
    %v1095 = vunpack.c.h.b16 %v227
    %v1096 = vunpack.c.l.b16 %v228
    %v1097 = vunpack.c.h.b16 %v228
    %v1098 = vunpack.c.l.b16 %v229
    %v1099 = vunpack.c.h.b16 %v229
    %v1100 = vunpack.c.l.b16 %v230
    %v1101 = vunpack.c.h.b16 %v230
    %v1102 = vunpack.c.l.b16 %v231
    %v1103 = vunpack.c.h.b16 %v231
    %v1104 = vunpack.c.l.b16 %v232
    %v1105 = vunpack.c.h.b16 %v232
    %v1106 = vunpack.c.l.b16 %v233
    %v1107 = vunpack.c.h.b16 %v233
    %v1108 = vunpack.c.l.b16 %v234
    %v1109 = vunpack.c.h.b16 %v234
    %v1110 = vunpack.c.l.b16 %v235
    %v1111 = vunpack.c.h.b16 %v235
    %v1112 = vunpack.c.l.b16 %v236
    %v1113 = vunpack.c.h.b16 %v236
    %v1114 = vunpack.c.l.b16 %v237
    %v1115 = vunpack.c.h.b16 %v237
    %v1116 = vunpack.c.l.b16 %v238
    %v1117 = vunpack.c.h.b16 %v238
    %v1118 = vunpack.c.l.b16 %v239
    %v1119 = vunpack.c.h.b16 %v239
    %v1120 = vunpack.c.l.b16 %v240
    %v1121 = vunpack.c.h.b16 %v240
    %v1122 = vunpack.c.l.b16 %v241
    %v1123 = vunpack.c.h.b16 %v241
    %v1124 = vunpack.c.l.b16 %v242
    %v1125 = vunpack.c.h.b16 %v242
    %v1126 = vunpack.c.l.b16 %v243
    %v1127 = vunpack.c.h.b16 %v243
    %v1128 = vunpack.c.l.b16 %v244
    %v1129 = vunpack.c.h.b16 %v244
    %v1130 = vunpack.c.l.b16 %v245
    %v1131 = vunpack.c.h.b16 %v245
    %v1132 = vunpack.c.l.b16 %v246
    %v1133 = vunpack.c.h.b16 %v246
    %v1134 = vunpack.c.l.b16 %v247
    %v1135 = vunpack.c.h.b16 %v247
    %v1136 = vunpack.c.l.b16 %v248
    %v1137 = vunpack.c.h.b16 %v248
    %v1138 = vunpack.c.l.b16 %v249
    %v1139 = vunpack.c.h.b16 %v249
    %v1140 = vunpack.c.l.b16 %v250
    %v1141 = vunpack.c.h.b16 %v250
    %v1142 = vunpack.c.l.b16 %v251
    %v1143 = vunpack.c.h.b16 %v251
    %v1144 = vunpack.c.l.b16 %v252
    %v1145 = vunpack.c.h.b16 %v252
    %v1146 = vunpack.c.l.b16 %v253
    %v1147 = vunpack.c.h.b16 %v253
    %v1148 = vunpack.c.l.b16 %v254
    %v1149 = vunpack.c.h.b16 %v254
    %v1150 = vunpack.c.l.b16 %v255
    %v1151 = vunpack.c.h.b16 %v255
    %v1152 = vunpack.c.l.b16 %v256
    %v1153 = vunpack.c.h.b16 %v256
    %v1154 = vunpack.c.l.b16 %v257
    %v1155 = vunpack.c.h.b16 %v257
    %v1156 = vunpack.c.l.b16 %v258
    %v1157 = vunpack.c.h.b16 %v258
    %v1158 = vunpack.c.l.b16 %v259
    %v1159 = vunpack.c.h.b16 %v259
    %v1160 = vunpack.c.l.b16 %v260
    %v1161 = vunpack.c.h.b16 %v260
    %v1162 = vunpack.c.l.b16 %v261
    %v1163 = vunpack.c.h.b16 %v261
    %v1164 = vunpack.c.l.b16 %v262
    %v1165 = vunpack.c.h.b16 %v262
    %v1166 = vunpack.c.l.b16 %v263
    %v1167 = vunpack.c.h.b16 %v263
    %v1168 = vunpack.c.l.b16 %v264
    %v1169 = vunpack.c.h.b16 %v264
    %v1170 = vunpack.c.l.b16 %v265
    %v1171 = vunpack.c.h.b16 %v265
    %v1172 = vunpack.c.l.b16 %v266
    %v1173 = vunpack.c.h.b16 %v266
    %v1174 = vunpack.c.l.b16 %v267
    %v1175 = vunpack.c.h.b16 %v267
    %v1176 = vunpack.c.l.b16 %v268
    %v1177 = vunpack.c.h.b16 %v268
    %v1178 = vunpack.c.l.b16 %v269
    %v1179 = vunpack.c.h.b16 %v269
    %v1180 = vunpack.c.l.b16 %v270
    %v1181 = vunpack.c.h.b16 %v270
    %v1182 = vunpack.c.l.b16 %v271
    %v1183 = vunpack.c.h.b16 %v271
    %v1184 = vunpack.c.l.b16 %v272
    %v1185 = vunpack.c.h.b16 %v272
    %v1186 = vunpack.c.l.b16 %v273
    %v1187 = vunpack.c.h.b16 %v273
    %v1188 = vunpack.c.l.b16 %v274
    %v1189 = vunpack.c.h.b16 %v274
    %v1190 = vunpack.c.l.b16 %v275
    %v1191 = vunpack.c.h.b16 %v275
    %v1192 = vunpack.c.l.b16 %v276
    %v1193 = vunpack.c.h.b16 %v276
    %v1194 = vunpack.c.l.b16 %v277
    %v1195 = vunpack.c.h.b16 %v277
    %v1196 = vunpack.c.l.b16 %v278
    %v1197 = vunpack.c.h.b16 %v278
    %v1198 = vunpack.c.l.b16 %v279
    %v1199 = vunpack.c.h.b16 %v279
    %v1200 = vunpack.c.l.b16 %v280
    %v1201 = vunpack.c.h.b16 %v280
    %v1202 = vunpack.c.l.b16 %v281
    %v1203 = vunpack.c.h.b16 %v281
    %v1204 = vunpack.c.l.b16 %v282
    %v1205 = vunpack.c.h.b16 %v282
    %v1206 = vunpack.c.l.b16 %v283
    %v1207 = vunpack.c.h.b16 %v283
    %v1208 = vunpack.c.l.b16 %v284
    %v1209 = vunpack.c.h.b16 %v284
    %v1210 = vunpack.c.l.b16 %v285
    %v1211 = vunpack.c.h.b16 %v285
    %v1212 = vunpack.c.l.b16 %v286
    %v1213 = vunpack.c.h.b16 %v286
    %v1214 = vunpack.c.l.b16 %v287
    %v1215 = vunpack.c.h.b16 %v287
    %v1216 = vunpack.c.l.b16 %v288
    %v1217 = vunpack.c.h.b16 %v288
    %v1218 = vunpack.c.l.b16 %v289
    %v1219 = vunpack.c.h.b16 %v289
    %v1220 = vunpack.c.l.b16 %v290
    %v1221 = vunpack.c.h.b16 %v290
    %v1222 = vunpack.c.l.b16 %v291
    %v1223 = vunpack.c.h.b16 %v291
    %v1224 = vunpack.c.l.b16 %v292
    %v1225 = vunpack.c.h.b16 %v292
    %v1226 = vunpack.c.l.b16 %v293
    %v1227 = vunpack.c.h.b16 %v293
    %v1228 = vunpack.c.l.b16 %v294
    %v1229 = vunpack.c.h.b16 %v294
    %v1230 = vunpack.c.l.b16 %v295
    %v1231 = vunpack.c.h.b16 %v295
    %v1232 = vunpack.c.l.b16 %v296
    %v1233 = vunpack.c.h.b16 %v296
    %v1234 = vunpack.c.l.b16 %v297
    %v1235 = vunpack.c.h.b16 %v297
    %v1236 = vunpack.c.l.b16 %v298
    %v1237 = vunpack.c.h.b16 %v298
    %v1238 = vunpack.c.l.b16 %v299
    %v1239 = vunpack.c.h.b16 %v299
    %v1240 = vunpack.c.l.b16 %v300
    %v1241 = vunpack.c.h.b16 %v300
    %v1242 = vunpack.c.l.b16 %v301
    %v1243 = vunpack.c.h.b16 %v301
    %v1244 = vunpack.c.l.b16 %v302
    %v1245 = vunpack.c.h.b16 %v302
    %v1246 = vunpack.c.l.b16 %v303
    %v1247 = vunpack.c.h.b16 %v303
    %v1248 = vunpack.c.l.b16 %v304
    %v1249 = vunpack.c.h.b16 %v304
    %v1250 = vunpack.c.l.b16 %v305
    %v1251 = vunpack.c.h.b16 %v305
    %v1252 = vunpack.c.l.b16 %v306
    %v1253 = vunpack.c.h.b16 %v306
    %v1254 = vunpack.c.l.b16 %v307
    %v1255 = vunpack.c.h.b16 %v307
    %v1256 = vunpack.c.l.b16 %v308
    %v1257 = vunpack.c.h.b16 %v308
    %v1258 = vunpack.c.l.b16 %v309
    %v1259 = vunpack.c.h.b16 %v309
    %v1260 = vunpack.c.l.b16 %v310
    %v1261 = vunpack.c.h.b16 %v310
    %v1262 = vunpack.c.l.b16 %v311
    %v1263 = vunpack.c.h.b16 %v311
    %v1264 = vunpack.c.l.b16 %v312
    %v1265 = vunpack.c.h.b16 %v312
    %v1266 = vunpack.c.l.b16 %v313
    %v1267 = vunpack.c.h.b16 %v313
    %v1268 = vunpack.c.l.b16 %v314
    %v1269 = vunpack.c.h.b16 %v314
    %v1270 = vunpack.c.l.b16 %v315
    %v1271 = vunpack.c.h.b16 %v315
    %v1272 = vunpack.c.l.b16 %v316
    %v1273 = vunpack.c.h.b16 %v316
    %v1274 = vunpack.c.l.b16 %v317
    %v1275 = vunpack.c.h.b16 %v317
    %v1276 = vunpack.c.l.b16 %v318
    %v1277 = vunpack.c.h.b16 %v318
    %v1278 = vunpack.c.l.b16 %v319
    %v1279 = vunpack.c.h.b16 %v319
    %v1280 = vunpack.c.l.b16 %v320
    %v1281 = vunpack.c.h.b16 %v320
    %v1282 = vunpack.c.l.b16 %v321
    %v1283 = vunpack.c.h.b16 %v321
    %v1284 = vunpack.c.l.b16 %v322
    %v1285 = vunpack.c.h.b16 %v322
    %v1286 = vunpack.c.l.b16 %v323
    %v1287 = vunpack.c.h.b16 %v323
    %v1288 = vunpack.c.l.b16 %v324
    %v1289 = vunpack.c.h.b16 %v324
    %v1290 = vunpack.c.l.b16 %v325
    %v1291 = vunpack.c.h.b16 %v325
    %v1292 = vunpack.c.l.b16 %v326
    %v1293 = vunpack.c.h.b16 %v326
    %v1294 = vunpack.c.l.b16 %v327
    %v1295 = vunpack.c.h.b16 %v327
    %v1296 = vunpack.c.l.b16 %v328
    %v1297 = vunpack.c.h.b16 %v328
    %v1298 = vunpack.c.l.b16 %v329
    %v1299 = vunpack.c.h.b16 %v329
    %v1300 = vunpack.c.l.b16 %v330
    %v1301 = vunpack.c.h.b16 %v330
    %v1302 = vunpack.c.l.b16 %v331
    %v1303 = vunpack.c.h.b16 %v331
    %v1304 = vunpack.c.l.b16 %v332
    %v1305 = vunpack.c.h.b16 %v332
    %v1306 = vunpack.c.l.b16 %v333
    %v1307 = vunpack.c.h.b16 %v333
    %v1308 = vunpack.c.l.b16 %v334
    %v1309 = vunpack.c.h.b16 %v334
    %v1310 = vunpack.c.l.b16 %v335
    %v1311 = vunpack.c.h.b16 %v335
    %v1312 = vunpack.c.l.b16 %v336
    %v1313 = vunpack.c.h.b16 %v336
    %v1314 = vunpack.c.l.b16 %v337
    %v1315 = vunpack.c.h.b16 %v337
    %v1316 = vunpack.c.l.b16 %v338
    %v1317 = vunpack.c.h.b16 %v338
    %v1318 = vunpack.c.l.b16 %v339
    %v1319 = vunpack.c.h.b16 %v339
    %v1320 = vunpack.c.l.b16 %v340
    %v1321 = vunpack.c.h.b16 %v340
    %v1322 = vunpack.c.l.b16 %v341
    %v1323 = vunpack.c.h.b16 %v341
    %v1324 = vunpack.c.l.b16 %v342
    %v1325 = vunpack.c.h.b16 %v342
    %v1326 = vunpack.c.l.b16 %v343
    %v1327 = vunpack.c.h.b16 %v343
    %v1328 = vunpack.c.l.b16 %v344
    %v1329 = vunpack.c.h.b16 %v344
    %v1330 = vunpack.c.l.b16 %v345
    %v1331 = vunpack.c.h.b16 %v345
    %v1332 = vunpack.c.l.b16 %v346
    %v1333 = vunpack.c.h.b16 %v346
    %v1334 = vunpack.c.l.b16 %v347
    %v1335 = vunpack.c.h.b16 %v347
    %v1336 = vunpack.c.l.b16 %v348
    %v1337 = vunpack.c.h.b16 %v348
    %v1338 = vunpack.c.l.b16 %v349
    %v1339 = vunpack.c.h.b16 %v349
    %v1340 = vunpack.c.l.b16 %v350
    %v1341 = vunpack.c.h.b16 %v350
    %v1342 = vunpack.c.l.b16 %v351
    %v1343 = vunpack.c.h.b16 %v351
    %v1344 = vunpack.c.l.b16 %v352
    %v1345 = vunpack.c.h.b16 %v352
    %v1346 = vunpack.c.l.b16 %v353
    %v1347 = vunpack.c.h.b16 %v353
    %v1348 = vunpack.c.l.b16 %v354
    %v1349 = vunpack.c.h.b16 %v354
    %v1350 = vunpack.c.l.b16 %v355
    %v1351 = vunpack.c.h.b16 %v355
    %v1352 = vunpack.c.l.b16 %v356
    %v1353 = vunpack.c.h.b16 %v356
    %v1354 = vunpack.c.l.b16 %v357
    %v1355 = vunpack.c.h.b16 %v357
    %v1356 = vunpack.c.l.b16 %v358
    %v1357 = vunpack.c.h.b16 %v358
    %v1358 = vunpack.c.l.b16 %v359
    %v1359 = vunpack.c.h.b16 %v359
    %v1360 = vunpack.c.l.b16 %v360
    %v1361 = vunpack.c.h.b16 %v360
    %v1362 = vunpack.c.l.b16 %v361
    %v1363 = vunpack.c.h.b16 %v361
    %v1364 = vunpack.c.l.b16 %v362
    %v1365 = vunpack.c.h.b16 %v362
    %v1366 = vunpack.c.l.b16 %v363
    %v1367 = vunpack.c.h.b16 %v363
    %v1368 = vunpack.c.l.b16 %v364
    %v1369 = vunpack.c.h.b16 %v364
    %v1370 = vunpack.c.l.b16 %v365
    %v1371 = vunpack.c.h.b16 %v365
    %v1372 = vunpack.c.l.b16 %v366
    %v1373 = vunpack.c.h.b16 %v366
    %v1374 = vunpack.c.l.b16 %v367
    %v1375 = vunpack.c.h.b16 %v367
    %v1376 = vunpack.c.l.b16 %v368
    %v1377 = vunpack.c.h.b16 %v368
    %v1378 = vunpack.c.l.b16 %v369
    %v1379 = vunpack.c.h.b16 %v369
    %v1380 = vunpack.c.l.b16 %v370
    %v1381 = vunpack.c.h.b16 %v370
    %v1382 = vunpack.c.l.b16 %v371
    %v1383 = vunpack.c.h.b16 %v371
    %v1384 = vunpack.c.l.b16 %v372
    %v1385 = vunpack.c.h.b16 %v372
    %v1386 = vunpack.c.l.b16 %v373
    %v1387 = vunpack.c.h.b16 %v373
    %v1388 = vunpack.c.l.b16 %v374
    %v1389 = vunpack.c.h.b16 %v374
    %v1390 = vunpack.c.l.b16 %v375
    %v1391 = vunpack.c.h.b16 %v375
    %v1392 = vunpack.c.l.b16 %v376
    %v1393 = vunpack.c.h.b16 %v376
    %v1394 = vunpack.c.l.b16 %v377
    %v1395 = vunpack.c.h.b16 %v377
    %v1396 = vunpack.c.l.b16 %v378
    %v1397 = vunpack.c.h.b16 %v378
    %v1398 = vunpack.c.l.b16 %v379
    %v1399 = vunpack.c.h.b16 %v379
    %v1400 = vunpack.c.l.b16 %v380
    %v1401 = vunpack.c.h.b16 %v380
    %v1402 = vunpack.c.l.b16 %v381
    %v1403 = vunpack.c.h.b16 %v381
    %v1404 = vunpack.c.l.b16 %v382
    %v1405 = vunpack.c.h.b16 %v382
    %v1406 = vunpack.c.l.b16 %v383
    %v1407 = vunpack.c.h.b16 %v383
    %v1408 = vunpack.c.l.b16 %v384
    %v1409 = vunpack.c.h.b16 %v384
    %v1410 = vunpack.c.l.b16 %v385
    %v1411 = vunpack.c.h.b16 %v385
    %v1412 = vunpack.c.l.b16 %v386
    %v1413 = vunpack.c.h.b16 %v386
    %v1414 = vunpack.c.l.b16 %v387
    %v1415 = vunpack.c.h.b16 %v387
    %v1416 = vunpack.c.l.b16 %v388
    %v1417 = vunpack.c.h.b16 %v388
    %v1418 = vunpack.c.l.b16 %v389
    %v1419 = vunpack.c.h.b16 %v389
    %v1420 = vunpack.c.l.b16 %v390
    %v1421 = vunpack.c.h.b16 %v390
    %v1422 = vunpack.c.l.b16 %v391
    %v1423 = vunpack.c.h.b16 %v391
    %v1424 = vunpack.c.l.b16 %v392
    %v1425 = vunpack.c.h.b16 %v392
    %v1426 = vunpack.c.l.b16 %v393
    %v1427 = vunpack.c.h.b16 %v393
    %v1428 = vunpack.c.l.b16 %v394
    %v1429 = vunpack.c.h.b16 %v394
    %v1430 = vunpack.c.l.b16 %v395
    %v1431 = vunpack.c.h.b16 %v395
    %v1432 = vunpack.c.l.b16 %v396
    %v1433 = vunpack.c.h.b16 %v396
    %v1434 = vunpack.c.l.b16 %v397
    %v1435 = vunpack.c.h.b16 %v397
    %v1436 = vunpack.c.l.b16 %v398
    %v1437 = vunpack.c.h.b16 %v398
    %v1438 = vunpack.c.l.b16 %v399
    %v1439 = vunpack.c.h.b16 %v399
    %v1440 = vunpack.c.l.b16 %v400
    %v1441 = vunpack.c.h.b16 %v400
    %v1442 = vunpack.c.l.b16 %v401
    %v1443 = vunpack.c.h.b16 %v401
    %v1444 = vunpack.c.l.b16 %v402
    %v1445 = vunpack.c.h.b16 %v402
    %v1446 = vunpack.c.l.b16 %v403
    %v1447 = vunpack.c.h.b16 %v403
    %v1448 = vunpack.c.l.b16 %v404
    %v1449 = vunpack.c.h.b16 %v404
    %v1450 = vunpack.c.l.b16 %v405
    %v1451 = vunpack.c.h.b16 %v405
    %v1452 = vunpack.c.l.b16 %v406
    %v1453 = vunpack.c.h.b16 %v406
    %v1454 = vunpack.c.l.b16 %v407
    %v1455 = vunpack.c.h.b16 %v407
    %v1456 = vunpack.c.l.b16 %v408
    %v1457 = vunpack.c.h.b16 %v408
    %v1458 = vunpack.c.l.b16 %v409
    %v1459 = vunpack.c.h.b16 %v409
    %v1460 = vunpack.c.l.b16 %v410
    %v1461 = vunpack.c.h.b16 %v410
    %v1462 = vunpack.c.l.b16 %v411
    %v1463 = vunpack.c.h.b16 %v411
    %v1464 = vunpack.c.l.b16 %v412
    %v1465 = vunpack.c.h.b16 %v412
    %v1466 = vunpack.c.l.b16 %v413
    %v1467 = vunpack.c.h.b16 %v413
    %v1468 = vunpack.c.l.b16 %v414
    %v1469 = vunpack.c.h.b16 %v414
    %v1470 = vunpack.c.l.b16 %v415
    %v1471 = vunpack.c.h.b16 %v415
    %v1472 = vunpack.c.l.b16 %v416
    %v1473 = vunpack.c.h.b16 %v416
    %v1474 = vunpack.c.l.b16 %v417
    %v1475 = vunpack.c.h.b16 %v417
    %v1476 = vunpack.c.l.b16 %v418
    %v1477 = vunpack.c.h.b16 %v418
    %v1478 = vunpack.c.l.b16 %v419
    %v1479 = vunpack.c.h.b16 %v419
    %v1480 = vunpack.c.l.b16 %v420
    %v1481 = vunpack.c.h.b16 %v420
    %v1482 = vunpack.c.l.b16 %v421
    %v1483 = vunpack.c.h.b16 %v421
    %v1484 = vunpack.c.l.b16 %v422
    %v1485 = vunpack.c.h.b16 %v422
    %v1486 = vunpack.c.l.b16 %v423
    %v1487 = vunpack.c.h.b16 %v423
    %v1488 = vunpack.c.l.b16 %v424
    %v1489 = vunpack.c.h.b16 %v424
    %v1490 = vunpack.c.l.b16 %v425
    %v1491 = vunpack.c.h.b16 %v425
    %v1492 = vunpack.c.l.b16 %v426
    %v1493 = vunpack.c.h.b16 %v426
    %v1494 = vunpack.c.l.b16 %v427
    %v1495 = vunpack.c.h.b16 %v427
    %v1496 = vunpack.c.l.b16 %v428
    %v1497 = vunpack.c.h.b16 %v428
    %v1498 = vunpack.c.l.b16 %v429
    %v1499 = vunpack.c.h.b16 %v429
    %v1500 = vunpack.c.l.b16 %v430
    %v1501 = vunpack.c.h.b16 %v430
    %v1502 = vunpack.c.l.b16 %v431
    %v1503 = vunpack.c.h.b16 %v431
    %v1504 = vunpack.c.l.b16 %v432
    %v1505 = vunpack.c.h.b16 %v432
    %v1506 = vunpack.c.l.b16 %v433
    %v1507 = vunpack.c.h.b16 %v433
    %v1508 = vunpack.c.l.b16 %v434
    %v1509 = vunpack.c.h.b16 %v434
    %v1510 = vunpack.c.l.b16 %v435
    %v1511 = vunpack.c.h.b16 %v435
    %v1512 = vunpack.c.l.b16 %v436
    %v1513 = vunpack.c.h.b16 %v436
    %v1514 = vunpack.c.l.b16 %v437
    %v1515 = vunpack.c.h.b16 %v437
    %v1516 = vunpack.c.l.b16 %v438
    %v1517 = vunpack.c.h.b16 %v438
    %v1518 = vunpack.c.l.b16 %v439
    %v1519 = vunpack.c.h.b16 %v439
    %v1520 = vunpack.c.l.b16 %v440
    %v1521 = vunpack.c.h.b16 %v440
    %v1522 = vunpack.c.l.b16 %v441
    %v1523 = vunpack.c.h.b16 %v441
    %v1524 = vunpack.c.l.b16 %v442
    %v1525 = vunpack.c.h.b16 %v442
    %v1526 = vunpack.c.l.b16 %v443
    %v1527 = vunpack.c.h.b16 %v443
    %v1528 = vunpack.c.l.b16 %v444
    %v1529 = vunpack.c.h.b16 %v444
    %v1530 = vunpack.c.l.b16 %v445
    %v1531 = vunpack.c.h.b16 %v445
    %v1532 = vunpack.c.l.b16 %v446
    %v1533 = vunpack.c.h.b16 %v446
    %v1534 = vunpack.c.l.b16 %v447
    %v1535 = vunpack.c.h.b16 %v447
    %v1536 = vunpack.c.l.b16 %v448
    %v1537 = vunpack.c.h.b16 %v448
    %v1538 = vunpack.c.l.b16 %v449
    %v1539 = vunpack.c.h.b16 %v449
    %v1540 = vunpack.c.l.b16 %v450
    %v1541 = vunpack.c.h.b16 %v450
    %v1542 = vunpack.c.l.b16 %v451
    %v1543 = vunpack.c.h.b16 %v451
    %v1544 = vunpack.c.l.b16 %v452
    %v1545 = vunpack.c.h.b16 %v452
    %v1546 = vunpack.c.l.b16 %v453
    %v1547 = vunpack.c.h.b16 %v453
    %v1548 = vunpack.c.l.b16 %v454
    %v1549 = vunpack.c.h.b16 %v454
    %v1550 = vunpack.c.l.b16 %v455
    %v1551 = vunpack.c.h.b16 %v455
    %v1552 = vunpack.c.l.b16 %v456
    %v1553 = vunpack.c.h.b16 %v456
    %v1554 = vunpack.c.l.b16 %v457
    %v1555 = vunpack.c.h.b16 %v457
    %v1556 = vunpack.c.l.b16 %v458
    %v1557 = vunpack.c.h.b16 %v458
    %v1558 = vunpack.c.l.b16 %v459
    %v1559 = vunpack.c.h.b16 %v459
    %v1560 = vunpack.c.l.b16 %v460
    %v1561 = vunpack.c.h.b16 %v460
    %v1562 = vunpack.c.l.b16 %v461
    %v1563 = vunpack.c.h.b16 %v461
    %v1564 = vunpack.c.l.b16 %v462
    %v1565 = vunpack.c.h.b16 %v462
    %v1566 = vunpack.c.l.b16 %v463
    %v1567 = vunpack.c.h.b16 %v463
    %v1568 = vunpack.c.l.b16 %v464
    %v1569 = vunpack.c.h.b16 %v464
    %v1570 = vunpack.c.l.b16 %v465
    %v1571 = vunpack.c.h.b16 %v465
    %v1572 = vunpack.c.l.b16 %v466
    %v1573 = vunpack.c.h.b16 %v466
    %v1574 = vunpack.c.l.b16 %v467
    %v1575 = vunpack.c.h.b16 %v467
    %v1576 = vunpack.c.l.b16 %v468
    %v1577 = vunpack.c.h.b16 %v468
    %v1578 = vunpack.c.l.b16 %v469
    %v1579 = vunpack.c.h.b16 %v469
    %v1580 = vunpack.c.l.b16 %v470
    %v1581 = vunpack.c.h.b16 %v470
    %v1582 = vunpack.c.l.b16 %v471
    %v1583 = vunpack.c.h.b16 %v471
    %v1584 = vunpack.c.l.b16 %v472
    %v1585 = vunpack.c.h.b16 %v472
    %v1586 = vunpack.c.l.b16 %v473
    %v1587 = vunpack.c.h.b16 %v473
    %v1588 = vunpack.c.l.b16 %v474
    %v1589 = vunpack.c.h.b16 %v474
    %v1590 = vunpack.c.l.b16 %v475
    %v1591 = vunpack.c.h.b16 %v475
    %v1592 = vunpack.c.l.b16 %v476
    %v1593 = vunpack.c.h.b16 %v476
    %v1594 = vunpack.c.l.b16 %v477
    %v1595 = vunpack.c.h.b16 %v477
    %v1596 = vunpack.c.l.b16 %v478
    %v1597 = vunpack.c.h.b16 %v478
    %v1598 = vunpack.c.l.b16 %v479
    %v1599 = vunpack.c.h.b16 %v479
    %v1600 = vunpack.c.l.b16 %v480
    %v1601 = vunpack.c.h.b16 %v480
    %v1602 = vunpack.c.l.b16 %v481
    %v1603 = vunpack.c.h.b16 %v481
    %v1604 = vunpack.c.l.b16 %v482
    %v1605 = vunpack.c.h.b16 %v482
    %v1606 = vunpack.c.l.b16 %v483
    %v1607 = vunpack.c.h.b16 %v483
    %v1608 = vunpack.c.l.b16 %v484
    %v1609 = vunpack.c.h.b16 %v484
    %v1610 = vunpack.c.l.b16 %v485
    %v1611 = vunpack.c.h.b16 %v485
    %v1612 = vunpack.c.l.b16 %v486
    %v1613 = vunpack.c.h.b16 %v486
    %v1614 = vunpack.c.l.b16 %v487
    %v1615 = vunpack.c.h.b16 %v487
    %v1616 = vunpack.c.l.b16 %v488
    %v1617 = vunpack.c.h.b16 %v488
    %v1618 = vunpack.c.l.b16 %v489
    %v1619 = vunpack.c.h.b16 %v489
    %v1620 = vunpack.c.l.b16 %v490
    %v1621 = vunpack.c.h.b16 %v490
    %v1622 = vunpack.c.l.b16 %v491
    %v1623 = vunpack.c.h.b16 %v491
    %v1624 = vunpack.c.l.b16 %v492
    %v1625 = vunpack.c.h.b16 %v492
    %v1626 = vunpack.c.l.b16 %v493
    %v1627 = vunpack.c.h.b16 %v493
    %v1628 = vunpack.c.l.b16 %v494
    %v1629 = vunpack.c.h.b16 %v494
    %v1630 = vunpack.c.l.b16 %v495
    %v1631 = vunpack.c.h.b16 %v495
    %v1632 = vunpack.c.l.b16 %v496
    %v1633 = vunpack.c.h.b16 %v496
    %v1634 = vunpack.c.l.b16 %v497
    %v1635 = vunpack.c.h.b16 %v497
    %v1636 = vunpack.c.l.b16 %v498
    %v1637 = vunpack.c.h.b16 %v498
    %v1638 = vunpack.c.l.b16 %v499
    %v1639 = vunpack.c.h.b16 %v499
    %v1640 = vunpack.c.l.b16 %v500
    %v1641 = vunpack.c.h.b16 %v500
    %v1642 = vunpack.c.l.b16 %v501
    %v1643 = vunpack.c.h.b16 %v501
    %v1644 = vunpack.c.l.b16 %v502
    %v1645 = vunpack.c.h.b16 %v502
    %v1646 = vunpack.c.l.b16 %v503
    %v1647 = vunpack.c.h.b16 %v503
    %v1648 = vunpack.c.l.b16 %v504
    %v1649 = vunpack.c.h.b16 %v504
    %v1650 = vunpack.c.l.b16 %v505
    %v1651 = vunpack.c.h.b16 %v505
    %v1652 = vunpack.c.l.b16 %v506
    %v1653 = vunpack.c.h.b16 %v506
    %v1654 = vunpack.c.l.b16 %v507
    %v1655 = vunpack.c.h.b16 %v507
    %v1656 = vunpack.c.l.b16 %v508
    %v1657 = vunpack.c.h.b16 %v508
    %v1658 = vunpack.c.l.b16 %v509
    %v1659 = vunpack.c.h.b16 %v509
    %v1660 = vunpack.c.l.b16 %v510
    %v1661 = vunpack.c.h.b16 %v510
    %v1662 = vunpack.c.l.b16 %v511
    %v1663 = vunpack.c.h.b16 %v511
    %v1664 = vunpack.c.l.b16 %v512
    %v1665 = vunpack.c.h.b16 %v512
    %v1666 = vunpack.c.l.b16 %v513
    %v1667 = vunpack.c.h.b16 %v513
    %v1668 = vunpack.c.l.b16 %v514
    %v1669 = vunpack.c.h.b16 %v514
    %v1670 = vunpack.c.l.b16 %v515
    %v1671 = vunpack.c.h.b16 %v515
    %v1672 = vunpack.c.l.b16 %v516
    %v1673 = vunpack.c.h.b16 %v516
    %v1674 = vunpack.c.l.b16 %v517
    %v1675 = vunpack.c.h.b16 %v517
    %v1676 = vunpack.c.l.b16 %v518
    %v1677 = vunpack.c.h.b16 %v518
    %v1678 = vunpack.c.l.b16 %v519
    %v1679 = vunpack.c.h.b16 %v519
    %v1680 = vunpack.c.l.b16 %v520
    %v1681 = vunpack.c.h.b16 %v520
    %v1682 = vunpack.c.l.b16 %v521
    %v1683 = vunpack.c.h.b16 %v521
    %v1684 = vunpack.c.l.b16 %v522
    %v1685 = vunpack.c.h.b16 %v522
    %v1686 = vunpack.c.l.b16 %v523
    %v1687 = vunpack.c.h.b16 %v523
    %v1688 = vunpack.c.l.b16 %v524
    %v1689 = vunpack.c.h.b16 %v524
    %v1690 = vunpack.c.l.b16 %v525
    %v1691 = vunpack.c.h.b16 %v525
    %v1692 = vunpack.c.l.b16 %v526
    %v1693 = vunpack.c.h.b16 %v526
    %v1694 = vunpack.c.l.b16 %v527
    %v1695 = vunpack.c.h.b16 %v527
    %v1696 = vunpack.c.l.b16 %v528
    %v1697 = vunpack.c.h.b16 %v528
    %v1698 = vunpack.c.l.b16 %v529
    %v1699 = vunpack.c.h.b16 %v529
    %v1700 = vunpack.c.l.b16 %v530
    %v1701 = vunpack.c.h.b16 %v530
    %v1702 = vunpack.c.l.b16 %v531
    %v1703 = vunpack.c.h.b16 %v531
    %v1704 = vunpack.c.l.b16 %v532
    %v1705 = vunpack.c.h.b16 %v532
    %v1706 = vunpack.c.l.b16 %v533
    %v1707 = vunpack.c.h.b16 %v533
    %v1708 = vunpack.c.l.b16 %v534
    %v1709 = vunpack.c.h.b16 %v534
    %v1710 = vunpack.c.l.b16 %v535
    %v1711 = vunpack.c.h.b16 %v535
    %v1712 = vunpack.c.l.b16 %v536
    %v1713 = vunpack.c.h.b16 %v536
    %v1714 = vunpack.c.l.b16 %v537
    %v1715 = vunpack.c.h.b16 %v537
    %v1716 = vunpack.c.l.b16 %v538
    %v1717 = vunpack.c.h.b16 %v538
    %v1718 = vunpack.c.l.b16 %v539
    %v1719 = vunpack.c.h.b16 %v539
    %v1720 = vunpack.c.l.b16 %v540
    %v1721 = vunpack.c.h.b16 %v540
    %v1722 = vunpack.c.l.b16 %v541
    %v1723 = vunpack.c.h.b16 %v541
    %v1724 = vunpack.c.l.b16 %v542
    %v1725 = vunpack.c.h.b16 %v542
    %v1726 = vunpack.c.l.b16 %v543
    %v1727 = vunpack.c.h.b16 %v543
    %v1728 = vunpack.c.l.b16 %v544
    %v1729 = vunpack.c.h.b16 %v544
    %v1730 = vunpack.c.l.b16 %v545
    %v1731 = vunpack.c.h.b16 %v545
    %v1732 = vunpack.c.l.b16 %v546
    %v1733 = vunpack.c.h.b16 %v546
    %v1734 = vunpack.c.l.b16 %v547
    %v1735 = vunpack.c.h.b16 %v547
    %v1736 = vunpack.c.l.b16 %v548
    %v1737 = vunpack.c.h.b16 %v548
    %v1738 = vunpack.c.l.b16 %v549
    %v1739 = vunpack.c.h.b16 %v549
    %v1740 = vunpack.c.l.b16 %v550
    %v1741 = vunpack.c.h.b16 %v550
    %v1742 = vunpack.c.l.b16 %v551
    %v1743 = vunpack.c.h.b16 %v551
    %v1744 = vunpack.c.l.b16 %v552
    %v1745 = vunpack.c.h.b16 %v552
    %v1746 = vunpack.c.l.b16 %v553
    %v1747 = vunpack.c.h.b16 %v553
    %v1748 = vunpack.c.l.b16 %v554
    %v1749 = vunpack.c.h.b16 %v554
    %v1750 = vunpack.c.l.b16 %v555
    %v1751 = vunpack.c.h.b16 %v555
    %v1752 = vunpack.c.l.b16 %v556
    %v1753 = vunpack.c.h.b16 %v556
    %v1754 = vunpack.c.l.b16 %v557
    %v1755 = vunpack.c.h.b16 %v557
    %v1756 = vunpack.c.l.b16 %v558
    %v1757 = vunpack.c.h.b16 %v558
    %v1758 = vunpack.c.l.b16 %v559
    %v1759 = vunpack.c.h.b16 %v559
    %v1760 = vunpack.c.l.b16 %v560
    %v1761 = vunpack.c.h.b16 %v560
    %v1762 = vunpack.c.l.b16 %v561
    %v1763 = vunpack.c.h.b16 %v561
    %v1764 = vunpack.c.l.b16 %v562
    %v1765 = vunpack.c.h.b16 %v562
    %v1766 = vunpack.c.l.b16 %v563
    %v1767 = vunpack.c.h.b16 %v563
    %v1768 = vunpack.c.l.b16 %v564
    %v1769 = vunpack.c.h.b16 %v564
    %v1770 = vunpack.c.l.b16 %v565
    %v1771 = vunpack.c.h.b16 %v565
    %v1772 = vunpack.c.l.b16 %v566
    %v1773 = vunpack.c.h.b16 %v566
    %v1774 = vunpack.c.l.b16 %v567
    %v1775 = vunpack.c.h.b16 %v567
    %v1776 = vunpack.c.l.b16 %v568
    %v1777 = vunpack.c.h.b16 %v568
    %v1778 = vunpack.c.l.b16 %v569
    %v1779 = vunpack.c.h.b16 %v569
    %v1780 = vunpack.c.l.b16 %v570
    %v1781 = vunpack.c.h.b16 %v570
    %v1782 = vunpack.c.l.b16 %v571
    %v1783 = vunpack.c.h.b16 %v571
    %v1784 = vunpack.c.l.b16 %v572
    %v1785 = vunpack.c.h.b16 %v572
    %v1786 = vunpack.c.l.b16 %v573
    %v1787 = vunpack.c.h.b16 %v573
    %v1788 = vunpack.c.l.b16 %v574
    %v1789 = vunpack.c.h.b16 %v574
    %v1790 = vunpack.c.l.b16 %v575
    %v1791 = vunpack.c.h.b16 %v575
    %v1792 = vunpack.c.l.b16 %v576
    %v1793 = vunpack.c.h.b16 %v576
    %v1794 = vunpack.c.l.b16 %v577
    %v1795 = vunpack.c.h.b16 %v577
    %v1796 = vpack.c.b16 %v1020, %v1012
    %v1797 = vpack.c.b16 %v1021, %v1013
    %v1798 = vpack.c.b16 %v1022, %v1014
    %v1799 = vpack.c.b16 %v1023, %v1015
    %v1800 = vpack.c.b16 %v1024, %v1016
    %v1801 = vpack.c.b16 %v1025, %v1017
    %v1802 = vpack.c.b16 %v1026, %v1018
    %v1803 = vpack.c.b16 %v1027, %v1019
    %v1804 = vpack.c.b16 %v1036, %v1028
    %v1805 = vpack.c.b16 %v1037, %v1029
    %v1806 = vpack.c.b16 %v1038, %v1030
    %v1807 = vpack.c.b16 %v1039, %v1031
    %v1808 = vpack.c.b16 %v1040, %v1032
    %v1809 = vpack.c.b16 %v1041, %v1033
    %v1810 = vpack.c.b16 %v1042, %v1034
    %v1811 = vpack.c.b16 %v1043, %v1035
    %v1812 = vpack.c.b16 %v1052, %v1044
    %v1813 = vpack.c.b16 %v1053, %v1045
    %v1814 = vpack.c.b16 %v1054, %v1046
    %v1815 = vpack.c.b16 %v1055, %v1047
    %v1816 = vpack.c.b16 %v1056, %v1048
    %v1817 = vpack.c.b16 %v1057, %v1049
    %v1818 = vpack.c.b16 %v1058, %v1050
    %v1819 = vpack.c.b16 %v1059, %v1051
    %v1820 = vpack.c.b16 %v1068, %v1060
    %v1821 = vpack.c.b16 %v1069, %v1061
    %v1822 = vpack.c.b16 %v1070, %v1062
    %v1823 = vpack.c.b16 %v1071, %v1063
    %v1824 = vpack.c.b16 %v1072, %v1064
    %v1825 = vpack.c.b16 %v1073, %v1065
    %v1826 = vpack.c.b16 %v1074, %v1066
    %v1827 = vpack.c.b16 %v1075, %v1067
    %v1828 = vpack.c.b16 %v1084, %v1076
    %v1829 = vpack.c.b16 %v1085, %v1077
    %v1830 = vpack.c.b16 %v1086, %v1078
    %v1831 = vpack.c.b16 %v1087, %v1079
    %v1832 = vpack.c.b16 %v1088, %v1080
    %v1833 = vpack.c.b16 %v1089, %v1081
    %v1834 = vpack.c.b16 %v1090, %v1082
    %v1835 = vpack.c.b16 %v1091, %v1083
    %v1836 = vpack.c.b16 %v1100, %v1092
    %v1837 = vpack.c.b16 %v1101, %v1093
    %v1838 = vpack.c.b16 %v1102, %v1094
    %v1839 = vpack.c.b16 %v1103, %v1095
    %v1840 = vpack.c.b16 %v1104, %v1096
    %v1841 = vpack.c.b16 %v1105, %v1097
    %v1842 = vpack.c.b16 %v1106, %v1098
    %v1843 = vpack.c.b16 %v1107, %v1099
    %v1844 = vpack.c.b16 %v1116, %v1108
    %v1845 = vpack.c.b16 %v1117, %v1109
    %v1846 = vpack.c.b16 %v1118, %v1110
    %v1847 = vpack.c.b16 %v1119, %v1111
    %v1848 = vpack.c.b16 %v1120, %v1112
    %v1849 = vpack.c.b16 %v1121, %v1113
    %v1850 = vpack.c.b16 %v1122, %v1114
    %v1851 = vpack.c.b16 %v1123, %v1115
    %v1852 = vpack.c.b16 %v1132, %v1124
    %v1853 = vpack.c.b16 %v1133, %v1125
    %v1854 = vpack.c.b16 %v1134, %v1126
    %v1855 = vpack.c.b16 %v1135, %v1127
    %v1856 = vpack.c.b16 %v1136, %v1128
    %v1857 = vpack.c.b16 %v1137, %v1129
    %v1858 = vpack.c.b16 %v1138, %v1130
    %v1859 = vpack.c.b16 %v1139, %v1131
    %v1860 = vpack.c.b16 %v1148, %v1140
    %v1861 = vpack.c.b16 %v1149, %v1141
    %v1862 = vpack.c.b16 %v1150, %v1142
    %v1863 = vpack.c.b16 %v1151, %v1143
    %v1864 = vpack.c.b16 %v1152, %v1144
    %v1865 = vpack.c.b16 %v1153, %v1145
    %v1866 = vpack.c.b16 %v1154, %v1146
    %v1867 = vpack.c.b16 %v1155, %v1147
    %v1868 = vpack.c.b16 %v1164, %v1156
    %v1869 = vpack.c.b16 %v1165, %v1157
    %v1870 = vpack.c.b16 %v1166, %v1158
    %v1871 = vpack.c.b16 %v1167, %v1159
    %v1872 = vpack.c.b16 %v1168, %v1160
    %v1873 = vpack.c.b16 %v1169, %v1161
    %v1874 = vpack.c.b16 %v1170, %v1162
    %v1875 = vpack.c.b16 %v1171, %v1163
    %v1876 = vpack.c.b16 %v1180, %v1172
    %v1877 = vpack.c.b16 %v1181, %v1173
    %v1878 = vpack.c.b16 %v1182, %v1174
    %v1879 = vpack.c.b16 %v1183, %v1175
    %v1880 = vpack.c.b16 %v1184, %v1176
    %v1881 = vpack.c.b16 %v1185, %v1177
    %v1882 = vpack.c.b16 %v1186, %v1178
    %v1883 = vpack.c.b16 %v1187, %v1179
    %v1884 = vpack.c.b16 %v1196, %v1188
    %v1885 = vpack.c.b16 %v1197, %v1189
    %v1886 = vpack.c.b16 %v1198, %v1190
    %v1887 = vpack.c.b16 %v1199, %v1191
    %v1888 = vpack.c.b16 %v1200, %v1192
    %v1889 = vpack.c.b16 %v1201, %v1193
    %v1890 = vpack.c.b16 %v1202, %v1194
    %v1891 = vpack.c.b16 %v1203, %v1195
    %v1892 = vpack.c.b16 %v1212, %v1204
    %v1893 = vpack.c.b16 %v1213, %v1205
    %v1894 = vpack.c.b16 %v1214, %v1206
    %v1895 = vpack.c.b16 %v1215, %v1207
    %v1896 = vpack.c.b16 %v1216, %v1208
    %v1897 = vpack.c.b16 %v1217, %v1209
    %v1898 = vpack.c.b16 %v1218, %v1210
    %v1899 = vpack.c.b16 %v1219, %v1211
    %v1900 = vpack.c.b16 %v1228, %v1220
    %v1901 = vpack.c.b16 %v1229, %v1221
    %v1902 = vpack.c.b16 %v1230, %v1222
    %v1903 = vpack.c.b16 %v1231, %v1223
    %v1904 = vpack.c.b16 %v1232, %v1224
    %v1905 = vpack.c.b16 %v1233, %v1225
    %v1906 = vpack.c.b16 %v1234, %v1226
    %v1907 = vpack.c.b16 %v1235, %v1227
    %v1908 = vpack.c.b16 %v1244, %v1236
    %v1909 = vpack.c.b16 %v1245, %v1237
    %v1910 = vpack.c.b16 %v1246, %v1238
    %v1911 = vpack.c.b16 %v1247, %v1239
    %v1912 = vpack.c.b16 %v1248, %v1240
    %v1913 = vpack.c.b16 %v1249, %v1241
    %v1914 = vpack.c.b16 %v1250, %v1242
    %v1915 = vpack.c.b16 %v1251, %v1243
    %v1916 = vpack.c.b16 %v1260, %v1252
    %v1917 = vpack.c.b16 %v1261, %v1253
    %v1918 = vpack.c.b16 %v1262, %v1254
    %v1919 = vpack.c.b16 %v1263, %v1255
    %v1920 = vpack.c.b16 %v1264, %v1256
    %v1921 = vpack.c.b16 %v1265, %v1257
    %v1922 = vpack.c.b16 %v1266, %v1258
    %v1923 = vpack.c.b16 %v1267, %v1259
    %v1924 = vpack.c.b16 %v1276, %v1268
    %v1925 = vpack.c.b16 %v1277, %v1269
    %v1926 = vpack.c.b16 %v1278, %v1270
    %v1927 = vpack.c.b16 %v1279, %v1271
    %v1928 = vpack.c.b16 %v1280, %v1272
    %v1929 = vpack.c.b16 %v1281, %v1273
    %v1930 = vpack.c.b16 %v1282, %v1274
    %v1931 = vpack.c.b16 %v1283, %v1275
    %v1932 = vpack.c.b16 %v1292, %v1284
    %v1933 = vpack.c.b16 %v1293, %v1285
    %v1934 = vpack.c.b16 %v1294, %v1286
    %v1935 = vpack.c.b16 %v1295, %v1287
    %v1936 = vpack.c.b16 %v1296, %v1288
    %v1937 = vpack.c.b16 %v1297, %v1289
    %v1938 = vpack.c.b16 %v1298, %v1290
    %v1939 = vpack.c.b16 %v1299, %v1291
    %v1940 = vpack.c.b16 %v1308, %v1300
    %v1941 = vpack.c.b16 %v1309, %v1301
    %v1942 = vpack.c.b16 %v1310, %v1302
    %v1943 = vpack.c.b16 %v1311, %v1303
    %v1944 = vpack.c.b16 %v1312, %v1304
    %v1945 = vpack.c.b16 %v1313, %v1305
    %v1946 = vpack.c.b16 %v1314, %v1306
    %v1947 = vpack.c.b16 %v1315, %v1307
    %v1948 = vpack.c.b16 %v1324, %v1316
    %v1949 = vpack.c.b16 %v1325, %v1317
    %v1950 = vpack.c.b16 %v1326, %v1318
    %v1951 = vpack.c.b16 %v1327, %v1319
    %v1952 = vpack.c.b16 %v1328, %v1320
    %v1953 = vpack.c.b16 %v1329, %v1321
    %v1954 = vpack.c.b16 %v1330, %v1322
    %v1955 = vpack.c.b16 %v1331, %v1323
    %v1956 = vpack.c.b16 %v1340, %v1332
    %v1957 = vpack.c.b16 %v1341, %v1333
    %v1958 = vpack.c.b16 %v1342, %v1334
    %v1959 = vpack.c.b16 %v1343, %v1335
    %v1960 = vpack.c.b16 %v1344, %v1336
    %v1961 = vpack.c.b16 %v1345, %v1337
    %v1962 = vpack.c.b16 %v1346, %v1338
    %v1963 = vpack.c.b16 %v1347, %v1339
    %v1964 = vpack.c.b16 %v1356, %v1348
    %v1965 = vpack.c.b16 %v1357, %v1349
    %v1966 = vpack.c.b16 %v1358, %v1350
    %v1967 = vpack.c.b16 %v1359, %v1351
    %v1968 = vpack.c.b16 %v1360, %v1352
    %v1969 = vpack.c.b16 %v1361, %v1353
    %v1970 = vpack.c.b16 %v1362, %v1354
    %v1971 = vpack.c.b16 %v1363, %v1355
    %v1972 = vpack.c.b16 %v1372, %v1364
    %v1973 = vpack.c.b16 %v1373, %v1365
    %v1974 = vpack.c.b16 %v1374, %v1366
    %v1975 = vpack.c.b16 %v1375, %v1367
    %v1976 = vpack.c.b16 %v1376, %v1368
    %v1977 = vpack.c.b16 %v1377, %v1369
    %v1978 = vpack.c.b16 %v1378, %v1370
    %v1979 = vpack.c.b16 %v1379, %v1371
    %v1980 = vpack.c.b16 %v1388, %v1380
    %v1981 = vpack.c.b16 %v1389, %v1381
    %v1982 = vpack.c.b16 %v1390, %v1382
    %v1983 = vpack.c.b16 %v1391, %v1383
    %v1984 = vpack.c.b16 %v1392, %v1384
    %v1985 = vpack.c.b16 %v1393, %v1385
    %v1986 = vpack.c.b16 %v1394, %v1386
    %v1987 = vpack.c.b16 %v1395, %v1387
    %v1988 = vpack.c.b16 %v1404, %v1396
    %v1989 = vpack.c.b16 %v1405, %v1397
    %v1990 = vpack.c.b16 %v1406, %v1398
    %v1991 = vpack.c.b16 %v1407, %v1399
    %v1992 = vpack.c.b16 %v1408, %v1400
    %v1993 = vpack.c.b16 %v1409, %v1401
    %v1994 = vpack.c.b16 %v1410, %v1402
    %v1995 = vpack.c.b16 %v1411, %v1403
    %v1996 = vpack.c.b16 %v1420, %v1412
    %v1997 = vpack.c.b16 %v1421, %v1413
    %v1998 = vpack.c.b16 %v1422, %v1414
    %v1999 = vpack.c.b16 %v1423, %v1415
    %v2000 = vpack.c.b16 %v1424, %v1416
    %v2001 = vpack.c.b16 %v1425, %v1417
    %v2002 = vpack.c.b16 %v1426, %v1418
    %v2003 = vpack.c.b16 %v1427, %v1419
    %v2004 = vpack.c.b16 %v1436, %v1428
    %v2005 = vpack.c.b16 %v1437, %v1429
    %v2006 = vpack.c.b16 %v1438, %v1430
    %v2007 = vpack.c.b16 %v1439, %v1431
    %v2008 = vpack.c.b16 %v1440, %v1432
    %v2009 = vpack.c.b16 %v1441, %v1433
    %v2010 = vpack.c.b16 %v1442, %v1434
    %v2011 = vpack.c.b16 %v1443, %v1435
    %v2012 = vpack.c.b16 %v1452, %v1444
    %v2013 = vpack.c.b16 %v1453, %v1445
    %v2014 = vpack.c.b16 %v1454, %v1446
    %v2015 = vpack.c.b16 %v1455, %v1447
    %v2016 = vpack.c.b16 %v1456, %v1448
    %v2017 = vpack.c.b16 %v1457, %v1449
    %v2018 = vpack.c.b16 %v1458, %v1450
    %v2019 = vpack.c.b16 %v1459, %v1451
    %v2020 = vpack.c.b16 %v1468, %v1460
    %v2021 = vpack.c.b16 %v1469, %v1461
    %v2022 = vpack.c.b16 %v1470, %v1462
    %v2023 = vpack.c.b16 %v1471, %v1463
    %v2024 = vpack.c.b16 %v1472, %v1464
    %v2025 = vpack.c.b16 %v1473, %v1465
    %v2026 = vpack.c.b16 %v1474, %v1466
    %v2027 = vpack.c.b16 %v1475, %v1467
    %v2028 = vpack.c.b16 %v1484, %v1476
    %v2029 = vpack.c.b16 %v1485, %v1477
    %v2030 = vpack.c.b16 %v1486, %v1478
    %v2031 = vpack.c.b16 %v1487, %v1479
    %v2032 = vpack.c.b16 %v1488, %v1480
    %v2033 = vpack.c.b16 %v1489, %v1481
    %v2034 = vpack.c.b16 %v1490, %v1482
    %v2035 = vpack.c.b16 %v1491, %v1483
    %v2036 = vpack.c.b16 %v1500, %v1492
    %v2037 = vpack.c.b16 %v1501, %v1493
    %v2038 = vpack.c.b16 %v1502, %v1494
    %v2039 = vpack.c.b16 %v1503, %v1495
    %v2040 = vpack.c.b16 %v1504, %v1496
    %v2041 = vpack.c.b16 %v1505, %v1497
    %v2042 = vpack.c.b16 %v1506, %v1498
    %v2043 = vpack.c.b16 %v1507, %v1499
    %v2044 = vpack.c.b16 %v1516, %v1508
    %v2045 = vpack.c.b16 %v1517, %v1509
    %v2046 = vpack.c.b16 %v1518, %v1510
    %v2047 = vpack.c.b16 %v1519, %v1511
    %v2048 = vpack.c.b16 %v1520, %v1512
    %v2049 = vpack.c.b16 %v1521, %v1513
    %v2050 = vpack.c.b16 %v1522, %v1514
    %v2051 = vpack.c.b16 %v1523, %v1515
    %v2052 = vpack.c.b16 %v1532, %v1524
    %v2053 = vpack.c.b16 %v1533, %v1525
    %v2054 = vpack.c.b16 %v1534, %v1526
    %v2055 = vpack.c.b16 %v1535, %v1527
    %v2056 = vpack.c.b16 %v1536, %v1528
    %v2057 = vpack.c.b16 %v1537, %v1529
    %v2058 = vpack.c.b16 %v1538, %v1530
    %v2059 = vpack.c.b16 %v1539, %v1531
    %v2060 = vpack.c.b16 %v1548, %v1540
    %v2061 = vpack.c.b16 %v1549, %v1541
    %v2062 = vpack.c.b16 %v1550, %v1542
    %v2063 = vpack.c.b16 %v1551, %v1543
    %v2064 = vpack.c.b16 %v1552, %v1544
    %v2065 = vpack.c.b16 %v1553, %v1545
    %v2066 = vpack.c.b16 %v1554, %v1546
    %v2067 = vpack.c.b16 %v1555, %v1547
    %v2068 = vpack.c.b16 %v1564, %v1556
    %v2069 = vpack.c.b16 %v1565, %v1557
    %v2070 = vpack.c.b16 %v1566, %v1558
    %v2071 = vpack.c.b16 %v1567, %v1559
    %v2072 = vpack.c.b16 %v1568, %v1560
    %v2073 = vpack.c.b16 %v1569, %v1561
    %v2074 = vpack.c.b16 %v1570, %v1562
    %v2075 = vpack.c.b16 %v1571, %v1563
    %v2076 = vpack.c.b16 %v1580, %v1572
    %v2077 = vpack.c.b16 %v1581, %v1573
    %v2078 = vpack.c.b16 %v1582, %v1574
    %v2079 = vpack.c.b16 %v1583, %v1575
    %v2080 = vpack.c.b16 %v1584, %v1576
    %v2081 = vpack.c.b16 %v1585, %v1577
    %v2082 = vpack.c.b16 %v1586, %v1578
    %v2083 = vpack.c.b16 %v1587, %v1579
    %v2084 = vpack.c.b16 %v1596, %v1588
    %v2085 = vpack.c.b16 %v1597, %v1589
    %v2086 = vpack.c.b16 %v1598, %v1590
    %v2087 = vpack.c.b16 %v1599, %v1591
    %v2088 = vpack.c.b16 %v1600, %v1592
    %v2089 = vpack.c.b16 %v1601, %v1593
    %v2090 = vpack.c.b16 %v1602, %v1594
    %v2091 = vpack.c.b16 %v1603, %v1595
    %v2092 = vpack.c.b16 %v1612, %v1604
    %v2093 = vpack.c.b16 %v1613, %v1605
    %v2094 = vpack.c.b16 %v1614, %v1606
    %v2095 = vpack.c.b16 %v1615, %v1607
    %v2096 = vpack.c.b16 %v1616, %v1608
    %v2097 = vpack.c.b16 %v1617, %v1609
    %v2098 = vpack.c.b16 %v1618, %v1610
    %v2099 = vpack.c.b16 %v1619, %v1611
    %v2100 = vpack.c.b16 %v1628, %v1620
    %v2101 = vpack.c.b16 %v1629, %v1621
    %v2102 = vpack.c.b16 %v1630, %v1622
    %v2103 = vpack.c.b16 %v1631, %v1623
    %v2104 = vpack.c.b16 %v1632, %v1624
    %v2105 = vpack.c.b16 %v1633, %v1625
    %v2106 = vpack.c.b16 %v1634, %v1626
    %v2107 = vpack.c.b16 %v1635, %v1627
    %v2108 = vpack.c.b16 %v1644, %v1636
    %v2109 = vpack.c.b16 %v1645, %v1637
    %v2110 = vpack.c.b16 %v1646, %v1638
    %v2111 = vpack.c.b16 %v1647, %v1639
    %v2112 = vpack.c.b16 %v1648, %v1640
    %v2113 = vpack.c.b16 %v1649, %v1641
    %v2114 = vpack.c.b16 %v1650, %v1642
    %v2115 = vpack.c.b16 %v1651, %v1643
    %v2116 = vpack.c.b16 %v1660, %v1652
    %v2117 = vpack.c.b16 %v1661, %v1653
    %v2118 = vpack.c.b16 %v1662, %v1654
    %v2119 = vpack.c.b16 %v1663, %v1655
    %v2120 = vpack.c.b16 %v1664, %v1656
    %v2121 = vpack.c.b16 %v1665, %v1657
    %v2122 = vpack.c.b16 %v1666, %v1658
    %v2123 = vpack.c.b16 %v1667, %v1659
    %v2124 = vpack.c.b16 %v1676, %v1668
    %v2125 = vpack.c.b16 %v1677, %v1669
    %v2126 = vpack.c.b16 %v1678, %v1670
    %v2127 = vpack.c.b16 %v1679, %v1671
    %v2128 = vpack.c.b16 %v1680, %v1672
    %v2129 = vpack.c.b16 %v1681, %v1673
    %v2130 = vpack.c.b16 %v1682, %v1674
    %v2131 = vpack.c.b16 %v1683, %v1675
    %v2132 = vpack.c.b16 %v1692, %v1684
    %v2133 = vpack.c.b16 %v1693, %v1685
    %v2134 = vpack.c.b16 %v1694, %v1686
    %v2135 = vpack.c.b16 %v1695, %v1687
    %v2136 = vpack.c.b16 %v1696, %v1688
    %v2137 = vpack.c.b16 %v1697, %v1689
    %v2138 = vpack.c.b16 %v1698, %v1690
    %v2139 = vpack.c.b16 %v1699, %v1691
    %v2140 = vpack.c.b16 %v1708, %v1700
    %v2141 = vpack.c.b16 %v1709, %v1701
    %v2142 = vpack.c.b16 %v1710, %v1702
    %v2143 = vpack.c.b16 %v1711, %v1703
    %v2144 = vpack.c.b16 %v1712, %v1704
    %v2145 = vpack.c.b16 %v1713, %v1705
    %v2146 = vpack.c.b16 %v1714, %v1706
    %v2147 = vpack.c.b16 %v1715, %v1707
    %v2148 = vpack.c.b16 %v1724, %v1716
    %v2149 = vpack.c.b16 %v1725, %v1717
    %v2150 = vpack.c.b16 %v1726, %v1718
    %v2151 = vpack.c.b16 %v1727, %v1719
    %v2152 = vpack.c.b16 %v1728, %v1720
    %v2153 = vpack.c.b16 %v1729, %v1721
    %v2154 = vpack.c.b16 %v1730, %v1722
    %v2155 = vpack.c.b16 %v1731, %v1723
    %v2156 = vpack.c.b16 %v1740, %v1732
    %v2157 = vpack.c.b16 %v1741, %v1733
    %v2158 = vpack.c.b16 %v1742, %v1734
    %v2159 = vpack.c.b16 %v1743, %v1735
    %v2160 = vpack.c.b16 %v1744, %v1736
    %v2161 = vpack.c.b16 %v1745, %v1737
    %v2162 = vpack.c.b16 %v1746, %v1738
    %v2163 = vpack.c.b16 %v1747, %v1739
    %v2164 = vpack.c.b16 %v1756, %v1748
    %v2165 = vpack.c.b16 %v1757, %v1749
    %v2166 = vpack.c.b16 %v1758, %v1750
    %v2167 = vpack.c.b16 %v1759, %v1751
    %v2168 = vpack.c.b16 %v1760, %v1752
    %v2169 = vpack.c.b16 %v1761, %v1753
    %v2170 = vpack.c.b16 %v1762, %v1754
    %v2171 = vpack.c.b16 %v1763, %v1755
    %v2172 = vpack.c.b16 %v1772, %v1764
    %v2173 = vpack.c.b16 %v1773, %v1765
    %v2174 = vpack.c.b16 %v1774, %v1766
    %v2175 = vpack.c.b16 %v1775, %v1767
    %v2176 = vpack.c.b16 %v1776, %v1768
    %v2177 = vpack.c.b16 %v1777, %v1769
    %v2178 = vpack.c.b16 %v1778, %v1770
    %v2179 = vpack.c.b16 %v1779, %v1771
    %v2180 = vpack.c.b16 %v1788, %v1780
    %v2181 = vpack.c.b16 %v1789, %v1781
    %v2182 = vpack.c.b16 %v1790, %v1782
    %v2183 = vpack.c.b16 %v1791, %v1783
    %v2184 = vpack.c.b16 %v1792, %v1784
    %v2185 = vpack.c.b16 %v1793, %v1785
    %v2186 = vpack.c.b16 %v1794, %v1786
    %v2187 = vpack.c.b16 %v1795, %v1787
    %vm2580 = vcmask 130048
    %v2582 = vsel %vm2580, %v185, 0
    %2584 = vmatprep.subr.bf16.mxu0 %v1853
    %2585 = vmatpush1.bf16.msra.mxu0 %v1852
    %2586 = vmatprep.subr.bf16.mxu0 %v1845
    %2587 = vmatpush1.bf16.msra.mxu0 %v1844
    %2588 = vmatprep.subr.bf16.mxu0 %v1837
    %2589 = vmatpush1.bf16.msra.mxu0 %v1836
    %2590 = vmatprep.subr.bf16.mxu0 %v1829
    %2591 = vmatpush1.bf16.msra.mxu0 %v1828
    %2592 = vmatprep.subr.bf16.mxu0 %v1821
    %2593 = vmatpush1.bf16.msra.mxu0 %v1820
    %2594 = vmatprep.subr.bf16.mxu0 %v1813
    %2595 = vmatpush1.bf16.msra.mxu0 %v1812
    %2596 = vmatprep.subr.bf16.mxu0 %v1805
    %2597 = vmatpush1.bf16.msra.mxu0 %v1804
    %2598 = vmatprep.subr.bf16.mxu0 %v1797
    %2599 = vmatpush1.bf16.msra.mxu0 %v1796
    %2600 = vmatprep.subr.bf16.mxu0 %v1917
    %2601 = vmatpush2.bf16.msra.mxu0 %v1916
    %2602 = vmatprep.subr.bf16.mxu0 %v1909
    %2603 = vmatpush2.bf16.msra.mxu0 %v1908
    %2604 = vmatprep.subr.bf16.mxu0 %v1901
    %2605 = vmatpush2.bf16.msra.mxu0 %v1900
    %2606 = vmatprep.subr.bf16.mxu0 %v1893
    %2607 = vmatpush2.bf16.msra.mxu0 %v1892
    %2608 = vmatprep.subr.bf16.mxu0 %v1885
    %2609 = vmatpush2.bf16.msra.mxu0 %v1884
    %2610 = vmatprep.subr.bf16.mxu0 %v1877
    %2611 = vmatpush2.bf16.msra.mxu0 %v1876
    %2612 = vmatprep.subr.bf16.mxu0 %v1869
    %2613 = vmatpush2.bf16.msra.mxu0 %v1868
    %2614 = vmatprep.subr.bf16.mxu0 %v1861
    %2615 = vmatpush2.bf16.msra.mxu0 %v1860
    %2616 = vmatprep.mubr.bf16.mxu0 %v180
    %2617 = vmatmul.mubr.bf16.gmra.mxu0 %v179
    %v2618 = vpop.f32.mrf.mxu0
    %v2619 = vadd.f32 %v583, %v2618
    %v2620 = vpop.f32.mrf.mxu0
    %v2621 = vadd.f32 %v587, %v2620
    %v2622 = vpop.f32.mrf.mxu0
    %v2623 = vadd.f32 %v583, %v2622
    %v2624 = vpop.f32.mrf.mxu0
    %v2625 = vadd.f32 %v587, %v2624
    %2626 = vdwg.mxu0
    %2627 = vmatprep.subr.bf16.mxu0 %v1981
    %2628 = vmatpush1.bf16.msra.mxu0 %v1980
    %2629 = vmatprep.subr.bf16.mxu0 %v1973
    %2630 = vmatpush1.bf16.msra.mxu0 %v1972
    %2631 = vmatprep.subr.bf16.mxu0 %v1965
    %2632 = vmatpush1.bf16.msra.mxu0 %v1964
    %2633 = vmatprep.subr.bf16.mxu0 %v1957
    %2634 = vmatpush1.bf16.msra.mxu0 %v1956
    %2635 = vmatprep.subr.bf16.mxu0 %v1949
    %2636 = vmatpush1.bf16.msra.mxu0 %v1948
    %2637 = vmatprep.subr.bf16.mxu0 %v1941
    %2638 = vmatpush1.bf16.msra.mxu0 %v1940
    %2639 = vmatprep.subr.bf16.mxu0 %v1933
    %2640 = vmatpush1.bf16.msra.mxu0 %v1932
    %2641 = vmatprep.subr.bf16.mxu0 %v1925
    %2642 = vmatpush1.bf16.msra.mxu0 %v1924
    %2643 = vmatprep.subr.bf16.mxu0 %v2045
    %2644 = vmatpush2.bf16.msra.mxu0 %v2044
    %2645 = vmatprep.subr.bf16.mxu0 %v2037
    %2646 = vmatpush2.bf16.msra.mxu0 %v2036
    %2647 = vmatprep.subr.bf16.mxu0 %v2029
    %2648 = vmatpush2.bf16.msra.mxu0 %v2028
    %2649 = vmatprep.subr.bf16.mxu0 %v2021
    %2650 = vmatpush2.bf16.msra.mxu0 %v2020
    %2651 = vmatprep.subr.bf16.mxu0 %v2013
    %2652 = vmatpush2.bf16.msra.mxu0 %v2012
    %2653 = vmatprep.subr.bf16.mxu0 %v2005
    %2654 = vmatpush2.bf16.msra.mxu0 %v2004
    %2655 = vmatprep.subr.bf16.mxu0 %v1997
    %2656 = vmatpush2.bf16.msra.mxu0 %v1996
    %2657 = vmatprep.subr.bf16.mxu0 %v1989
    %2658 = vmatpush2.bf16.msra.mxu0 %v1988
    %2659 = vmatprep.mubr.bf16.mxu0 %v182
    %2660 = vmatmul.mubr.bf16.gmra.mxu0 %v181
    %v2661 = vpop.f32.mrf.mxu0
    %v2662 = vadd.f32 %v2619, %v2661
    %v2663 = vpop.f32.mrf.mxu0
    %v2664 = vadd.f32 %v2621, %v2663
    %v2665 = vpop.f32.mrf.mxu0
    %v2666 = vadd.f32 %v2623, %v2665
    %v2667 = vpop.f32.mrf.mxu0
    %v2668 = vadd.f32 %v2625, %v2667
    %2669 = vdwg.mxu0
    %2670 = vmatprep.subr.bf16.mxu0 %v2109
    %2671 = vmatpush1.bf16.msra.mxu0 %v2108
    %2672 = vmatprep.subr.bf16.mxu0 %v2101
    %2673 = vmatpush1.bf16.msra.mxu0 %v2100
    %2674 = vmatprep.subr.bf16.mxu0 %v2093
    %2675 = vmatpush1.bf16.msra.mxu0 %v2092
    %2676 = vmatprep.subr.bf16.mxu0 %v2085
    %2677 = vmatpush1.bf16.msra.mxu0 %v2084
    %2678 = vmatprep.subr.bf16.mxu0 %v2077
    %2679 = vmatpush1.bf16.msra.mxu0 %v2076
    %2680 = vmatprep.subr.bf16.mxu0 %v2069
    %2681 = vmatpush1.bf16.msra.mxu0 %v2068
    %2682 = vmatprep.subr.bf16.mxu0 %v2061
    %2683 = vmatpush1.bf16.msra.mxu0 %v2060
    %2684 = vmatprep.subr.bf16.mxu0 %v2053
    %2685 = vmatpush1.bf16.msra.mxu0 %v2052
    %2686 = vmatprep.subr.bf16.mxu0 %v2173
    %2687 = vmatpush2.bf16.msra.mxu0 %v2172
    %2688 = vmatprep.subr.bf16.mxu0 %v2165
    %2689 = vmatpush2.bf16.msra.mxu0 %v2164
    %2690 = vmatprep.subr.bf16.mxu0 %v2157
    %2691 = vmatpush2.bf16.msra.mxu0 %v2156
    %2692 = vmatprep.subr.bf16.mxu0 %v2149
    %2693 = vmatpush2.bf16.msra.mxu0 %v2148
    %2694 = vmatprep.subr.bf16.mxu0 %v2141
    %2695 = vmatpush2.bf16.msra.mxu0 %v2140
    %2696 = vmatprep.subr.bf16.mxu0 %v2133
    %2697 = vmatpush2.bf16.msra.mxu0 %v2132
    %2698 = vmatprep.subr.bf16.mxu0 %v2125
    %2699 = vmatpush2.bf16.msra.mxu0 %v2124
    %2700 = vmatprep.subr.bf16.mxu0 %v2117
    %2701 = vmatpush2.bf16.msra.mxu0 %v2116
    %2702 = vmatprep.mubr.bf16.mxu0 %v184
    %2703 = vmatmul.mubr.bf16.gmra.mxu0 %v183
    %v2704 = vpop.f32.mrf.mxu0
    %v2705 = vadd.f32 %v2662, %v2704
    %v2706 = vpop.f32.mrf.mxu0
    %v2707 = vadd.f32 %v2664, %v2706
    %v2708 = vpop.f32.mrf.mxu0
    %v2709 = vadd.f32 %v2666, %v2708
    %v2710 = vpop.f32.mrf.mxu0
    %v2711 = vadd.f32 %v2668, %v2710
    %2712 = vdwg.mxu0
    %2713 = vmatprep.subr.bf16.mxu0 0
    %2714 = vmatpush1.bf16.msra.mxu0 0
    %2715 = vmatprep.subr.bf16.mxu0 0
    %2716 = vmatpush1.bf16.msra.mxu0 0
    %2717 = vmatprep.subr.bf16.mxu0 0
    %2718 = vmatpush1.bf16.msra.mxu0 0
    %2719 = vmatprep.subr.bf16.mxu0 0
    %2720 = vmatpush1.bf16.msra.mxu0 0
    %2721 = vmatprep.subr.bf16.mxu0 0
    %2722 = vmatpush1.bf16.msra.mxu0 0
    %2723 = vmatprep.subr.bf16.mxu0 0
    %2724 = vmatpush1.bf16.msra.mxu0 0
    %2725 = vmatprep.subr.bf16.mxu0 0
    %2726 = vmatpush1.bf16.msra.mxu0 0
    %2727 = vmatprep.subr.bf16.mxu0 %v2181
    %2728 = vmatpush1.bf16.msra.mxu0 %v2180
    %2729 = vmatprep.subr.bf16.mxu0 0
    %2730 = vmatpush2.bf16.msra.mxu0 0
    %2731 = vmatprep.subr.bf16.mxu0 0
    %2732 = vmatpush2.bf16.msra.mxu0 0
    %2733 = vmatprep.subr.bf16.mxu0 0
    %2734 = vmatpush2.bf16.msra.mxu0 0
    %2735 = vmatprep.subr.bf16.mxu0 0
    %2736 = vmatpush2.bf16.msra.mxu0 0
    %2737 = vmatprep.subr.bf16.mxu0 0
    %2738 = vmatpush2.bf16.msra.mxu0 0
    %2739 = vmatprep.subr.bf16.mxu0 0
    %2740 = vmatpush2.bf16.msra.mxu0 0
    %2741 = vmatprep.subr.bf16.mxu0 0
    %2742 = vmatpush2.bf16.msra.mxu0 0
    %2743 = vmatprep.subr.bf16.mxu0 0
    %2744 = vmatpush2.bf16.msra.mxu0 0
    %2745 = vmatprep.mubr.bf16.mxu0 0
    %2746 = vmatmul.mubr.bf16.gmra.mxu0 %v2582
    %v2747 = vpop.f32.mrf.mxu0
    %v2748 = vadd.f32 %v2705, %v2747
    %v2749 = vpop.f32.mrf.mxu0
    %v2750 = vadd.f32 %v2707, %v2749
    %v2751 = vpop.f32.mrf.mxu0
    %v2752 = vadd.f32 %v2709, %v2751
    %v2753 = vpop.f32.mrf.mxu0
    %v2754 = vadd.f32 %v2711, %v2753
    %2755 = vdwg.mxu0
    %2756 = vmatprep.subr.bf16.mxu0 %v1855
    %2757 = vmatpush1.bf16.msra.mxu0 %v1854
    %2758 = vmatprep.subr.bf16.mxu0 %v1847
    %2759 = vmatpush1.bf16.msra.mxu0 %v1846
    %2760 = vmatprep.subr.bf16.mxu0 %v1839
    %2761 = vmatpush1.bf16.msra.mxu0 %v1838
    %2762 = vmatprep.subr.bf16.mxu0 %v1831
    %2763 = vmatpush1.bf16.msra.mxu0 %v1830
    %2764 = vmatprep.subr.bf16.mxu0 %v1823
    %2765 = vmatpush1.bf16.msra.mxu0 %v1822
    %2766 = vmatprep.subr.bf16.mxu0 %v1815
    %2767 = vmatpush1.bf16.msra.mxu0 %v1814
    %2768 = vmatprep.subr.bf16.mxu0 %v1807
    %2769 = vmatpush1.bf16.msra.mxu0 %v1806
    %2770 = vmatprep.subr.bf16.mxu0 %v1799
    %2771 = vmatpush1.bf16.msra.mxu0 %v1798
    %2772 = vmatprep.subr.bf16.mxu0 %v1919
    %2773 = vmatpush2.bf16.msra.mxu0 %v1918
    %2774 = vmatprep.subr.bf16.mxu0 %v1911
    %2775 = vmatpush2.bf16.msra.mxu0 %v1910
    %2776 = vmatprep.subr.bf16.mxu0 %v1903
    %2777 = vmatpush2.bf16.msra.mxu0 %v1902
    %2778 = vmatprep.subr.bf16.mxu0 %v1895
    %2779 = vmatpush2.bf16.msra.mxu0 %v1894
    %2780 = vmatprep.subr.bf16.mxu0 %v1887
    %2781 = vmatpush2.bf16.msra.mxu0 %v1886
    %2782 = vmatprep.subr.bf16.mxu0 %v1879
    %2783 = vmatpush2.bf16.msra.mxu0 %v1878
    %2784 = vmatprep.subr.bf16.mxu0 %v1871
    %2785 = vmatpush2.bf16.msra.mxu0 %v1870
    %2786 = vmatprep.subr.bf16.mxu0 %v1863
    %2787 = vmatpush2.bf16.msra.mxu0 %v1862
    %2788 = vmatprep.mubr.bf16.mxu0 %v180
    %2789 = vmatmul.mubr.bf16.gmra.mxu0 %v179
    %v2790 = vpop.f32.mrf.mxu0
    %v2791 = vadd.f32 %v591, %v2790
    %v2792 = vpop.f32.mrf.mxu0
    %v2793 = vadd.f32 %v595, %v2792
    %v2794 = vpop.f32.mrf.mxu0
    %v2795 = vadd.f32 %v591, %v2794
    %v2796 = vpop.f32.mrf.mxu0
    %v2797 = vadd.f32 %v595, %v2796
    %2798 = vdwg.mxu0
    %2799 = vmatprep.subr.bf16.mxu0 %v1983
    %2800 = vmatpush1.bf16.msra.mxu0 %v1982
    %2801 = vmatprep.subr.bf16.mxu0 %v1975
    %2802 = vmatpush1.bf16.msra.mxu0 %v1974
    %2803 = vmatprep.subr.bf16.mxu0 %v1967
    %2804 = vmatpush1.bf16.msra.mxu0 %v1966
    %2805 = vmatprep.subr.bf16.mxu0 %v1959
    %2806 = vmatpush1.bf16.msra.mxu0 %v1958
    %2807 = vmatprep.subr.bf16.mxu0 %v1951
    %2808 = vmatpush1.bf16.msra.mxu0 %v1950
    %2809 = vmatprep.subr.bf16.mxu0 %v1943
    %2810 = vmatpush1.bf16.msra.mxu0 %v1942
    %2811 = vmatprep.subr.bf16.mxu0 %v1935
    %2812 = vmatpush1.bf16.msra.mxu0 %v1934
    %2813 = vmatprep.subr.bf16.mxu0 %v1927
    %2814 = vmatpush1.bf16.msra.mxu0 %v1926
    %2815 = vmatprep.subr.bf16.mxu0 %v2047
    %2816 = vmatpush2.bf16.msra.mxu0 %v2046
    %2817 = vmatprep.subr.bf16.mxu0 %v2039
    %2818 = vmatpush2.bf16.msra.mxu0 %v2038
    %2819 = vmatprep.subr.bf16.mxu0 %v2031
    %2820 = vmatpush2.bf16.msra.mxu0 %v2030
    %2821 = vmatprep.subr.bf16.mxu0 %v2023
    %2822 = vmatpush2.bf16.msra.mxu0 %v2022
    %2823 = vmatprep.subr.bf16.mxu0 %v2015
    %2824 = vmatpush2.bf16.msra.mxu0 %v2014
    %2825 = vmatprep.subr.bf16.mxu0 %v2007
    %2826 = vmatpush2.bf16.msra.mxu0 %v2006
    %2827 = vmatprep.subr.bf16.mxu0 %v1999
    %2828 = vmatpush2.bf16.msra.mxu0 %v1998
    %2829 = vmatprep.subr.bf16.mxu0 %v1991
    %2830 = vmatpush2.bf16.msra.mxu0 %v1990
    %2831 = vmatprep.mubr.bf16.mxu0 %v182
    %2832 = vmatmul.mubr.bf16.gmra.mxu0 %v181
    %v2833 = vpop.f32.mrf.mxu0
    %v2834 = vadd.f32 %v2791, %v2833
    %v2835 = vpop.f32.mrf.mxu0
    %v2836 = vadd.f32 %v2793, %v2835
    %v2837 = vpop.f32.mrf.mxu0
    %v2838 = vadd.f32 %v2795, %v2837
    %v2839 = vpop.f32.mrf.mxu0
    %v2840 = vadd.f32 %v2797, %v2839
    %2841 = vdwg.mxu0
    %2842 = vmatprep.subr.bf16.mxu0 %v2111
    %2843 = vmatpush1.bf16.msra.mxu0 %v2110
    %2844 = vmatprep.subr.bf16.mxu0 %v2103
    %2845 = vmatpush1.bf16.msra.mxu0 %v2102
    %2846 = vmatprep.subr.bf16.mxu0 %v2095
    %2847 = vmatpush1.bf16.msra.mxu0 %v2094
    %2848 = vmatprep.subr.bf16.mxu0 %v2087
    %2849 = vmatpush1.bf16.msra.mxu0 %v2086
    %2850 = vmatprep.subr.bf16.mxu0 %v2079
    %2851 = vmatpush1.bf16.msra.mxu0 %v2078
    %2852 = vmatprep.subr.bf16.mxu0 %v2071
    %2853 = vmatpush1.bf16.msra.mxu0 %v2070
    %2854 = vmatprep.subr.bf16.mxu0 %v2063
    %2855 = vmatpush1.bf16.msra.mxu0 %v2062
    %2856 = vmatprep.subr.bf16.mxu0 %v2055
    %2857 = vmatpush1.bf16.msra.mxu0 %v2054
    %2858 = vmatprep.subr.bf16.mxu0 %v2175
    %2859 = vmatpush2.bf16.msra.mxu0 %v2174
    %2860 = vmatprep.subr.bf16.mxu0 %v2167
    %2861 = vmatpush2.bf16.msra.mxu0 %v2166
    %2862 = vmatprep.subr.bf16.mxu0 %v2159
    %2863 = vmatpush2.bf16.msra.mxu0 %v2158
    %2864 = vmatprep.subr.bf16.mxu0 %v2151
    %2865 = vmatpush2.bf16.msra.mxu0 %v2150
    %2866 = vmatprep.subr.bf16.mxu0 %v2143
    %2867 = vmatpush2.bf16.msra.mxu0 %v2142
    %2868 = vmatprep.subr.bf16.mxu0 %v2135
    %2869 = vmatpush2.bf16.msra.mxu0 %v2134
    %2870 = vmatprep.subr.bf16.mxu0 %v2127
    %2871 = vmatpush2.bf16.msra.mxu0 %v2126
    %2872 = vmatprep.subr.bf16.mxu0 %v2119
    %2873 = vmatpush2.bf16.msra.mxu0 %v2118
    %2874 = vmatprep.mubr.bf16.mxu0 %v184
    %2875 = vmatmul.mubr.bf16.gmra.mxu0 %v183
    %v2876 = vpop.f32.mrf.mxu0
    %v2877 = vadd.f32 %v2834, %v2876
    %v2878 = vpop.f32.mrf.mxu0
    %v2879 = vadd.f32 %v2836, %v2878
    %v2880 = vpop.f32.mrf.mxu0
    %v2881 = vadd.f32 %v2838, %v2880
    %v2882 = vpop.f32.mrf.mxu0
    %v2883 = vadd.f32 %v2840, %v2882
    %2884 = vdwg.mxu0
    %2885 = vmatprep.subr.bf16.mxu0 0
    %2886 = vmatpush1.bf16.msra.mxu0 0
    %2887 = vmatprep.subr.bf16.mxu0 0
    %2888 = vmatpush1.bf16.msra.mxu0 0
    %2889 = vmatprep.subr.bf16.mxu0 0
    %2890 = vmatpush1.bf16.msra.mxu0 0
    %2891 = vmatprep.subr.bf16.mxu0 0
    %2892 = vmatpush1.bf16.msra.mxu0 0
    %2893 = vmatprep.subr.bf16.mxu0 0
    %2894 = vmatpush1.bf16.msra.mxu0 0
    %2895 = vmatprep.subr.bf16.mxu0 0
    %2896 = vmatpush1.bf16.msra.mxu0 0
    %2897 = vmatprep.subr.bf16.mxu0 0
    %2898 = vmatpush1.bf16.msra.mxu0 0
    %2899 = vmatprep.subr.bf16.mxu0 %v2183
    %2900 = vmatpush1.bf16.msra.mxu0 %v2182
    %2901 = vmatprep.subr.bf16.mxu0 0
    %2902 = vmatpush2.bf16.msra.mxu0 0
    %2903 = vmatprep.subr.bf16.mxu0 0
    %2904 = vmatpush2.bf16.msra.mxu0 0
    %2905 = vmatprep.subr.bf16.mxu0 0
    %2906 = vmatpush2.bf16.msra.mxu0 0
    %2907 = vmatprep.subr.bf16.mxu0 0
    %2908 = vmatpush2.bf16.msra.mxu0 0
    %2909 = vmatprep.subr.bf16.mxu0 0
    %2910 = vmatpush2.bf16.msra.mxu0 0
    %2911 = vmatprep.subr.bf16.mxu0 0
    %2912 = vmatpush2.bf16.msra.mxu0 0
    %2913 = vmatprep.subr.bf16.mxu0 0
    %2914 = vmatpush2.bf16.msra.mxu0 0
    %2915 = vmatprep.subr.bf16.mxu0 0
    %2916 = vmatpush2.bf16.msra.mxu0 0
    %2917 = vmatprep.mubr.bf16.mxu0 0
    %2918 = vmatmul.mubr.bf16.gmra.mxu0 %v2582
    %v2919 = vpop.f32.mrf.mxu0
    %v2920 = vadd.f32 %v2877, %v2919
    %v2921 = vpop.f32.mrf.mxu0
    %v2922 = vadd.f32 %v2879, %v2921
    %v2923 = vpop.f32.mrf.mxu0
    %v2924 = vadd.f32 %v2881, %v2923
    %v2925 = vpop.f32.mrf.mxu0
    %v2926 = vadd.f32 %v2883, %v2925
    %2927 = vdwg.mxu0
    %2928 = vmatprep.subr.bf16.mxu0 %v1857
    %2929 = vmatpush1.bf16.msra.mxu0 %v1856
    %2930 = vmatprep.subr.bf16.mxu0 %v1849
    %2931 = vmatpush1.bf16.msra.mxu0 %v1848
    %2932 = vmatprep.subr.bf16.mxu0 %v1841
    %2933 = vmatpush1.bf16.msra.mxu0 %v1840
    %2934 = vmatprep.subr.bf16.mxu0 %v1833
    %2935 = vmatpush1.bf16.msra.mxu0 %v1832
    %2936 = vmatprep.subr.bf16.mxu0 %v1825
    %2937 = vmatpush1.bf16.msra.mxu0 %v1824
    %2938 = vmatprep.subr.bf16.mxu0 %v1817
    %2939 = vmatpush1.bf16.msra.mxu0 %v1816
    %2940 = vmatprep.subr.bf16.mxu0 %v1809
    %2941 = vmatpush1.bf16.msra.mxu0 %v1808
    %2942 = vmatprep.subr.bf16.mxu0 %v1801
    %2943 = vmatpush1.bf16.msra.mxu0 %v1800
    %2944 = vmatprep.subr.bf16.mxu0 %v1921
    %2945 = vmatpush2.bf16.msra.mxu0 %v1920
    %2946 = vmatprep.subr.bf16.mxu0 %v1913
    %2947 = vmatpush2.bf16.msra.mxu0 %v1912
    %2948 = vmatprep.subr.bf16.mxu0 %v1905
    %2949 = vmatpush2.bf16.msra.mxu0 %v1904
    %2950 = vmatprep.subr.bf16.mxu0 %v1897
    %2951 = vmatpush2.bf16.msra.mxu0 %v1896
    %2952 = vmatprep.subr.bf16.mxu0 %v1889
    %2953 = vmatpush2.bf16.msra.mxu0 %v1888
    %2954 = vmatprep.subr.bf16.mxu0 %v1881
    %2955 = vmatpush2.bf16.msra.mxu0 %v1880
    %2956 = vmatprep.subr.bf16.mxu0 %v1873
    %2957 = vmatpush2.bf16.msra.mxu0 %v1872
    %2958 = vmatprep.subr.bf16.mxu0 %v1865
    %2959 = vmatpush2.bf16.msra.mxu0 %v1864
    %2960 = vmatprep.mubr.bf16.mxu0 %v180
    %2961 = vmatmul.mubr.bf16.gmra.mxu0 %v179
    %v2962 = vpop.f32.mrf.mxu0
    %v2963 = vadd.f32 %v599, %v2962
    %v2964 = vpop.f32.mrf.mxu0
    %v2965 = vadd.f32 %v603, %v2964
    %v2966 = vpop.f32.mrf.mxu0
    %v2967 = vadd.f32 %v599, %v2966
    %v2968 = vpop.f32.mrf.mxu0
    %v2969 = vadd.f32 %v603, %v2968
    %2970 = vdwg.mxu0
    %2971 = vmatprep.subr.bf16.mxu0 %v1985
    %2972 = vmatpush1.bf16.msra.mxu0 %v1984
    %2973 = vmatprep.subr.bf16.mxu0 %v1977
    %2974 = vmatpush1.bf16.msra.mxu0 %v1976
    %2975 = vmatprep.subr.bf16.mxu0 %v1969
    %2976 = vmatpush1.bf16.msra.mxu0 %v1968
    %2977 = vmatprep.subr.bf16.mxu0 %v1961
    %2978 = vmatpush1.bf16.msra.mxu0 %v1960
    %2979 = vmatprep.subr.bf16.mxu0 %v1953
    %2980 = vmatpush1.bf16.msra.mxu0 %v1952
    %2981 = vmatprep.subr.bf16.mxu0 %v1945
    %2982 = vmatpush1.bf16.msra.mxu0 %v1944
    %2983 = vmatprep.subr.bf16.mxu0 %v1937
    %2984 = vmatpush1.bf16.msra.mxu0 %v1936
    %2985 = vmatprep.subr.bf16.mxu0 %v1929
    %2986 = vmatpush1.bf16.msra.mxu0 %v1928
    %2987 = vmatprep.subr.bf16.mxu0 %v2049
    %2988 = vmatpush2.bf16.msra.mxu0 %v2048
    %2989 = vmatprep.subr.bf16.mxu0 %v2041
    %2990 = vmatpush2.bf16.msra.mxu0 %v2040
    %2991 = vmatprep.subr.bf16.mxu0 %v2033
    %2992 = vmatpush2.bf16.msra.mxu0 %v2032
    %2993 = vmatprep.subr.bf16.mxu0 %v2025
    %2994 = vmatpush2.bf16.msra.mxu0 %v2024
    %2995 = vmatprep.subr.bf16.mxu0 %v2017
    %2996 = vmatpush2.bf16.msra.mxu0 %v2016
    %2997 = vmatprep.subr.bf16.mxu0 %v2009
    %2998 = vmatpush2.bf16.msra.mxu0 %v2008
    %2999 = vmatprep.subr.bf16.mxu0 %v2001
    %3000 = vmatpush2.bf16.msra.mxu0 %v2000
    %3001 = vmatprep.subr.bf16.mxu0 %v1993
    %3002 = vmatpush2.bf16.msra.mxu0 %v1992
    %3003 = vmatprep.mubr.bf16.mxu0 %v182
    %3004 = vmatmul.mubr.bf16.gmra.mxu0 %v181
    %v3005 = vpop.f32.mrf.mxu0
    %v3006 = vadd.f32 %v2963, %v3005
    %v3007 = vpop.f32.mrf.mxu0
    %v3008 = vadd.f32 %v2965, %v3007
    %v3009 = vpop.f32.mrf.mxu0
    %v3010 = vadd.f32 %v2967, %v3009
    %v3011 = vpop.f32.mrf.mxu0
    %v3012 = vadd.f32 %v2969, %v3011
    %3013 = vdwg.mxu0
    %3014 = vmatprep.subr.bf16.mxu0 %v2113
    %3015 = vmatpush1.bf16.msra.mxu0 %v2112
    %3016 = vmatprep.subr.bf16.mxu0 %v2105
    %3017 = vmatpush1.bf16.msra.mxu0 %v2104
    %3018 = vmatprep.subr.bf16.mxu0 %v2097
    %3019 = vmatpush1.bf16.msra.mxu0 %v2096
    %3020 = vmatprep.subr.bf16.mxu0 %v2089
    %3021 = vmatpush1.bf16.msra.mxu0 %v2088
    %3022 = vmatprep.subr.bf16.mxu0 %v2081
    %3023 = vmatpush1.bf16.msra.mxu0 %v2080
    %3024 = vmatprep.subr.bf16.mxu0 %v2073
    %3025 = vmatpush1.bf16.msra.mxu0 %v2072
    %3026 = vmatprep.subr.bf16.mxu0 %v2065
    %3027 = vmatpush1.bf16.msra.mxu0 %v2064
    %3028 = vmatprep.subr.bf16.mxu0 %v2057
    %3029 = vmatpush1.bf16.msra.mxu0 %v2056
    %3030 = vmatprep.subr.bf16.mxu0 %v2177
    %3031 = vmatpush2.bf16.msra.mxu0 %v2176
    %3032 = vmatprep.subr.bf16.mxu0 %v2169
    %3033 = vmatpush2.bf16.msra.mxu0 %v2168
    %3034 = vmatprep.subr.bf16.mxu0 %v2161
    %3035 = vmatpush2.bf16.msra.mxu0 %v2160
    %3036 = vmatprep.subr.bf16.mxu0 %v2153
    %3037 = vmatpush2.bf16.msra.mxu0 %v2152
    %3038 = vmatprep.subr.bf16.mxu0 %v2145
    %3039 = vmatpush2.bf16.msra.mxu0 %v2144
    %3040 = vmatprep.subr.bf16.mxu0 %v2137
    %3041 = vmatpush2.bf16.msra.mxu0 %v2136
    %3042 = vmatprep.subr.bf16.mxu0 %v2129
    %3043 = vmatpush2.bf16.msra.mxu0 %v2128
    %3044 = vmatprep.subr.bf16.mxu0 %v2121
    %3045 = vmatpush2.bf16.msra.mxu0 %v2120
    %3046 = vmatprep.mubr.bf16.mxu0 %v184
    %3047 = vmatmul.mubr.bf16.gmra.mxu0 %v183
    %v3048 = vpop.f32.mrf.mxu0
    %v3049 = vadd.f32 %v3006, %v3048
    %v3050 = vpop.f32.mrf.mxu0
    %v3051 = vadd.f32 %v3008, %v3050
    %v3052 = vpop.f32.mrf.mxu0
    %v3053 = vadd.f32 %v3010, %v3052
    %v3054 = vpop.f32.mrf.mxu0
    %v3055 = vadd.f32 %v3012, %v3054
    %3056 = vdwg.mxu0
    %3057 = vmatprep.subr.bf16.mxu0 0
    %3058 = vmatpush1.bf16.msra.mxu0 0
    %3059 = vmatprep.subr.bf16.mxu0 0
    %3060 = vmatpush1.bf16.msra.mxu0 0
    %3061 = vmatprep.subr.bf16.mxu0 0
    %3062 = vmatpush1.bf16.msra.mxu0 0
    %3063 = vmatprep.subr.bf16.mxu0 0
    %3064 = vmatpush1.bf16.msra.mxu0 0
    %3065 = vmatprep.subr.bf16.mxu0 0
    %3066 = vmatpush1.bf16.msra.mxu0 0
    %3067 = vmatprep.subr.bf16.mxu0 0
    %3068 = vmatpush1.bf16.msra.mxu0 0
    %3069 = vmatprep.subr.bf16.mxu0 0
    %3070 = vmatpush1.bf16.msra.mxu0 0
    %3071 = vmatprep.subr.bf16.mxu0 %v2185
    %3072 = vmatpush1.bf16.msra.mxu0 %v2184
    %3073 = vmatprep.subr.bf16.mxu0 0
    %3074 = vmatpush2.bf16.msra.mxu0 0
    %3075 = vmatprep.subr.bf16.mxu0 0
    %3076 = vmatpush2.bf16.msra.mxu0 0
    %3077 = vmatprep.subr.bf16.mxu0 0
    %3078 = vmatpush2.bf16.msra.mxu0 0
    %3079 = vmatprep.subr.bf16.mxu0 0
    %3080 = vmatpush2.bf16.msra.mxu0 0
    %3081 = vmatprep.subr.bf16.mxu0 0
    %3082 = vmatpush2.bf16.msra.mxu0 0
    %3083 = vmatprep.subr.bf16.mxu0 0
    %3084 = vmatpush2.bf16.msra.mxu0 0
    %3085 = vmatprep.subr.bf16.mxu0 0
    %3086 = vmatpush2.bf16.msra.mxu0 0
    %3087 = vmatprep.subr.bf16.mxu0 0
    %3088 = vmatpush2.bf16.msra.mxu0 0
    %3089 = vmatprep.mubr.bf16.mxu0 0
    %3090 = vmatmul.mubr.bf16.gmra.mxu0 %v2582
    %v3091 = vpop.f32.mrf.mxu0
    %v3092 = vadd.f32 %v3049, %v3091
    %v3093 = vpop.f32.mrf.mxu0
    %v3094 = vadd.f32 %v3051, %v3093
    %v3095 = vpop.f32.mrf.mxu0
    %v3096 = vadd.f32 %v3053, %v3095
    %v3097 = vpop.f32.mrf.mxu0
    %v3098 = vadd.f32 %v3055, %v3097
    %3099 = vdwg.mxu0
    %3100 = vmatprep.subr.bf16.mxu0 %v1859
    %3101 = vmatpush1.bf16.msra.mxu0 %v1858
    %3102 = vmatprep.subr.bf16.mxu0 %v1851
    %3103 = vmatpush1.bf16.msra.mxu0 %v1850
    %3104 = vmatprep.subr.bf16.mxu0 %v1843
    %3105 = vmatpush1.bf16.msra.mxu0 %v1842
    %3106 = vmatprep.subr.bf16.mxu0 %v1835
    %3107 = vmatpush1.bf16.msra.mxu0 %v1834
    %3108 = vmatprep.subr.bf16.mxu0 %v1827
    %3109 = vmatpush1.bf16.msra.mxu0 %v1826
    %3110 = vmatprep.subr.bf16.mxu0 %v1819
    %3111 = vmatpush1.bf16.msra.mxu0 %v1818
    %3112 = vmatprep.subr.bf16.mxu0 %v1811
    %3113 = vmatpush1.bf16.msra.mxu0 %v1810
    %3114 = vmatprep.subr.bf16.mxu0 %v1803
    %3115 = vmatpush1.bf16.msra.mxu0 %v1802
    %3116 = vmatprep.subr.bf16.mxu0 %v1923
    %3117 = vmatpush2.bf16.msra.mxu0 %v1922
    %3118 = vmatprep.subr.bf16.mxu0 %v1915
    %3119 = vmatpush2.bf16.msra.mxu0 %v1914
    %3120 = vmatprep.subr.bf16.mxu0 %v1907
    %3121 = vmatpush2.bf16.msra.mxu0 %v1906
    %3122 = vmatprep.subr.bf16.mxu0 %v1899
    %3123 = vmatpush2.bf16.msra.mxu0 %v1898
    %3124 = vmatprep.subr.bf16.mxu0 %v1891
    %3125 = vmatpush2.bf16.msra.mxu0 %v1890
    %3126 = vmatprep.subr.bf16.mxu0 %v1883
    %3127 = vmatpush2.bf16.msra.mxu0 %v1882
    %3128 = vmatprep.subr.bf16.mxu0 %v1875
    %3129 = vmatpush2.bf16.msra.mxu0 %v1874
    %3130 = vmatprep.subr.bf16.mxu0 %v1867
    %3131 = vmatpush2.bf16.msra.mxu0 %v1866
    %3132 = vmatprep.mubr.bf16.mxu0 %v180
    %3133 = vmatmul.mubr.bf16.gmra.mxu0 %v179
    %v3134 = vpop.f32.mrf.mxu0
    %v3135 = vadd.f32 %v607, %v3134
    %v3136 = vpop.f32.mrf.mxu0
    %v3137 = vadd.f32 %v611, %v3136
    %v3138 = vpop.f32.mrf.mxu0
    %v3139 = vadd.f32 %v607, %v3138
    %v3140 = vpop.f32.mrf.mxu0
    %v3141 = vadd.f32 %v611, %v3140
    %3142 = vdwg.mxu0
    %3143 = vmatprep.subr.bf16.mxu0 %v1987
    %3144 = vmatpush1.bf16.msra.mxu0 %v1986
    %3145 = vmatprep.subr.bf16.mxu0 %v1979
    %3146 = vmatpush1.bf16.msra.mxu0 %v1978
    %3147 = vmatprep.subr.bf16.mxu0 %v1971
    %3148 = vmatpush1.bf16.msra.mxu0 %v1970
    %3149 = vmatprep.subr.bf16.mxu0 %v1963
    %3150 = vmatpush1.bf16.msra.mxu0 %v1962
    %3151 = vmatprep.subr.bf16.mxu0 %v1955
    %3152 = vmatpush1.bf16.msra.mxu0 %v1954
    %3153 = vmatprep.subr.bf16.mxu0 %v1947
    %3154 = vmatpush1.bf16.msra.mxu0 %v1946
    %3155 = vmatprep.subr.bf16.mxu0 %v1939
    %3156 = vmatpush1.bf16.msra.mxu0 %v1938
    %3157 = vmatprep.subr.bf16.mxu0 %v1931
    %3158 = vmatpush1.bf16.msra.mxu0 %v1930
    %3159 = vmatprep.subr.bf16.mxu0 %v2051
    %3160 = vmatpush2.bf16.msra.mxu0 %v2050
    %3161 = vmatprep.subr.bf16.mxu0 %v2043
    %3162 = vmatpush2.bf16.msra.mxu0 %v2042
    %3163 = vmatprep.subr.bf16.mxu0 %v2035
    %3164 = vmatpush2.bf16.msra.mxu0 %v2034
    %3165 = vmatprep.subr.bf16.mxu0 %v2027
    %3166 = vmatpush2.bf16.msra.mxu0 %v2026
    %3167 = vmatprep.subr.bf16.mxu0 %v2019
    %3168 = vmatpush2.bf16.msra.mxu0 %v2018
    %3169 = vmatprep.subr.bf16.mxu0 %v2011
    %3170 = vmatpush2.bf16.msra.mxu0 %v2010
    %3171 = vmatprep.subr.bf16.mxu0 %v2003
    %3172 = vmatpush2.bf16.msra.mxu0 %v2002
    %3173 = vmatprep.subr.bf16.mxu0 %v1995
    %3174 = vmatpush2.bf16.msra.mxu0 %v1994
    %3175 = vmatprep.mubr.bf16.mxu0 %v182
    %3176 = vmatmul.mubr.bf16.gmra.mxu0 %v181
    %v3177 = vpop.f32.mrf.mxu0
    %v3178 = vadd.f32 %v3135, %v3177
    %v3179 = vpop.f32.mrf.mxu0
    %v3180 = vadd.f32 %v3137, %v3179
    %v3181 = vpop.f32.mrf.mxu0
    %v3182 = vadd.f32 %v3139, %v3181
    %v3183 = vpop.f32.mrf.mxu0
    %v3184 = vadd.f32 %v3141, %v3183
    %3185 = vdwg.mxu0
    %3186 = vmatprep.subr.bf16.mxu0 %v2115
    %3187 = vmatpush1.bf16.msra.mxu0 %v2114
    %3188 = vmatprep.subr.bf16.mxu0 %v2107
    %3189 = vmatpush1.bf16.msra.mxu0 %v2106
    %3190 = vmatprep.subr.bf16.mxu0 %v2099
    %3191 = vmatpush1.bf16.msra.mxu0 %v2098
    %3192 = vmatprep.subr.bf16.mxu0 %v2091
    %3193 = vmatpush1.bf16.msra.mxu0 %v2090
    %3194 = vmatprep.subr.bf16.mxu0 %v2083
    %3195 = vmatpush1.bf16.msra.mxu0 %v2082
    %3196 = vmatprep.subr.bf16.mxu0 %v2075
    %3197 = vmatpush1.bf16.msra.mxu0 %v2074
    %3198 = vmatprep.subr.bf16.mxu0 %v2067
    %3199 = vmatpush1.bf16.msra.mxu0 %v2066
    %3200 = vmatprep.subr.bf16.mxu0 %v2059
    %3201 = vmatpush1.bf16.msra.mxu0 %v2058
    %3202 = vmatprep.subr.bf16.mxu0 %v2179
    %3203 = vmatpush2.bf16.msra.mxu0 %v2178
    %3204 = vmatprep.subr.bf16.mxu0 %v2171
    %3205 = vmatpush2.bf16.msra.mxu0 %v2170
    %3206 = vmatprep.subr.bf16.mxu0 %v2163
    %3207 = vmatpush2.bf16.msra.mxu0 %v2162
    %3208 = vmatprep.subr.bf16.mxu0 %v2155
    %3209 = vmatpush2.bf16.msra.mxu0 %v2154
    %3210 = vmatprep.subr.bf16.mxu0 %v2147
    %3211 = vmatpush2.bf16.msra.mxu0 %v2146
    %3212 = vmatprep.subr.bf16.mxu0 %v2139
    %3213 = vmatpush2.bf16.msra.mxu0 %v2138
    %3214 = vmatprep.subr.bf16.mxu0 %v2131
    %3215 = vmatpush2.bf16.msra.mxu0 %v2130
    %3216 = vmatprep.subr.bf16.mxu0 %v2123
    %3217 = vmatpush2.bf16.msra.mxu0 %v2122
    %3218 = vmatprep.mubr.bf16.mxu0 %v184
    %3219 = vmatmul.mubr.bf16.gmra.mxu0 %v183
    %v3220 = vpop.f32.mrf.mxu0
    %v3221 = vadd.f32 %v3178, %v3220
    %v3222 = vpop.f32.mrf.mxu0
    %v3223 = vadd.f32 %v3180, %v3222
    %v3224 = vpop.f32.mrf.mxu0
    %v3225 = vadd.f32 %v3182, %v3224
    %v3226 = vpop.f32.mrf.mxu0
    %v3227 = vadd.f32 %v3184, %v3226
    %3228 = vdwg.mxu0
    %3229 = vmatprep.subr.bf16.mxu0 0
    %3230 = vmatpush1.bf16.msra.mxu0 0
    %3231 = vmatprep.subr.bf16.mxu0 0
    %3232 = vmatpush1.bf16.msra.mxu0 0
    %3233 = vmatprep.subr.bf16.mxu0 0
    %3234 = vmatpush1.bf16.msra.mxu0 0
    %3235 = vmatprep.subr.bf16.mxu0 0
    %3236 = vmatpush1.bf16.msra.mxu0 0
    %3237 = vmatprep.subr.bf16.mxu0 0
    %3238 = vmatpush1.bf16.msra.mxu0 0
    %3239 = vmatprep.subr.bf16.mxu0 0
    %3240 = vmatpush1.bf16.msra.mxu0 0
    %3241 = vmatprep.subr.bf16.mxu0 0
    %3242 = vmatpush1.bf16.msra.mxu0 0
    %3243 = vmatprep.subr.bf16.mxu0 %v2187
    %3244 = vmatpush1.bf16.msra.mxu0 %v2186
    %3245 = vmatprep.subr.bf16.mxu0 0
    %3246 = vmatpush2.bf16.msra.mxu0 0
    %3247 = vmatprep.subr.bf16.mxu0 0
    %3248 = vmatpush2.bf16.msra.mxu0 0
    %3249 = vmatprep.subr.bf16.mxu0 0
    %3250 = vmatpush2.bf16.msra.mxu0 0
    %3251 = vmatprep.subr.bf16.mxu0 0
    %3252 = vmatpush2.bf16.msra.mxu0 0
    %3253 = vmatprep.subr.bf16.mxu0 0
    %3254 = vmatpush2.bf16.msra.mxu0 0
    %3255 = vmatprep.subr.bf16.mxu0 0
    %3256 = vmatpush2.bf16.msra.mxu0 0
    %3257 = vmatprep.subr.bf16.mxu0 0
    %3258 = vmatpush2.bf16.msra.mxu0 0
    %3259 = vmatprep.subr.bf16.mxu0 0
    %3260 = vmatpush2.bf16.msra.mxu0 0
    %3261 = vmatprep.mubr.bf16.mxu0 0
    %3262 = vmatmul.mubr.bf16.gmra.mxu0 %v2582
    %v3263 = vpop.f32.mrf.mxu0
    %v3264 = vadd.f32 %v3221, %v3263
    %v3265 = vpop.f32.mrf.mxu0
    %v3266 = vadd.f32 %v3223, %v3265
    %v3267 = vpop.f32.mrf.mxu0
    %v3268 = vadd.f32 %v3225, %v3267
    %v3269 = vpop.f32.mrf.mxu0
    %v3270 = vadd.f32 %v3227, %v3269
    %3271 = vdwg.mxu0
    %v3272 = vmax.f32 %v2748, 0.0
    %v3273 = vmax.f32 %v2750, 0.0
    %v3274 = vmax.f32 %v2920, 0.0
    %v3275 = vmax.f32 %v2922, 0.0
    %v3276 = vmax.f32 %v3092, 0.0
    %v3277 = vmax.f32 %v3094, 0.0
    %v3278 = vmax.f32 %v3264, 0.0
    %v3279 = vmax.f32 %v3266, 0.0
    %v3280 = vmax.f32 %v2752, 0.0
    %v3281 = vmax.f32 %v2754, 0.0
    %v3282 = vmax.f32 %v2924, 0.0
    %v3283 = vmax.f32 %v2926, 0.0
    %v3284 = vmax.f32 %v3096, 0.0
    %v3285 = vmax.f32 %v3098, 0.0
    %v3286 = vmax.f32 %v3268, 0.0
    %v3287 = vmax.f32 %v3270, 0.0
    %v3288 = vpack.c.bf16 %v3280, %v3272
    %v3289 = vpack.c.bf16 %v3281, %v3273
    %v3290 = vpack.c.bf16 %v3282, %v3274
    %v3291 = vpack.c.bf16 %v3283, %v3275
    %v3292 = vpack.c.bf16 %v3284, %v3276
    %v3293 = vpack.c.bf16 %v3285, %v3277
    %v3294 = vpack.c.bf16 %v3286, %v3278
    %v3295 = vpack.c.bf16 %v3287, %v3279
    %v3296 = vld [vmem:[#allocation6] sm:$0xff]
    %v3297 = vld [vmem:[#allocation6 + $0x8] sm:$0xff]
    %v3298 = vld [vmem:[#allocation6 + $0x10] sm:$0xff]
    %v3299 = vld [vmem:[#allocation6 + $0x18] sm:$0xff]
    %v3300 = vld [vmem:[#allocation6 + $0x20] sm:$0xff]
    %v3301 = vld [vmem:[#allocation6 + $0x28] sm:$0xff]
    %v3302 = vld [vmem:[#allocation6 + $0x30] sm:$0xff]
    %v3303 = vld [vmem:[#allocation6 + $0x38] sm:$0xff]
    %v3304 = vld [vmem:[#allocation6 + $0x40] sm:$0xff]
    %v3305 = vld [vmem:[#allocation6 + $0x48] sm:$0xff]
    %v3306 = vld [vmem:[#allocation6 + $0x50] sm:$0xff]
    %v3307 = vld [vmem:[#allocation6 + $0x58] sm:$0xff]
    %v3308 = vld [vmem:[#allocation6 + $0x60] sm:$0xff]
    %v3309 = vld [vmem:[#allocation6 + $0x68] sm:$0xff]
    %v3310 = vld [vmem:[#allocation6 + $0x70] sm:$0xff]
    %v3311 = vld [vmem:[#allocation6 + $0x78] sm:$0xff]
    %v3312 = vld [vmem:[#allocation6 + $0x80] sm:$0xff]
    %v3313 = vld [vmem:[#allocation6 + $0x88] sm:$0xff]
    %v3314 = vld [vmem:[#allocation6 + $0x90] sm:$0xff]
    %v3315 = vld [vmem:[#allocation6 + $0x98] sm:$0xff]
    %v3316 = vld [vmem:[#allocation6 + $0xa0] sm:$0xff]
    %v3317 = vld [vmem:[#allocation6 + $0xa8] sm:$0xff]
    %v3318 = vld [vmem:[#allocation6 + $0xb0] sm:$0xff]
    %v3319 = vld [vmem:[#allocation6 + $0xb8] sm:$0xff]
    %v3320 = vld [vmem:[#allocation6 + $0xc0] sm:$0xff]
    %v3321 = vld [vmem:[#allocation6 + $0xc8] sm:$0xff]
    %v3322 = vld [vmem:[#allocation6 + $0xd0] sm:$0xff]
    %v3323 = vld [vmem:[#allocation6 + $0xd8] sm:$0xff]
    %v3324 = vld [vmem:[#allocation6 + $0xe0] sm:$0xff]
    %v3325 = vld [vmem:[#allocation6 + $0xe8] sm:$0xff]
    %v3326 = vld [vmem:[#allocation6 + $0xf0] sm:$0xff]
    %v3327 = vld [vmem:[#allocation6 + $0xf8] sm:$0xff]
    %v3328 = vld [vmem:[#allocation6 + $0x100] sm:$0xff]
    %v3329 = vld [vmem:[#allocation6 + $0x108] sm:$0xff]
    %v3330 = vld [vmem:[#allocation6 + $0x110] sm:$0xff]
    %v3331 = vld [vmem:[#allocation6 + $0x118] sm:$0xff]
    %v3332 = vld [vmem:[#allocation6 + $0x120] sm:$0xff]
    %v3333 = vld [vmem:[#allocation6 + $0x128] sm:$0xff]
    %v3334 = vld [vmem:[#allocation6 + $0x130] sm:$0xff]
    %v3335 = vld [vmem:[#allocation6 + $0x138] sm:$0xff]
    %v3336 = vld [vmem:[#allocation6 + $0x140] sm:$0xff]
    %v3337 = vld [vmem:[#allocation6 + $0x148] sm:$0xff]
    %v3338 = vld [vmem:[#allocation6 + $0x150] sm:$0xff]
    %v3339 = vld [vmem:[#allocation6 + $0x158] sm:$0xff]
    %v3340 = vld [vmem:[#allocation6 + $0x160] sm:$0xff]
    %v3341 = vld [vmem:[#allocation6 + $0x168] sm:$0xff]
    %v3342 = vld [vmem:[#allocation6 + $0x170] sm:$0xff]
    %v3343 = vld [vmem:[#allocation6 + $0x178] sm:$0xff]
    %v3344 = vld [vmem:[#allocation6 + $0x180] sm:$0xff]
    %v3345 = vld [vmem:[#allocation6 + $0x188] sm:$0xff]
    %v3346 = vld [vmem:[#allocation6 + $0x190] sm:$0xff]
    %v3347 = vld [vmem:[#allocation6 + $0x198] sm:$0xff]
    %v3348 = vld [vmem:[#allocation6 + $0x1a0] sm:$0xff]
    %v3349 = vld [vmem:[#allocation6 + $0x1a8] sm:$0xff]
    %v3350 = vld [vmem:[#allocation6 + $0x1b0] sm:$0xff]
    %v3351 = vld [vmem:[#allocation6 + $0x1b8] sm:$0xff]
    %v3352 = vld [vmem:[#allocation6 + $0x1c0] sm:$0xff]
    %v3353 = vld [vmem:[#allocation6 + $0x1c8] sm:$0xff]
    %v3354 = vld [vmem:[#allocation6 + $0x1d0] sm:$0xff]
    %v3355 = vld [vmem:[#allocation6 + $0x1d8] sm:$0xff]
    %v3356 = vld [vmem:[#allocation6 + $0x1e0] sm:$0xff]
    %v3357 = vld [vmem:[#allocation6 + $0x1e8] sm:$0xff]
    %v3358 = vld [vmem:[#allocation6 + $0x1f0] sm:$0xff]
    %v3359 = vld [vmem:[#allocation6 + $0x1f8] sm:$0xff]
    %v3360 = vld [vmem:[#allocation6 + $0x200] sm:$0xff]
    %v3361 = vld [vmem:[#allocation6 + $0x208] sm:$0xff]
    %v3362 = vld [vmem:[#allocation6 + $0x210] sm:$0xff]
    %v3363 = vld [vmem:[#allocation6 + $0x218] sm:$0xff]
    %v3364 = vld [vmem:[#allocation6 + $0x220] sm:$0xff]
    %v3365 = vld [vmem:[#allocation6 + $0x228] sm:$0xff]
    %v3366 = vld [vmem:[#allocation6 + $0x230] sm:$0xff]
    %v3367 = vld [vmem:[#allocation6 + $0x238] sm:$0xff]
    %v3368 = vld [vmem:[#allocation6 + $0x240] sm:$0xff]
    %v3369 = vld [vmem:[#allocation6 + $0x248] sm:$0xff]
    %v3370 = vld [vmem:[#allocation6 + $0x250] sm:$0xff]
    %v3371 = vld [vmem:[#allocation6 + $0x258] sm:$0xff]
    %v3372 = vld [vmem:[#allocation6 + $0x260] sm:$0xff]
    %v3373 = vld [vmem:[#allocation6 + $0x268] sm:$0xff]
    %v3374 = vld [vmem:[#allocation6 + $0x270] sm:$0xff]
    %v3375 = vld [vmem:[#allocation6 + $0x278] sm:$0xff]
    %v3376 = vld [vmem:[#allocation6 + $0x280] sm:$0xff]
    %v3377 = vld [vmem:[#allocation6 + $0x288] sm:$0xff]
    %v3378 = vld [vmem:[#allocation6 + $0x290] sm:$0xff]
    %v3379 = vld [vmem:[#allocation6 + $0x298] sm:$0xff]
    %v3380 = vld [vmem:[#allocation6 + $0x2a0] sm:$0xff]
    %v3381 = vld [vmem:[#allocation6 + $0x2a8] sm:$0xff]
    %v3382 = vld [vmem:[#allocation6 + $0x2b0] sm:$0xff]
    %v3383 = vld [vmem:[#allocation6 + $0x2b8] sm:$0xff]
    %v3384 = vld [vmem:[#allocation6 + $0x2c0] sm:$0xff]
    %v3385 = vld [vmem:[#allocation6 + $0x2c8] sm:$0xff]
    %v3386 = vld [vmem:[#allocation6 + $0x2d0] sm:$0xff]
    %v3387 = vld [vmem:[#allocation6 + $0x2d8] sm:$0xff]
    %v3388 = vld [vmem:[#allocation6 + $0x2e0] sm:$0xff]
    %v3389 = vld [vmem:[#allocation6 + $0x2e8] sm:$0xff]
    %v3390 = vld [vmem:[#allocation6 + $0x2f0] sm:$0xff]
    %v3391 = vld [vmem:[#allocation6 + $0x2f8] sm:$0xff]
    %v3392 = vld [vmem:[#allocation6 + $0x300] sm:$0xff]
    %v3393 = vld [vmem:[#allocation6 + $0x308] sm:$0xff]
    %v3394 = vld [vmem:[#allocation6 + $0x310] sm:$0xff]
    %v3395 = vld [vmem:[#allocation6 + $0x318] sm:$0xff]
    %v3396 = vld [vmem:[#allocation6 + $0x320] sm:$0xff]
    %v3397 = vld [vmem:[#allocation6 + $0x328] sm:$0xff]
    %v3398 = vld [vmem:[#allocation6 + $0x330] sm:$0xff]
    %v3399 = vld [vmem:[#allocation6 + $0x338] sm:$0xff]
    %v3400 = vld [vmem:[#allocation6 + $0x340] sm:$0xff]
    %v3401 = vld [vmem:[#allocation6 + $0x348] sm:$0xff]
    %v3402 = vld [vmem:[#allocation6 + $0x350] sm:$0xff]
    %v3403 = vld [vmem:[#allocation6 + $0x358] sm:$0xff]
    %v3404 = vld [vmem:[#allocation6 + $0x360] sm:$0xff]
    %v3405 = vld [vmem:[#allocation6 + $0x368] sm:$0xff]
    %v3406 = vld [vmem:[#allocation6 + $0x370] sm:$0xff]
    %v3407 = vld [vmem:[#allocation6 + $0x378] sm:$0xff]
    %v3408 = vld [vmem:[#allocation6 + $0x380] sm:$0xff]
    %v3409 = vld [vmem:[#allocation6 + $0x388] sm:$0xff]
    %v3410 = vld [vmem:[#allocation6 + $0x390] sm:$0xff]
    %v3411 = vld [vmem:[#allocation6 + $0x398] sm:$0xff]
    %v3412 = vld [vmem:[#allocation6 + $0x3a0] sm:$0xff]
    %v3413 = vld [vmem:[#allocation6 + $0x3a8] sm:$0xff]
    %v3414 = vld [vmem:[#allocation6 + $0x3b0] sm:$0xff]
    %v3415 = vld [vmem:[#allocation6 + $0x3b8] sm:$0xff]
    %v3416 = vld [vmem:[#allocation6 + $0x3c0] sm:$0xff]
    %v3417 = vld [vmem:[#allocation6 + $0x3c8] sm:$0xff]
    %v3418 = vld [vmem:[#allocation6 + $0x3d0] sm:$0xff]
    %v3419 = vld [vmem:[#allocation6 + $0x3d8] sm:$0xff]
    %v3420 = vld [vmem:[#allocation6 + $0x3e0] sm:$0xff]
    %v3421 = vld [vmem:[#allocation6 + $0x3e8] sm:$0xff]
    %v3422 = vld [vmem:[#allocation6 + $0x3f0] sm:$0xff]
    %v3423 = vld [vmem:[#allocation6 + $0x3f8] sm:$0xff]
    %v3424 = vld [vmem:[#allocation6 + $0x400] sm:$0xff]
    %v3425 = vld [vmem:[#allocation6 + $0x408] sm:$0xff]
    %v3426 = vld [vmem:[#allocation6 + $0x410] sm:$0xff]
    %v3427 = vld [vmem:[#allocation6 + $0x418] sm:$0xff]
    %v3428 = vld [vmem:[#allocation6 + $0x420] sm:$0xff]
    %v3429 = vld [vmem:[#allocation6 + $0x428] sm:$0xff]
    %v3430 = vld [vmem:[#allocation6 + $0x430] sm:$0xff]
    %v3431 = vld [vmem:[#allocation6 + $0x438] sm:$0xff]
    %v3432 = vld [vmem:[#allocation6 + $0x440] sm:$0xff]
    %v3433 = vld [vmem:[#allocation6 + $0x448] sm:$0xff]
    %v3434 = vld [vmem:[#allocation6 + $0x450] sm:$0xff]
    %v3435 = vld [vmem:[#allocation6 + $0x458] sm:$0xff]
    %v3436 = vld [vmem:[#allocation6 + $0x460] sm:$0xff]
    %v3437 = vld [vmem:[#allocation6 + $0x468] sm:$0xff]
    %v3438 = vld [vmem:[#allocation6 + $0x470] sm:$0xff]
    %v3439 = vld [vmem:[#allocation6 + $0x478] sm:$0xff]
    %v3440 = vld [vmem:[#allocation6 + $0x480] sm:$0xff]
    %v3441 = vld [vmem:[#allocation6 + $0x488] sm:$0xff]
    %v3442 = vld [vmem:[#allocation6 + $0x490] sm:$0xff]
    %v3443 = vld [vmem:[#allocation6 + $0x498] sm:$0xff]
    %v3444 = vld [vmem:[#allocation6 + $0x4a0] sm:$0xff]
    %v3445 = vld [vmem:[#allocation6 + $0x4a8] sm:$0xff]
    %v3446 = vld [vmem:[#allocation6 + $0x4b0] sm:$0xff]
    %v3447 = vld [vmem:[#allocation6 + $0x4b8] sm:$0xff]
    %v3448 = vld [vmem:[#allocation6 + $0x4c0] sm:$0xff]
    %v3449 = vld [vmem:[#allocation6 + $0x4c8] sm:$0xff]
    %v3450 = vld [vmem:[#allocation6 + $0x4d0] sm:$0xff]
    %v3451 = vld [vmem:[#allocation6 + $0x4d8] sm:$0xff]
    %v3452 = vld [vmem:[#allocation6 + $0x4e0] sm:$0xff]
    %v3453 = vld [vmem:[#allocation6 + $0x4e8] sm:$0xff]
    %v3454 = vld [vmem:[#allocation6 + $0x4f0] sm:$0xff]
    %v3455 = vld [vmem:[#allocation6 + $0x4f8] sm:$0xff]
    %v3456 = vld [vmem:[#allocation6 + $0x500] sm:$0xff]
    %v3457 = vld [vmem:[#allocation6 + $0x508] sm:$0xff]
    %v3458 = vld [vmem:[#allocation6 + $0x510] sm:$0xff]
    %v3459 = vld [vmem:[#allocation6 + $0x518] sm:$0xff]
    %v3460 = vld [vmem:[#allocation6 + $0x520] sm:$0xff]
    %v3461 = vld [vmem:[#allocation6 + $0x528] sm:$0xff]
    %v3462 = vld [vmem:[#allocation6 + $0x530] sm:$0xff]
    %v3463 = vld [vmem:[#allocation6 + $0x538] sm:$0xff]
    %v3464 = vld [vmem:[#allocation6 + $0x540] sm:$0xff]
    %v3465 = vld [vmem:[#allocation6 + $0x548] sm:$0xff]
    %v3466 = vld [vmem:[#allocation6 + $0x550] sm:$0xff]
    %v3467 = vld [vmem:[#allocation6 + $0x558] sm:$0xff]
    %v3468 = vld [vmem:[#allocation6 + $0x560] sm:$0xff]
    %v3469 = vld [vmem:[#allocation6 + $0x568] sm:$0xff]
    %v3470 = vld [vmem:[#allocation6 + $0x570] sm:$0xff]
    %v3471 = vld [vmem:[#allocation6 + $0x578] sm:$0xff]
    %v3472 = vld [vmem:[#allocation6 + $0x580] sm:$0xff]
    %v3473 = vld [vmem:[#allocation6 + $0x588] sm:$0xff]
    %v3474 = vld [vmem:[#allocation6 + $0x590] sm:$0xff]
    %v3475 = vld [vmem:[#allocation6 + $0x598] sm:$0xff]
    %v3476 = vld [vmem:[#allocation6 + $0x5a0] sm:$0xff]
    %v3477 = vld [vmem:[#allocation6 + $0x5a8] sm:$0xff]
    %v3478 = vld [vmem:[#allocation6 + $0x5b0] sm:$0xff]
    %v3479 = vld [vmem:[#allocation6 + $0x5b8] sm:$0xff]
    %v3480 = vld [vmem:[#allocation6 + $0x5c0] sm:$0xff]
    %v3481 = vld [vmem:[#allocation6 + $0x5c8] sm:$0xff]
    %v3482 = vld [vmem:[#allocation6 + $0x5d0] sm:$0xff]
    %v3483 = vld [vmem:[#allocation6 + $0x5d8] sm:$0xff]
    %v3484 = vld [vmem:[#allocation6 + $0x5e0] sm:$0xff]
    %v3485 = vld [vmem:[#allocation6 + $0x5e8] sm:$0xff]
    %v3486 = vld [vmem:[#allocation6 + $0x5f0] sm:$0xff]
    %v3487 = vld [vmem:[#allocation6 + $0x5f8] sm:$0xff]
    %v3488 = vld [vmem:[#allocation6 + $0x600] sm:$0xff]
    %v3489 = vld [vmem:[#allocation6 + $0x608] sm:$0xff]
    %v3490 = vld [vmem:[#allocation6 + $0x610] sm:$0xff]
    %v3491 = vld [vmem:[#allocation6 + $0x618] sm:$0xff]
    %v3492 = vld [vmem:[#allocation6 + $0x620] sm:$0xff]
    %v3493 = vld [vmem:[#allocation6 + $0x628] sm:$0xff]
    %v3494 = vld [vmem:[#allocation6 + $0x630] sm:$0xff]
    %v3495 = vld [vmem:[#allocation6 + $0x638] sm:$0xff]
    %v3496 = vld [vmem:[#allocation6 + $0x640] sm:$0xff]
    %v3497 = vld [vmem:[#allocation6 + $0x648] sm:$0xff]
    %v3498 = vld [vmem:[#allocation6 + $0x650] sm:$0xff]
    %v3499 = vld [vmem:[#allocation6 + $0x658] sm:$0xff]
    %v3500 = vld [vmem:[#allocation6 + $0x660] sm:$0xff]
    %v3501 = vld [vmem:[#allocation6 + $0x668] sm:$0xff]
    %v3502 = vld [vmem:[#allocation6 + $0x670] sm:$0xff]
    %v3503 = vld [vmem:[#allocation6 + $0x678] sm:$0xff]
    %v3504 = vld [vmem:[#allocation6 + $0x680] sm:$0xff]
    %v3505 = vld [vmem:[#allocation6 + $0x688] sm:$0xff]
    %v3506 = vld [vmem:[#allocation6 + $0x690] sm:$0xff]
    %v3507 = vld [vmem:[#allocation6 + $0x698] sm:$0xff]
    %v3508 = vld [vmem:[#allocation6 + $0x6a0] sm:$0xff]
    %v3509 = vld [vmem:[#allocation6 + $0x6a8] sm:$0xff]
    %v3510 = vld [vmem:[#allocation6 + $0x6b0] sm:$0xff]
    %v3511 = vld [vmem:[#allocation6 + $0x6b8] sm:$0xff]
    %v3512 = vld [vmem:[#allocation6 + $0x6c0] sm:$0xff]
    %v3513 = vld [vmem:[#allocation6 + $0x6c8] sm:$0xff]
    %v3514 = vld [vmem:[#allocation6 + $0x6d0] sm:$0xff]
    %v3515 = vld [vmem:[#allocation6 + $0x6d8] sm:$0xff]
    %v3516 = vld [vmem:[#allocation6 + $0x6e0] sm:$0xff]
    %v3517 = vld [vmem:[#allocation6 + $0x6e8] sm:$0xff]
    %v3518 = vld [vmem:[#allocation6 + $0x6f0] sm:$0xff]
    %v3519 = vld [vmem:[#allocation6 + $0x6f8] sm:$0xff]
    %v3520 = vld [vmem:[#allocation6 + $0x700] sm:$0xff]
    %v3521 = vld [vmem:[#allocation6 + $0x708] sm:$0xff]
    %v3522 = vld [vmem:[#allocation6 + $0x710] sm:$0xff]
    %v3523 = vld [vmem:[#allocation6 + $0x718] sm:$0xff]
    %v3524 = vld [vmem:[#allocation6 + $0x720] sm:$0xff]
    %v3525 = vld [vmem:[#allocation6 + $0x728] sm:$0xff]
    %v3526 = vld [vmem:[#allocation6 + $0x730] sm:$0xff]
    %v3527 = vld [vmem:[#allocation6 + $0x738] sm:$0xff]
    %v3528 = vld [vmem:[#allocation6 + $0x740] sm:$0xff]
    %v3529 = vld [vmem:[#allocation6 + $0x748] sm:$0xff]
    %v3530 = vld [vmem:[#allocation6 + $0x750] sm:$0xff]
    %v3531 = vld [vmem:[#allocation6 + $0x758] sm:$0xff]
    %v3532 = vld [vmem:[#allocation6 + $0x760] sm:$0xff]
    %v3533 = vld [vmem:[#allocation6 + $0x768] sm:$0xff]
    %v3534 = vld [vmem:[#allocation6 + $0x770] sm:$0xff]
    %v3535 = vld [vmem:[#allocation6 + $0x778] sm:$0xff]
    %v3536 = vld [vmem:[#allocation6 + $0x780] sm:$0xff]
    %v3537 = vld [vmem:[#allocation6 + $0x788] sm:$0xff]
    %v3538 = vld [vmem:[#allocation6 + $0x790] sm:$0xff]
    %v3539 = vld [vmem:[#allocation6 + $0x798] sm:$0xff]
    %v3540 = vld [vmem:[#allocation6 + $0x7a0] sm:$0xff]
    %v3541 = vld [vmem:[#allocation6 + $0x7a8] sm:$0xff]
    %v3542 = vld [vmem:[#allocation6 + $0x7b0] sm:$0xff]
    %v3543 = vld [vmem:[#allocation6 + $0x7b8] sm:$0xff]
    %v3544 = vld [vmem:[#allocation6 + $0x7c0] sm:$0xff]
    %v3545 = vld [vmem:[#allocation6 + $0x7c8] sm:$0xff]
    %v3546 = vld [vmem:[#allocation6 + $0x7d0] sm:$0xff]
    %v3547 = vld [vmem:[#allocation6 + $0x7d8] sm:$0xff]
    %v3548 = vld [vmem:[#allocation6 + $0x7e0] sm:$0xff]
    %v3549 = vld [vmem:[#allocation6 + $0x7e8] sm:$0xff]
    %v3550 = vld [vmem:[#allocation6 + $0x7f0] sm:$0xff]
    %v3551 = vld [vmem:[#allocation6 + $0x7f8] sm:$0xff]
    %v3552 = vld [vmem:[#allocation7] sm:$0xf]
    %v3554 = vlaneseq
    %v3555 = vshrl.u32 %v3554, 7
    %v3556 = vsub.s32 0, %v3555
    %v3557 = vrot.slane %v3552, %v3556
    %v3558 = vlaneseq
    %v3559 = vshrl.u32 %v3558, 7
    %v3560 = vsub.s32 1, %v3559
    %v3561 = vrot.slane %v3552, %v3560
    %v3562 = vlaneseq
    %v3563 = vshrl.u32 %v3562, 7
    %v3564 = vsub.s32 2, %v3563
    %v3565 = vrot.slane %v3552, %v3564
    %v3566 = vlaneseq
    %v3567 = vshrl.u32 %v3566, 7
    %v3568 = vsub.s32 3, %v3567
    %v3569 = vrot.slane %v3552, %v3568
    %v3830 = vunpack.c.l.b16 %v3296
    %v3831 = vunpack.c.h.b16 %v3296
    %v3832 = vunpack.c.l.b16 %v3297
    %v3833 = vunpack.c.h.b16 %v3297
    %v3834 = vunpack.c.l.b16 %v3298
    %v3835 = vunpack.c.h.b16 %v3298
    %v3836 = vunpack.c.l.b16 %v3299
    %v3837 = vunpack.c.h.b16 %v3299
    %v3838 = vunpack.c.l.b16 %v3300
    %v3839 = vunpack.c.h.b16 %v3300
    %v3840 = vunpack.c.l.b16 %v3301
    %v3841 = vunpack.c.h.b16 %v3301
    %v3842 = vunpack.c.l.b16 %v3302
    %v3843 = vunpack.c.h.b16 %v3302
    %v3844 = vunpack.c.l.b16 %v3303
    %v3845 = vunpack.c.h.b16 %v3303
    %v3846 = vunpack.c.l.b16 %v3304
    %v3847 = vunpack.c.h.b16 %v3304
    %v3848 = vunpack.c.l.b16 %v3305
    %v3849 = vunpack.c.h.b16 %v3305
    %v3850 = vunpack.c.l.b16 %v3306
    %v3851 = vunpack.c.h.b16 %v3306
    %v3852 = vunpack.c.l.b16 %v3307
    %v3853 = vunpack.c.h.b16 %v3307
    %v3854 = vunpack.c.l.b16 %v3308
    %v3855 = vunpack.c.h.b16 %v3308
    %v3856 = vunpack.c.l.b16 %v3309
    %v3857 = vunpack.c.h.b16 %v3309
    %v3858 = vunpack.c.l.b16 %v3310
    %v3859 = vunpack.c.h.b16 %v3310
    %v3860 = vunpack.c.l.b16 %v3311
    %v3861 = vunpack.c.h.b16 %v3311
    %v3862 = vunpack.c.l.b16 %v3312
    %v3863 = vunpack.c.h.b16 %v3312
    %v3864 = vunpack.c.l.b16 %v3313
    %v3865 = vunpack.c.h.b16 %v3313
    %v3866 = vunpack.c.l.b16 %v3314
    %v3867 = vunpack.c.h.b16 %v3314
    %v3868 = vunpack.c.l.b16 %v3315
    %v3869 = vunpack.c.h.b16 %v3315
    %v3870 = vunpack.c.l.b16 %v3316
    %v3871 = vunpack.c.h.b16 %v3316
    %v3872 = vunpack.c.l.b16 %v3317
    %v3873 = vunpack.c.h.b16 %v3317
    %v3874 = vunpack.c.l.b16 %v3318
    %v3875 = vunpack.c.h.b16 %v3318
    %v3876 = vunpack.c.l.b16 %v3319
    %v3877 = vunpack.c.h.b16 %v3319
    %v3878 = vunpack.c.l.b16 %v3320
    %v3879 = vunpack.c.h.b16 %v3320
    %v3880 = vunpack.c.l.b16 %v3321
    %v3881 = vunpack.c.h.b16 %v3321
    %v3882 = vunpack.c.l.b16 %v3322
    %v3883 = vunpack.c.h.b16 %v3322
    %v3884 = vunpack.c.l.b16 %v3323
    %v3885 = vunpack.c.h.b16 %v3323
    %v3886 = vunpack.c.l.b16 %v3324
    %v3887 = vunpack.c.h.b16 %v3324
    %v3888 = vunpack.c.l.b16 %v3325
    %v3889 = vunpack.c.h.b16 %v3325
    %v3890 = vunpack.c.l.b16 %v3326
    %v3891 = vunpack.c.h.b16 %v3326
    %v3892 = vunpack.c.l.b16 %v3327
    %v3893 = vunpack.c.h.b16 %v3327
    %v3894 = vunpack.c.l.b16 %v3328
    %v3895 = vunpack.c.h.b16 %v3328
    %v3896 = vunpack.c.l.b16 %v3329
    %v3897 = vunpack.c.h.b16 %v3329
    %v3898 = vunpack.c.l.b16 %v3330
    %v3899 = vunpack.c.h.b16 %v3330
    %v3900 = vunpack.c.l.b16 %v3331
    %v3901 = vunpack.c.h.b16 %v3331
    %v3902 = vunpack.c.l.b16 %v3332
    %v3903 = vunpack.c.h.b16 %v3332
    %v3904 = vunpack.c.l.b16 %v3333
    %v3905 = vunpack.c.h.b16 %v3333
    %v3906 = vunpack.c.l.b16 %v3334
    %v3907 = vunpack.c.h.b16 %v3334
    %v3908 = vunpack.c.l.b16 %v3335
    %v3909 = vunpack.c.h.b16 %v3335
    %v3910 = vunpack.c.l.b16 %v3336
    %v3911 = vunpack.c.h.b16 %v3336
    %v3912 = vunpack.c.l.b16 %v3337
    %v3913 = vunpack.c.h.b16 %v3337
    %v3914 = vunpack.c.l.b16 %v3338
    %v3915 = vunpack.c.h.b16 %v3338
    %v3916 = vunpack.c.l.b16 %v3339
    %v3917 = vunpack.c.h.b16 %v3339
    %v3918 = vunpack.c.l.b16 %v3340
    %v3919 = vunpack.c.h.b16 %v3340
    %v3920 = vunpack.c.l.b16 %v3341
    %v3921 = vunpack.c.h.b16 %v3341
    %v3922 = vunpack.c.l.b16 %v3342
    %v3923 = vunpack.c.h.b16 %v3342
    %v3924 = vunpack.c.l.b16 %v3343
    %v3925 = vunpack.c.h.b16 %v3343
    %v3926 = vunpack.c.l.b16 %v3344
    %v3927 = vunpack.c.h.b16 %v3344
    %v3928 = vunpack.c.l.b16 %v3345
    %v3929 = vunpack.c.h.b16 %v3345
    %v3930 = vunpack.c.l.b16 %v3346
    %v3931 = vunpack.c.h.b16 %v3346
    %v3932 = vunpack.c.l.b16 %v3347
    %v3933 = vunpack.c.h.b16 %v3347
    %v3934 = vunpack.c.l.b16 %v3348
    %v3935 = vunpack.c.h.b16 %v3348
    %v3936 = vunpack.c.l.b16 %v3349
    %v3937 = vunpack.c.h.b16 %v3349
    %v3938 = vunpack.c.l.b16 %v3350
    %v3939 = vunpack.c.h.b16 %v3350
    %v3940 = vunpack.c.l.b16 %v3351
    %v3941 = vunpack.c.h.b16 %v3351
    %v3942 = vunpack.c.l.b16 %v3352
    %v3943 = vunpack.c.h.b16 %v3352
    %v3944 = vunpack.c.l.b16 %v3353
    %v3945 = vunpack.c.h.b16 %v3353
    %v3946 = vunpack.c.l.b16 %v3354
    %v3947 = vunpack.c.h.b16 %v3354
    %v3948 = vunpack.c.l.b16 %v3355
    %v3949 = vunpack.c.h.b16 %v3355
    %v3950 = vunpack.c.l.b16 %v3356
    %v3951 = vunpack.c.h.b16 %v3356
    %v3952 = vunpack.c.l.b16 %v3357
    %v3953 = vunpack.c.h.b16 %v3357
    %v3954 = vunpack.c.l.b16 %v3358
    %v3955 = vunpack.c.h.b16 %v3358
    %v3956 = vunpack.c.l.b16 %v3359
    %v3957 = vunpack.c.h.b16 %v3359
    %v3958 = vunpack.c.l.b16 %v3360
    %v3959 = vunpack.c.h.b16 %v3360
    %v3960 = vunpack.c.l.b16 %v3361
    %v3961 = vunpack.c.h.b16 %v3361
    %v3962 = vunpack.c.l.b16 %v3362
    %v3963 = vunpack.c.h.b16 %v3362
    %v3964 = vunpack.c.l.b16 %v3363
    %v3965 = vunpack.c.h.b16 %v3363
    %v3966 = vunpack.c.l.b16 %v3364
    %v3967 = vunpack.c.h.b16 %v3364
    %v3968 = vunpack.c.l.b16 %v3365
    %v3969 = vunpack.c.h.b16 %v3365
    %v3970 = vunpack.c.l.b16 %v3366
    %v3971 = vunpack.c.h.b16 %v3366
    %v3972 = vunpack.c.l.b16 %v3367
    %v3973 = vunpack.c.h.b16 %v3367
    %v3974 = vunpack.c.l.b16 %v3368
    %v3975 = vunpack.c.h.b16 %v3368
    %v3976 = vunpack.c.l.b16 %v3369
    %v3977 = vunpack.c.h.b16 %v3369
    %v3978 = vunpack.c.l.b16 %v3370
    %v3979 = vunpack.c.h.b16 %v3370
    %v3980 = vunpack.c.l.b16 %v3371
    %v3981 = vunpack.c.h.b16 %v3371
    %v3982 = vunpack.c.l.b16 %v3372
    %v3983 = vunpack.c.h.b16 %v3372
    %v3984 = vunpack.c.l.b16 %v3373
    %v3985 = vunpack.c.h.b16 %v3373
    %v3986 = vunpack.c.l.b16 %v3374
    %v3987 = vunpack.c.h.b16 %v3374
    %v3988 = vunpack.c.l.b16 %v3375
    %v3989 = vunpack.c.h.b16 %v3375
    %v3990 = vunpack.c.l.b16 %v3376
    %v3991 = vunpack.c.h.b16 %v3376
    %v3992 = vunpack.c.l.b16 %v3377
    %v3993 = vunpack.c.h.b16 %v3377
    %v3994 = vunpack.c.l.b16 %v3378
    %v3995 = vunpack.c.h.b16 %v3378
    %v3996 = vunpack.c.l.b16 %v3379
    %v3997 = vunpack.c.h.b16 %v3379
    %v3998 = vunpack.c.l.b16 %v3380
    %v3999 = vunpack.c.h.b16 %v3380
    %v4000 = vunpack.c.l.b16 %v3381
    %v4001 = vunpack.c.h.b16 %v3381
    %v4002 = vunpack.c.l.b16 %v3382
    %v4003 = vunpack.c.h.b16 %v3382
    %v4004 = vunpack.c.l.b16 %v3383
    %v4005 = vunpack.c.h.b16 %v3383
    %v4006 = vunpack.c.l.b16 %v3384
    %v4007 = vunpack.c.h.b16 %v3384
    %v4008 = vunpack.c.l.b16 %v3385
    %v4009 = vunpack.c.h.b16 %v3385
    %v4010 = vunpack.c.l.b16 %v3386
    %v4011 = vunpack.c.h.b16 %v3386
    %v4012 = vunpack.c.l.b16 %v3387
    %v4013 = vunpack.c.h.b16 %v3387
    %v4014 = vunpack.c.l.b16 %v3388
    %v4015 = vunpack.c.h.b16 %v3388
    %v4016 = vunpack.c.l.b16 %v3389
    %v4017 = vunpack.c.h.b16 %v3389
    %v4018 = vunpack.c.l.b16 %v3390
    %v4019 = vunpack.c.h.b16 %v3390
    %v4020 = vunpack.c.l.b16 %v3391
    %v4021 = vunpack.c.h.b16 %v3391
    %v4022 = vunpack.c.l.b16 %v3392
    %v4023 = vunpack.c.h.b16 %v3392
    %v4024 = vunpack.c.l.b16 %v3393
    %v4025 = vunpack.c.h.b16 %v3393
    %v4026 = vunpack.c.l.b16 %v3394
    %v4027 = vunpack.c.h.b16 %v3394
    %v4028 = vunpack.c.l.b16 %v3395
    %v4029 = vunpack.c.h.b16 %v3395
    %v4030 = vunpack.c.l.b16 %v3396
    %v4031 = vunpack.c.h.b16 %v3396
    %v4032 = vunpack.c.l.b16 %v3397
    %v4033 = vunpack.c.h.b16 %v3397
    %v4034 = vunpack.c.l.b16 %v3398
    %v4035 = vunpack.c.h.b16 %v3398
    %v4036 = vunpack.c.l.b16 %v3399
    %v4037 = vunpack.c.h.b16 %v3399
    %v4038 = vunpack.c.l.b16 %v3400
    %v4039 = vunpack.c.h.b16 %v3400
    %v4040 = vunpack.c.l.b16 %v3401
    %v4041 = vunpack.c.h.b16 %v3401
    %v4042 = vunpack.c.l.b16 %v3402
    %v4043 = vunpack.c.h.b16 %v3402
    %v4044 = vunpack.c.l.b16 %v3403
    %v4045 = vunpack.c.h.b16 %v3403
    %v4046 = vunpack.c.l.b16 %v3404
    %v4047 = vunpack.c.h.b16 %v3404
    %v4048 = vunpack.c.l.b16 %v3405
    %v4049 = vunpack.c.h.b16 %v3405
    %v4050 = vunpack.c.l.b16 %v3406
    %v4051 = vunpack.c.h.b16 %v3406
    %v4052 = vunpack.c.l.b16 %v3407
    %v4053 = vunpack.c.h.b16 %v3407
    %v4054 = vunpack.c.l.b16 %v3408
    %v4055 = vunpack.c.h.b16 %v3408
    %v4056 = vunpack.c.l.b16 %v3409
    %v4057 = vunpack.c.h.b16 %v3409
    %v4058 = vunpack.c.l.b16 %v3410
    %v4059 = vunpack.c.h.b16 %v3410
    %v4060 = vunpack.c.l.b16 %v3411
    %v4061 = vunpack.c.h.b16 %v3411
    %v4062 = vunpack.c.l.b16 %v3412
    %v4063 = vunpack.c.h.b16 %v3412
    %v4064 = vunpack.c.l.b16 %v3413
    %v4065 = vunpack.c.h.b16 %v3413
    %v4066 = vunpack.c.l.b16 %v3414
    %v4067 = vunpack.c.h.b16 %v3414
    %v4068 = vunpack.c.l.b16 %v3415
    %v4069 = vunpack.c.h.b16 %v3415
    %v4070 = vunpack.c.l.b16 %v3416
    %v4071 = vunpack.c.h.b16 %v3416
    %v4072 = vunpack.c.l.b16 %v3417
    %v4073 = vunpack.c.h.b16 %v3417
    %v4074 = vunpack.c.l.b16 %v3418
    %v4075 = vunpack.c.h.b16 %v3418
    %v4076 = vunpack.c.l.b16 %v3419
    %v4077 = vunpack.c.h.b16 %v3419
    %v4078 = vunpack.c.l.b16 %v3420
    %v4079 = vunpack.c.h.b16 %v3420
    %v4080 = vunpack.c.l.b16 %v3421
    %v4081 = vunpack.c.h.b16 %v3421
    %v4082 = vunpack.c.l.b16 %v3422
    %v4083 = vunpack.c.h.b16 %v3422
    %v4084 = vunpack.c.l.b16 %v3423
    %v4085 = vunpack.c.h.b16 %v3423
    %v4086 = vunpack.c.l.b16 %v3424
    %v4087 = vunpack.c.h.b16 %v3424
    %v4088 = vunpack.c.l.b16 %v3425
    %v4089 = vunpack.c.h.b16 %v3425
    %v4090 = vunpack.c.l.b16 %v3426
    %v4091 = vunpack.c.h.b16 %v3426
    %v4092 = vunpack.c.l.b16 %v3427
    %v4093 = vunpack.c.h.b16 %v3427
    %v4094 = vunpack.c.l.b16 %v3428
    %v4095 = vunpack.c.h.b16 %v3428
    %v4096 = vunpack.c.l.b16 %v3429
    %v4097 = vunpack.c.h.b16 %v3429
    %v4098 = vunpack.c.l.b16 %v3430
    %v4099 = vunpack.c.h.b16 %v3430
    %v4100 = vunpack.c.l.b16 %v3431
    %v4101 = vunpack.c.h.b16 %v3431
    %v4102 = vunpack.c.l.b16 %v3432
    %v4103 = vunpack.c.h.b16 %v3432
    %v4104 = vunpack.c.l.b16 %v3433
    %v4105 = vunpack.c.h.b16 %v3433
    %v4106 = vunpack.c.l.b16 %v3434
    %v4107 = vunpack.c.h.b16 %v3434
    %v4108 = vunpack.c.l.b16 %v3435
    %v4109 = vunpack.c.h.b16 %v3435
    %v4110 = vunpack.c.l.b16 %v3436
    %v4111 = vunpack.c.h.b16 %v3436
    %v4112 = vunpack.c.l.b16 %v3437
    %v4113 = vunpack.c.h.b16 %v3437
    %v4114 = vunpack.c.l.b16 %v3438
    %v4115 = vunpack.c.h.b16 %v3438
    %v4116 = vunpack.c.l.b16 %v3439
    %v4117 = vunpack.c.h.b16 %v3439
    %v4118 = vunpack.c.l.b16 %v3440
    %v4119 = vunpack.c.h.b16 %v3440
    %v4120 = vunpack.c.l.b16 %v3441
    %v4121 = vunpack.c.h.b16 %v3441
    %v4122 = vunpack.c.l.b16 %v3442
    %v4123 = vunpack.c.h.b16 %v3442
    %v4124 = vunpack.c.l.b16 %v3443
    %v4125 = vunpack.c.h.b16 %v3443
    %v4126 = vunpack.c.l.b16 %v3444
    %v4127 = vunpack.c.h.b16 %v3444
    %v4128 = vunpack.c.l.b16 %v3445
    %v4129 = vunpack.c.h.b16 %v3445
    %v4130 = vunpack.c.l.b16 %v3446
    %v4131 = vunpack.c.h.b16 %v3446
    %v4132 = vunpack.c.l.b16 %v3447
    %v4133 = vunpack.c.h.b16 %v3447
    %v4134 = vunpack.c.l.b16 %v3448
    %v4135 = vunpack.c.h.b16 %v3448
    %v4136 = vunpack.c.l.b16 %v3449
    %v4137 = vunpack.c.h.b16 %v3449
    %v4138 = vunpack.c.l.b16 %v3450
    %v4139 = vunpack.c.h.b16 %v3450
    %v4140 = vunpack.c.l.b16 %v3451
    %v4141 = vunpack.c.h.b16 %v3451
    %v4142 = vunpack.c.l.b16 %v3452
    %v4143 = vunpack.c.h.b16 %v3452
    %v4144 = vunpack.c.l.b16 %v3453
    %v4145 = vunpack.c.h.b16 %v3453
    %v4146 = vunpack.c.l.b16 %v3454
    %v4147 = vunpack.c.h.b16 %v3454
    %v4148 = vunpack.c.l.b16 %v3455
    %v4149 = vunpack.c.h.b16 %v3455
    %v4150 = vunpack.c.l.b16 %v3456
    %v4151 = vunpack.c.h.b16 %v3456
    %v4152 = vunpack.c.l.b16 %v3457
    %v4153 = vunpack.c.h.b16 %v3457
    %v4154 = vunpack.c.l.b16 %v3458
    %v4155 = vunpack.c.h.b16 %v3458
    %v4156 = vunpack.c.l.b16 %v3459
    %v4157 = vunpack.c.h.b16 %v3459
    %v4158 = vunpack.c.l.b16 %v3460
    %v4159 = vunpack.c.h.b16 %v3460
    %v4160 = vunpack.c.l.b16 %v3461
    %v4161 = vunpack.c.h.b16 %v3461
    %v4162 = vunpack.c.l.b16 %v3462
    %v4163 = vunpack.c.h.b16 %v3462
    %v4164 = vunpack.c.l.b16 %v3463
    %v4165 = vunpack.c.h.b16 %v3463
    %v4166 = vunpack.c.l.b16 %v3464
    %v4167 = vunpack.c.h.b16 %v3464
    %v4168 = vunpack.c.l.b16 %v3465
    %v4169 = vunpack.c.h.b16 %v3465
    %v4170 = vunpack.c.l.b16 %v3466
    %v4171 = vunpack.c.h.b16 %v3466
    %v4172 = vunpack.c.l.b16 %v3467
    %v4173 = vunpack.c.h.b16 %v3467
    %v4174 = vunpack.c.l.b16 %v3468
    %v4175 = vunpack.c.h.b16 %v3468
    %v4176 = vunpack.c.l.b16 %v3469
    %v4177 = vunpack.c.h.b16 %v3469
    %v4178 = vunpack.c.l.b16 %v3470
    %v4179 = vunpack.c.h.b16 %v3470
    %v4180 = vunpack.c.l.b16 %v3471
    %v4181 = vunpack.c.h.b16 %v3471
    %v4182 = vunpack.c.l.b16 %v3472
    %v4183 = vunpack.c.h.b16 %v3472
    %v4184 = vunpack.c.l.b16 %v3473
    %v4185 = vunpack.c.h.b16 %v3473
    %v4186 = vunpack.c.l.b16 %v3474
    %v4187 = vunpack.c.h.b16 %v3474
    %v4188 = vunpack.c.l.b16 %v3475
    %v4189 = vunpack.c.h.b16 %v3475
    %v4190 = vunpack.c.l.b16 %v3476
    %v4191 = vunpack.c.h.b16 %v3476
    %v4192 = vunpack.c.l.b16 %v3477
    %v4193 = vunpack.c.h.b16 %v3477
    %v4194 = vunpack.c.l.b16 %v3478
    %v4195 = vunpack.c.h.b16 %v3478
    %v4196 = vunpack.c.l.b16 %v3479
    %v4197 = vunpack.c.h.b16 %v3479
    %v4198 = vunpack.c.l.b16 %v3480
    %v4199 = vunpack.c.h.b16 %v3480
    %v4200 = vunpack.c.l.b16 %v3481
    %v4201 = vunpack.c.h.b16 %v3481
    %v4202 = vunpack.c.l.b16 %v3482
    %v4203 = vunpack.c.h.b16 %v3482
    %v4204 = vunpack.c.l.b16 %v3483
    %v4205 = vunpack.c.h.b16 %v3483
    %v4206 = vunpack.c.l.b16 %v3484
    %v4207 = vunpack.c.h.b16 %v3484
    %v4208 = vunpack.c.l.b16 %v3485
    %v4209 = vunpack.c.h.b16 %v3485
    %v4210 = vunpack.c.l.b16 %v3486
    %v4211 = vunpack.c.h.b16 %v3486
    %v4212 = vunpack.c.l.b16 %v3487
    %v4213 = vunpack.c.h.b16 %v3487
    %v4214 = vunpack.c.l.b16 %v3488
    %v4215 = vunpack.c.h.b16 %v3488
    %v4216 = vunpack.c.l.b16 %v3489
    %v4217 = vunpack.c.h.b16 %v3489
    %v4218 = vunpack.c.l.b16 %v3490
    %v4219 = vunpack.c.h.b16 %v3490
    %v4220 = vunpack.c.l.b16 %v3491
    %v4221 = vunpack.c.h.b16 %v3491
    %v4222 = vunpack.c.l.b16 %v3492
    %v4223 = vunpack.c.h.b16 %v3492
    %v4224 = vunpack.c.l.b16 %v3493
    %v4225 = vunpack.c.h.b16 %v3493
    %v4226 = vunpack.c.l.b16 %v3494
    %v4227 = vunpack.c.h.b16 %v3494
    %v4228 = vunpack.c.l.b16 %v3495
    %v4229 = vunpack.c.h.b16 %v3495
    %v4230 = vunpack.c.l.b16 %v3496
    %v4231 = vunpack.c.h.b16 %v3496
    %v4232 = vunpack.c.l.b16 %v3497
    %v4233 = vunpack.c.h.b16 %v3497
    %v4234 = vunpack.c.l.b16 %v3498
    %v4235 = vunpack.c.h.b16 %v3498
    %v4236 = vunpack.c.l.b16 %v3499
    %v4237 = vunpack.c.h.b16 %v3499
    %v4238 = vunpack.c.l.b16 %v3500
    %v4239 = vunpack.c.h.b16 %v3500
    %v4240 = vunpack.c.l.b16 %v3501
    %v4241 = vunpack.c.h.b16 %v3501
    %v4242 = vunpack.c.l.b16 %v3502
    %v4243 = vunpack.c.h.b16 %v3502
    %v4244 = vunpack.c.l.b16 %v3503
    %v4245 = vunpack.c.h.b16 %v3503
    %v4246 = vunpack.c.l.b16 %v3504
    %v4247 = vunpack.c.h.b16 %v3504
    %v4248 = vunpack.c.l.b16 %v3505
    %v4249 = vunpack.c.h.b16 %v3505
    %v4250 = vunpack.c.l.b16 %v3506
    %v4251 = vunpack.c.h.b16 %v3506
    %v4252 = vunpack.c.l.b16 %v3507
    %v4253 = vunpack.c.h.b16 %v3507
    %v4254 = vunpack.c.l.b16 %v3508
    %v4255 = vunpack.c.h.b16 %v3508
    %v4256 = vunpack.c.l.b16 %v3509
    %v4257 = vunpack.c.h.b16 %v3509
    %v4258 = vunpack.c.l.b16 %v3510
    %v4259 = vunpack.c.h.b16 %v3510
    %v4260 = vunpack.c.l.b16 %v3511
    %v4261 = vunpack.c.h.b16 %v3511
    %v4262 = vunpack.c.l.b16 %v3512
    %v4263 = vunpack.c.h.b16 %v3512
    %v4264 = vunpack.c.l.b16 %v3513
    %v4265 = vunpack.c.h.b16 %v3513
    %v4266 = vunpack.c.l.b16 %v3514
    %v4267 = vunpack.c.h.b16 %v3514
    %v4268 = vunpack.c.l.b16 %v3515
    %v4269 = vunpack.c.h.b16 %v3515
    %v4270 = vunpack.c.l.b16 %v3516
    %v4271 = vunpack.c.h.b16 %v3516
    %v4272 = vunpack.c.l.b16 %v3517
    %v4273 = vunpack.c.h.b16 %v3517
    %v4274 = vunpack.c.l.b16 %v3518
    %v4275 = vunpack.c.h.b16 %v3518
    %v4276 = vunpack.c.l.b16 %v3519
    %v4277 = vunpack.c.h.b16 %v3519
    %v4278 = vunpack.c.l.b16 %v3520
    %v4279 = vunpack.c.h.b16 %v3520
    %v4280 = vunpack.c.l.b16 %v3521
    %v4281 = vunpack.c.h.b16 %v3521
    %v4282 = vunpack.c.l.b16 %v3522
    %v4283 = vunpack.c.h.b16 %v3522
    %v4284 = vunpack.c.l.b16 %v3523
    %v4285 = vunpack.c.h.b16 %v3523
    %v4286 = vunpack.c.l.b16 %v3524
    %v4287 = vunpack.c.h.b16 %v3524
    %v4288 = vunpack.c.l.b16 %v3525
    %v4289 = vunpack.c.h.b16 %v3525
    %v4290 = vunpack.c.l.b16 %v3526
    %v4291 = vunpack.c.h.b16 %v3526
    %v4292 = vunpack.c.l.b16 %v3527
    %v4293 = vunpack.c.h.b16 %v3527
    %v4294 = vunpack.c.l.b16 %v3528
    %v4295 = vunpack.c.h.b16 %v3528
    %v4296 = vunpack.c.l.b16 %v3529
    %v4297 = vunpack.c.h.b16 %v3529
    %v4298 = vunpack.c.l.b16 %v3530
    %v4299 = vunpack.c.h.b16 %v3530
    %v4300 = vunpack.c.l.b16 %v3531
    %v4301 = vunpack.c.h.b16 %v3531
    %v4302 = vunpack.c.l.b16 %v3532
    %v4303 = vunpack.c.h.b16 %v3532
    %v4304 = vunpack.c.l.b16 %v3533
    %v4305 = vunpack.c.h.b16 %v3533
    %v4306 = vunpack.c.l.b16 %v3534
    %v4307 = vunpack.c.h.b16 %v3534
    %v4308 = vunpack.c.l.b16 %v3535
    %v4309 = vunpack.c.h.b16 %v3535
    %v4310 = vunpack.c.l.b16 %v3536
    %v4311 = vunpack.c.h.b16 %v3536
    %v4312 = vunpack.c.l.b16 %v3537
    %v4313 = vunpack.c.h.b16 %v3537
    %v4314 = vunpack.c.l.b16 %v3538
    %v4315 = vunpack.c.h.b16 %v3538
    %v4316 = vunpack.c.l.b16 %v3539
    %v4317 = vunpack.c.h.b16 %v3539
    %v4318 = vunpack.c.l.b16 %v3540
    %v4319 = vunpack.c.h.b16 %v3540
    %v4320 = vunpack.c.l.b16 %v3541
    %v4321 = vunpack.c.h.b16 %v3541
    %v4322 = vunpack.c.l.b16 %v3542
    %v4323 = vunpack.c.h.b16 %v3542
    %v4324 = vunpack.c.l.b16 %v3543
    %v4325 = vunpack.c.h.b16 %v3543
    %v4326 = vunpack.c.l.b16 %v3544
    %v4327 = vunpack.c.h.b16 %v3544
    %v4328 = vunpack.c.l.b16 %v3545
    %v4329 = vunpack.c.h.b16 %v3545
    %v4330 = vunpack.c.l.b16 %v3546
    %v4331 = vunpack.c.h.b16 %v3546
    %v4332 = vunpack.c.l.b16 %v3547
    %v4333 = vunpack.c.h.b16 %v3547
    %v4334 = vunpack.c.l.b16 %v3548
    %v4335 = vunpack.c.h.b16 %v3548
    %v4336 = vunpack.c.l.b16 %v3549
    %v4337 = vunpack.c.h.b16 %v3549
    %v4338 = vunpack.c.l.b16 %v3550
    %v4339 = vunpack.c.h.b16 %v3550
    %v4340 = vunpack.c.l.b16 %v3551
    %v4341 = vunpack.c.h.b16 %v3551
    %v4342 = vpack.c.b16 %v3834, %v3830
    %v4343 = vpack.c.b16 %v3835, %v3831
    %v4344 = vpack.c.b16 %v3836, %v3832
    %v4345 = vpack.c.b16 %v3837, %v3833
    %v4346 = vpack.c.b16 %v3842, %v3838
    %v4347 = vpack.c.b16 %v3843, %v3839
    %v4348 = vpack.c.b16 %v3844, %v3840
    %v4349 = vpack.c.b16 %v3845, %v3841
    %v4350 = vpack.c.b16 %v3850, %v3846
    %v4351 = vpack.c.b16 %v3851, %v3847
    %v4352 = vpack.c.b16 %v3852, %v3848
    %v4353 = vpack.c.b16 %v3853, %v3849
    %v4354 = vpack.c.b16 %v3858, %v3854
    %v4355 = vpack.c.b16 %v3859, %v3855
    %v4356 = vpack.c.b16 %v3860, %v3856
    %v4357 = vpack.c.b16 %v3861, %v3857
    %v4358 = vpack.c.b16 %v3866, %v3862
    %v4359 = vpack.c.b16 %v3867, %v3863
    %v4360 = vpack.c.b16 %v3868, %v3864
    %v4361 = vpack.c.b16 %v3869, %v3865
    %v4362 = vpack.c.b16 %v3874, %v3870
    %v4363 = vpack.c.b16 %v3875, %v3871
    %v4364 = vpack.c.b16 %v3876, %v3872
    %v4365 = vpack.c.b16 %v3877, %v3873
    %v4366 = vpack.c.b16 %v3882, %v3878
    %v4367 = vpack.c.b16 %v3883, %v3879
    %v4368 = vpack.c.b16 %v3884, %v3880
    %v4369 = vpack.c.b16 %v3885, %v3881
    %v4370 = vpack.c.b16 %v3890, %v3886
    %v4371 = vpack.c.b16 %v3891, %v3887
    %v4372 = vpack.c.b16 %v3892, %v3888
    %v4373 = vpack.c.b16 %v3893, %v3889
    %v4374 = vpack.c.b16 %v3898, %v3894
    %v4375 = vpack.c.b16 %v3899, %v3895
    %v4376 = vpack.c.b16 %v3900, %v3896
    %v4377 = vpack.c.b16 %v3901, %v3897
    %v4378 = vpack.c.b16 %v3906, %v3902
    %v4379 = vpack.c.b16 %v3907, %v3903
    %v4380 = vpack.c.b16 %v3908, %v3904
    %v4381 = vpack.c.b16 %v3909, %v3905
    %v4382 = vpack.c.b16 %v3914, %v3910
    %v4383 = vpack.c.b16 %v3915, %v3911
    %v4384 = vpack.c.b16 %v3916, %v3912
    %v4385 = vpack.c.b16 %v3917, %v3913
    %v4386 = vpack.c.b16 %v3922, %v3918
    %v4387 = vpack.c.b16 %v3923, %v3919
    %v4388 = vpack.c.b16 %v3924, %v3920
    %v4389 = vpack.c.b16 %v3925, %v3921
    %v4390 = vpack.c.b16 %v3930, %v3926
    %v4391 = vpack.c.b16 %v3931, %v3927
    %v4392 = vpack.c.b16 %v3932, %v3928
    %v4393 = vpack.c.b16 %v3933, %v3929
    %v4394 = vpack.c.b16 %v3938, %v3934
    %v4395 = vpack.c.b16 %v3939, %v3935
    %v4396 = vpack.c.b16 %v3940, %v3936
    %v4397 = vpack.c.b16 %v3941, %v3937
    %v4398 = vpack.c.b16 %v3946, %v3942
    %v4399 = vpack.c.b16 %v3947, %v3943
    %v4400 = vpack.c.b16 %v3948, %v3944
    %v4401 = vpack.c.b16 %v3949, %v3945
    %v4402 = vpack.c.b16 %v3954, %v3950
    %v4403 = vpack.c.b16 %v3955, %v3951
    %v4404 = vpack.c.b16 %v3956, %v3952
    %v4405 = vpack.c.b16 %v3957, %v3953
    %v4406 = vpack.c.b16 %v3962, %v3958
    %v4407 = vpack.c.b16 %v3963, %v3959
    %v4408 = vpack.c.b16 %v3964, %v3960
    %v4409 = vpack.c.b16 %v3965, %v3961
    %v4410 = vpack.c.b16 %v3970, %v3966
    %v4411 = vpack.c.b16 %v3971, %v3967
    %v4412 = vpack.c.b16 %v3972, %v3968
    %v4413 = vpack.c.b16 %v3973, %v3969
    %v4414 = vpack.c.b16 %v3978, %v3974
    %v4415 = vpack.c.b16 %v3979, %v3975
    %v4416 = vpack.c.b16 %v3980, %v3976
    %v4417 = vpack.c.b16 %v3981, %v3977
    %v4418 = vpack.c.b16 %v3986, %v3982
    %v4419 = vpack.c.b16 %v3987, %v3983
    %v4420 = vpack.c.b16 %v3988, %v3984
    %v4421 = vpack.c.b16 %v3989, %v3985
    %v4422 = vpack.c.b16 %v3994, %v3990
    %v4423 = vpack.c.b16 %v3995, %v3991
    %v4424 = vpack.c.b16 %v3996, %v3992
    %v4425 = vpack.c.b16 %v3997, %v3993
    %v4426 = vpack.c.b16 %v4002, %v3998
    %v4427 = vpack.c.b16 %v4003, %v3999
    %v4428 = vpack.c.b16 %v4004, %v4000
    %v4429 = vpack.c.b16 %v4005, %v4001
    %v4430 = vpack.c.b16 %v4010, %v4006
    %v4431 = vpack.c.b16 %v4011, %v4007
    %v4432 = vpack.c.b16 %v4012, %v4008
    %v4433 = vpack.c.b16 %v4013, %v4009
    %v4434 = vpack.c.b16 %v4018, %v4014
    %v4435 = vpack.c.b16 %v4019, %v4015
    %v4436 = vpack.c.b16 %v4020, %v4016
    %v4437 = vpack.c.b16 %v4021, %v4017
    %v4438 = vpack.c.b16 %v4026, %v4022
    %v4439 = vpack.c.b16 %v4027, %v4023
    %v4440 = vpack.c.b16 %v4028, %v4024
    %v4441 = vpack.c.b16 %v4029, %v4025
    %v4442 = vpack.c.b16 %v4034, %v4030
    %v4443 = vpack.c.b16 %v4035, %v4031
    %v4444 = vpack.c.b16 %v4036, %v4032
    %v4445 = vpack.c.b16 %v4037, %v4033
    %v4446 = vpack.c.b16 %v4042, %v4038
    %v4447 = vpack.c.b16 %v4043, %v4039
    %v4448 = vpack.c.b16 %v4044, %v4040
    %v4449 = vpack.c.b16 %v4045, %v4041
    %v4450 = vpack.c.b16 %v4050, %v4046
    %v4451 = vpack.c.b16 %v4051, %v4047
    %v4452 = vpack.c.b16 %v4052, %v4048
    %v4453 = vpack.c.b16 %v4053, %v4049
    %v4454 = vpack.c.b16 %v4058, %v4054
    %v4455 = vpack.c.b16 %v4059, %v4055
    %v4456 = vpack.c.b16 %v4060, %v4056
    %v4457 = vpack.c.b16 %v4061, %v4057
    %v4458 = vpack.c.b16 %v4066, %v4062
    %v4459 = vpack.c.b16 %v4067, %v4063
    %v4460 = vpack.c.b16 %v4068, %v4064
    %v4461 = vpack.c.b16 %v4069, %v4065
    %v4462 = vpack.c.b16 %v4074, %v4070
    %v4463 = vpack.c.b16 %v4075, %v4071
    %v4464 = vpack.c.b16 %v4076, %v4072
    %v4465 = vpack.c.b16 %v4077, %v4073
    %v4466 = vpack.c.b16 %v4082, %v4078
    %v4467 = vpack.c.b16 %v4083, %v4079
    %v4468 = vpack.c.b16 %v4084, %v4080
    %v4469 = vpack.c.b16 %v4085, %v4081
    %v4470 = vpack.c.b16 %v4090, %v4086
    %v4471 = vpack.c.b16 %v4091, %v4087
    %v4472 = vpack.c.b16 %v4092, %v4088
    %v4473 = vpack.c.b16 %v4093, %v4089
    %v4474 = vpack.c.b16 %v4098, %v4094
    %v4475 = vpack.c.b16 %v4099, %v4095
    %v4476 = vpack.c.b16 %v4100, %v4096
    %v4477 = vpack.c.b16 %v4101, %v4097
    %v4478 = vpack.c.b16 %v4106, %v4102
    %v4479 = vpack.c.b16 %v4107, %v4103
    %v4480 = vpack.c.b16 %v4108, %v4104
    %v4481 = vpack.c.b16 %v4109, %v4105
    %v4482 = vpack.c.b16 %v4114, %v4110
    %v4483 = vpack.c.b16 %v4115, %v4111
    %v4484 = vpack.c.b16 %v4116, %v4112
    %v4485 = vpack.c.b16 %v4117, %v4113
    %v4486 = vpack.c.b16 %v4122, %v4118
    %v4487 = vpack.c.b16 %v4123, %v4119
    %v4488 = vpack.c.b16 %v4124, %v4120
    %v4489 = vpack.c.b16 %v4125, %v4121
    %v4490 = vpack.c.b16 %v4130, %v4126
    %v4491 = vpack.c.b16 %v4131, %v4127
    %v4492 = vpack.c.b16 %v4132, %v4128
    %v4493 = vpack.c.b16 %v4133, %v4129
    %v4494 = vpack.c.b16 %v4138, %v4134
    %v4495 = vpack.c.b16 %v4139, %v4135
    %v4496 = vpack.c.b16 %v4140, %v4136
    %v4497 = vpack.c.b16 %v4141, %v4137
    %v4498 = vpack.c.b16 %v4146, %v4142
    %v4499 = vpack.c.b16 %v4147, %v4143
    %v4500 = vpack.c.b16 %v4148, %v4144
    %v4501 = vpack.c.b16 %v4149, %v4145
    %v4502 = vpack.c.b16 %v4154, %v4150
    %v4503 = vpack.c.b16 %v4155, %v4151
    %v4504 = vpack.c.b16 %v4156, %v4152
    %v4505 = vpack.c.b16 %v4157, %v4153
    %v4506 = vpack.c.b16 %v4162, %v4158
    %v4507 = vpack.c.b16 %v4163, %v4159
    %v4508 = vpack.c.b16 %v4164, %v4160
    %v4509 = vpack.c.b16 %v4165, %v4161
    %v4510 = vpack.c.b16 %v4170, %v4166
    %v4511 = vpack.c.b16 %v4171, %v4167
    %v4512 = vpack.c.b16 %v4172, %v4168
    %v4513 = vpack.c.b16 %v4173, %v4169
    %v4514 = vpack.c.b16 %v4178, %v4174
    %v4515 = vpack.c.b16 %v4179, %v4175
    %v4516 = vpack.c.b16 %v4180, %v4176
    %v4517 = vpack.c.b16 %v4181, %v4177
    %v4518 = vpack.c.b16 %v4186, %v4182
    %v4519 = vpack.c.b16 %v4187, %v4183
    %v4520 = vpack.c.b16 %v4188, %v4184
    %v4521 = vpack.c.b16 %v4189, %v4185
    %v4522 = vpack.c.b16 %v4194, %v4190
    %v4523 = vpack.c.b16 %v4195, %v4191
    %v4524 = vpack.c.b16 %v4196, %v4192
    %v4525 = vpack.c.b16 %v4197, %v4193
    %v4526 = vpack.c.b16 %v4202, %v4198
    %v4527 = vpack.c.b16 %v4203, %v4199
    %v4528 = vpack.c.b16 %v4204, %v4200
    %v4529 = vpack.c.b16 %v4205, %v4201
    %v4530 = vpack.c.b16 %v4210, %v4206
    %v4531 = vpack.c.b16 %v4211, %v4207
    %v4532 = vpack.c.b16 %v4212, %v4208
    %v4533 = vpack.c.b16 %v4213, %v4209
    %v4534 = vpack.c.b16 %v4218, %v4214
    %v4535 = vpack.c.b16 %v4219, %v4215
    %v4536 = vpack.c.b16 %v4220, %v4216
    %v4537 = vpack.c.b16 %v4221, %v4217
    %v4538 = vpack.c.b16 %v4226, %v4222
    %v4539 = vpack.c.b16 %v4227, %v4223
    %v4540 = vpack.c.b16 %v4228, %v4224
    %v4541 = vpack.c.b16 %v4229, %v4225
    %v4542 = vpack.c.b16 %v4234, %v4230
    %v4543 = vpack.c.b16 %v4235, %v4231
    %v4544 = vpack.c.b16 %v4236, %v4232
    %v4545 = vpack.c.b16 %v4237, %v4233
    %v4546 = vpack.c.b16 %v4242, %v4238
    %v4547 = vpack.c.b16 %v4243, %v4239
    %v4548 = vpack.c.b16 %v4244, %v4240
    %v4549 = vpack.c.b16 %v4245, %v4241
    %v4550 = vpack.c.b16 %v4250, %v4246
    %v4551 = vpack.c.b16 %v4251, %v4247
    %v4552 = vpack.c.b16 %v4252, %v4248
    %v4553 = vpack.c.b16 %v4253, %v4249
    %v4554 = vpack.c.b16 %v4258, %v4254
    %v4555 = vpack.c.b16 %v4259, %v4255
    %v4556 = vpack.c.b16 %v4260, %v4256
    %v4557 = vpack.c.b16 %v4261, %v4257
    %v4558 = vpack.c.b16 %v4266, %v4262
    %v4559 = vpack.c.b16 %v4267, %v4263
    %v4560 = vpack.c.b16 %v4268, %v4264
    %v4561 = vpack.c.b16 %v4269, %v4265
    %v4562 = vpack.c.b16 %v4274, %v4270
    %v4563 = vpack.c.b16 %v4275, %v4271
    %v4564 = vpack.c.b16 %v4276, %v4272
    %v4565 = vpack.c.b16 %v4277, %v4273
    %v4566 = vpack.c.b16 %v4282, %v4278
    %v4567 = vpack.c.b16 %v4283, %v4279
    %v4568 = vpack.c.b16 %v4284, %v4280
    %v4569 = vpack.c.b16 %v4285, %v4281
    %v4570 = vpack.c.b16 %v4290, %v4286
    %v4571 = vpack.c.b16 %v4291, %v4287
    %v4572 = vpack.c.b16 %v4292, %v4288
    %v4573 = vpack.c.b16 %v4293, %v4289
    %v4574 = vpack.c.b16 %v4298, %v4294
    %v4575 = vpack.c.b16 %v4299, %v4295
    %v4576 = vpack.c.b16 %v4300, %v4296
    %v4577 = vpack.c.b16 %v4301, %v4297
    %v4578 = vpack.c.b16 %v4306, %v4302
    %v4579 = vpack.c.b16 %v4307, %v4303
    %v4580 = vpack.c.b16 %v4308, %v4304
    %v4581 = vpack.c.b16 %v4309, %v4305
    %v4582 = vpack.c.b16 %v4314, %v4310
    %v4583 = vpack.c.b16 %v4315, %v4311
    %v4584 = vpack.c.b16 %v4316, %v4312
    %v4585 = vpack.c.b16 %v4317, %v4313
    %v4586 = vpack.c.b16 %v4322, %v4318
    %v4587 = vpack.c.b16 %v4323, %v4319
    %v4588 = vpack.c.b16 %v4324, %v4320
    %v4589 = vpack.c.b16 %v4325, %v4321
    %v4590 = vpack.c.b16 %v4330, %v4326
    %v4591 = vpack.c.b16 %v4331, %v4327
    %v4592 = vpack.c.b16 %v4332, %v4328
    %v4593 = vpack.c.b16 %v4333, %v4329
    %v4594 = vpack.c.b16 %v4338, %v4334
    %v4595 = vpack.c.b16 %v4339, %v4335
    %v4596 = vpack.c.b16 %v4340, %v4336
    %v4597 = vpack.c.b16 %v4341, %v4337
    %4854 = vmatprep.subr.bf16.mxu0 %v4371
    %4855 = vmatpush1.bf16.msra.mxu0 %v4370
    %4856 = vmatprep.subr.bf16.mxu0 %v4367
    %4857 = vmatpush1.bf16.msra.mxu0 %v4366
    %4858 = vmatprep.subr.bf16.mxu0 %v4363
    %4859 = vmatpush1.bf16.msra.mxu0 %v4362
    %4860 = vmatprep.subr.bf16.mxu0 %v4359
    %4861 = vmatpush1.bf16.msra.mxu0 %v4358
    %4862 = vmatprep.subr.bf16.mxu0 %v4355
    %4863 = vmatpush1.bf16.msra.mxu0 %v4354
    %4864 = vmatprep.subr.bf16.mxu0 %v4351
    %4865 = vmatpush1.bf16.msra.mxu0 %v4350
    %4866 = vmatprep.subr.bf16.mxu0 %v4347
    %4867 = vmatpush1.bf16.msra.mxu0 %v4346
    %4868 = vmatprep.subr.bf16.mxu0 %v4343
    %4869 = vmatpush1.bf16.msra.mxu0 %v4342
    %4870 = vmatprep.subr.bf16.mxu0 %v4403
    %4871 = vmatpush2.bf16.msra.mxu0 %v4402
    %4872 = vmatprep.subr.bf16.mxu0 %v4399
    %4873 = vmatpush2.bf16.msra.mxu0 %v4398
    %4874 = vmatprep.subr.bf16.mxu0 %v4395
    %4875 = vmatpush2.bf16.msra.mxu0 %v4394
    %4876 = vmatprep.subr.bf16.mxu0 %v4391
    %4877 = vmatpush2.bf16.msra.mxu0 %v4390
    %4878 = vmatprep.subr.bf16.mxu0 %v4387
    %4879 = vmatpush2.bf16.msra.mxu0 %v4386
    %4880 = vmatprep.subr.bf16.mxu0 %v4383
    %4881 = vmatpush2.bf16.msra.mxu0 %v4382
    %4882 = vmatprep.subr.bf16.mxu0 %v4379
    %4883 = vmatpush2.bf16.msra.mxu0 %v4378
    %4884 = vmatprep.subr.bf16.mxu0 %v4375
    %4885 = vmatpush2.bf16.msra.mxu0 %v4374
    %4886 = vmatprep.mubr.bf16.mxu0 %v3289
    %4887 = vmatmul.mubr.bf16.gmra.mxu0 %v3288
    %v4888 = vpop.f32.mrf.mxu0
    %v4889 = vadd.f32 %v3557, %v4888
    %v4890 = vpop.f32.mrf.mxu0
    %v4891 = vadd.f32 %v3561, %v4890
    %v4892 = vpop.f32.mrf.mxu0
    %v4893 = vadd.f32 %v3557, %v4892
    %v4894 = vpop.f32.mrf.mxu0
    %v4895 = vadd.f32 %v3561, %v4894
    %4896 = vdwg.mxu0
    %4897 = vmatprep.subr.bf16.mxu0 %v4435
    %4898 = vmatpush1.bf16.msra.mxu0 %v4434
    %4899 = vmatprep.subr.bf16.mxu0 %v4431
    %4900 = vmatpush1.bf16.msra.mxu0 %v4430
    %4901 = vmatprep.subr.bf16.mxu0 %v4427
    %4902 = vmatpush1.bf16.msra.mxu0 %v4426
    %4903 = vmatprep.subr.bf16.mxu0 %v4423
    %4904 = vmatpush1.bf16.msra.mxu0 %v4422
    %4905 = vmatprep.subr.bf16.mxu0 %v4419
    %4906 = vmatpush1.bf16.msra.mxu0 %v4418
    %4907 = vmatprep.subr.bf16.mxu0 %v4415
    %4908 = vmatpush1.bf16.msra.mxu0 %v4414
    %4909 = vmatprep.subr.bf16.mxu0 %v4411
    %4910 = vmatpush1.bf16.msra.mxu0 %v4410
    %4911 = vmatprep.subr.bf16.mxu0 %v4407
    %4912 = vmatpush1.bf16.msra.mxu0 %v4406
    %4913 = vmatprep.subr.bf16.mxu0 %v4467
    %4914 = vmatpush2.bf16.msra.mxu0 %v4466
    %4915 = vmatprep.subr.bf16.mxu0 %v4463
    %4916 = vmatpush2.bf16.msra.mxu0 %v4462
    %4917 = vmatprep.subr.bf16.mxu0 %v4459
    %4918 = vmatpush2.bf16.msra.mxu0 %v4458
    %4919 = vmatprep.subr.bf16.mxu0 %v4455
    %4920 = vmatpush2.bf16.msra.mxu0 %v4454
    %4921 = vmatprep.subr.bf16.mxu0 %v4451
    %4922 = vmatpush2.bf16.msra.mxu0 %v4450
    %4923 = vmatprep.subr.bf16.mxu0 %v4447
    %4924 = vmatpush2.bf16.msra.mxu0 %v4446
    %4925 = vmatprep.subr.bf16.mxu0 %v4443
    %4926 = vmatpush2.bf16.msra.mxu0 %v4442
    %4927 = vmatprep.subr.bf16.mxu0 %v4439
    %4928 = vmatpush2.bf16.msra.mxu0 %v4438
    %4929 = vmatprep.mubr.bf16.mxu0 %v3291
    %4930 = vmatmul.mubr.bf16.gmra.mxu0 %v3290
    %v4931 = vpop.f32.mrf.mxu0
    %v4932 = vadd.f32 %v4889, %v4931
    %v4933 = vpop.f32.mrf.mxu0
    %v4934 = vadd.f32 %v4891, %v4933
    %v4935 = vpop.f32.mrf.mxu0
    %v4936 = vadd.f32 %v4893, %v4935
    %v4937 = vpop.f32.mrf.mxu0
    %v4938 = vadd.f32 %v4895, %v4937
    %4939 = vdwg.mxu0
    %4940 = vmatprep.subr.bf16.mxu0 %v4499
    %4941 = vmatpush1.bf16.msra.mxu0 %v4498
    %4942 = vmatprep.subr.bf16.mxu0 %v4495
    %4943 = vmatpush1.bf16.msra.mxu0 %v4494
    %4944 = vmatprep.subr.bf16.mxu0 %v4491
    %4945 = vmatpush1.bf16.msra.mxu0 %v4490
    %4946 = vmatprep.subr.bf16.mxu0 %v4487
    %4947 = vmatpush1.bf16.msra.mxu0 %v4486
    %4948 = vmatprep.subr.bf16.mxu0 %v4483
    %4949 = vmatpush1.bf16.msra.mxu0 %v4482
    %4950 = vmatprep.subr.bf16.mxu0 %v4479
    %4951 = vmatpush1.bf16.msra.mxu0 %v4478
    %4952 = vmatprep.subr.bf16.mxu0 %v4475
    %4953 = vmatpush1.bf16.msra.mxu0 %v4474
    %4954 = vmatprep.subr.bf16.mxu0 %v4471
    %4955 = vmatpush1.bf16.msra.mxu0 %v4470
    %4956 = vmatprep.subr.bf16.mxu0 %v4531
    %4957 = vmatpush2.bf16.msra.mxu0 %v4530
    %4958 = vmatprep.subr.bf16.mxu0 %v4527
    %4959 = vmatpush2.bf16.msra.mxu0 %v4526
    %4960 = vmatprep.subr.bf16.mxu0 %v4523
    %4961 = vmatpush2.bf16.msra.mxu0 %v4522
    %4962 = vmatprep.subr.bf16.mxu0 %v4519
    %4963 = vmatpush2.bf16.msra.mxu0 %v4518
    %4964 = vmatprep.subr.bf16.mxu0 %v4515
    %4965 = vmatpush2.bf16.msra.mxu0 %v4514
    %4966 = vmatprep.subr.bf16.mxu0 %v4511
    %4967 = vmatpush2.bf16.msra.mxu0 %v4510
    %4968 = vmatprep.subr.bf16.mxu0 %v4507
    %4969 = vmatpush2.bf16.msra.mxu0 %v4506
    %4970 = vmatprep.subr.bf16.mxu0 %v4503
    %4971 = vmatpush2.bf16.msra.mxu0 %v4502
    %4972 = vmatprep.mubr.bf16.mxu0 %v3293
    %4973 = vmatmul.mubr.bf16.gmra.mxu0 %v3292
    %v4974 = vpop.f32.mrf.mxu0
    %v4975 = vadd.f32 %v4932, %v4974
    %v4976 = vpop.f32.mrf.mxu0
    %v4977 = vadd.f32 %v4934, %v4976
    %v4978 = vpop.f32.mrf.mxu0
    %v4979 = vadd.f32 %v4936, %v4978
    %v4980 = vpop.f32.mrf.mxu0
    %v4981 = vadd.f32 %v4938, %v4980
    %4982 = vdwg.mxu0
    %4983 = vmatprep.subr.bf16.mxu0 %v4563
    %4984 = vmatpush1.bf16.msra.mxu0 %v4562
    %4985 = vmatprep.subr.bf16.mxu0 %v4559
    %4986 = vmatpush1.bf16.msra.mxu0 %v4558
    %4987 = vmatprep.subr.bf16.mxu0 %v4555
    %4988 = vmatpush1.bf16.msra.mxu0 %v4554
    %4989 = vmatprep.subr.bf16.mxu0 %v4551
    %4990 = vmatpush1.bf16.msra.mxu0 %v4550
    %4991 = vmatprep.subr.bf16.mxu0 %v4547
    %4992 = vmatpush1.bf16.msra.mxu0 %v4546
    %4993 = vmatprep.subr.bf16.mxu0 %v4543
    %4994 = vmatpush1.bf16.msra.mxu0 %v4542
    %4995 = vmatprep.subr.bf16.mxu0 %v4539
    %4996 = vmatpush1.bf16.msra.mxu0 %v4538
    %4997 = vmatprep.subr.bf16.mxu0 %v4535
    %4998 = vmatpush1.bf16.msra.mxu0 %v4534
    %4999 = vmatprep.subr.bf16.mxu0 %v4595
    %5000 = vmatpush2.bf16.msra.mxu0 %v4594
    %5001 = vmatprep.subr.bf16.mxu0 %v4591
    %5002 = vmatpush2.bf16.msra.mxu0 %v4590
    %5003 = vmatprep.subr.bf16.mxu0 %v4587
    %5004 = vmatpush2.bf16.msra.mxu0 %v4586
    %5005 = vmatprep.subr.bf16.mxu0 %v4583
    %5006 = vmatpush2.bf16.msra.mxu0 %v4582
    %5007 = vmatprep.subr.bf16.mxu0 %v4579
    %5008 = vmatpush2.bf16.msra.mxu0 %v4578
    %5009 = vmatprep.subr.bf16.mxu0 %v4575
    %5010 = vmatpush2.bf16.msra.mxu0 %v4574
    %5011 = vmatprep.subr.bf16.mxu0 %v4571
    %5012 = vmatpush2.bf16.msra.mxu0 %v4570
    %5013 = vmatprep.subr.bf16.mxu0 %v4567
    %5014 = vmatpush2.bf16.msra.mxu0 %v4566
    %5015 = vmatprep.mubr.bf16.mxu0 %v3295
    %5016 = vmatmul.mubr.bf16.gmra.mxu0 %v3294
    %v5017 = vpop.f32.mrf.mxu0
    %v5018 = vadd.f32 %v4975, %v5017
    %v5019 = vpop.f32.mrf.mxu0
    %v5020 = vadd.f32 %v4977, %v5019
    %v5021 = vpop.f32.mrf.mxu0
    %v5022 = vadd.f32 %v4979, %v5021
    %v5023 = vpop.f32.mrf.mxu0
    %v5024 = vadd.f32 %v4981, %v5023
    %5025 = vdwg.mxu0
    %5026 = vmatprep.subr.bf16.mxu0 %v4373
    %5027 = vmatpush1.bf16.msra.mxu0 %v4372
    %5028 = vmatprep.subr.bf16.mxu0 %v4369
    %5029 = vmatpush1.bf16.msra.mxu0 %v4368
    %5030 = vmatprep.subr.bf16.mxu0 %v4365
    %5031 = vmatpush1.bf16.msra.mxu0 %v4364
    %5032 = vmatprep.subr.bf16.mxu0 %v4361
    %5033 = vmatpush1.bf16.msra.mxu0 %v4360
    %5034 = vmatprep.subr.bf16.mxu0 %v4357
    %5035 = vmatpush1.bf16.msra.mxu0 %v4356
    %5036 = vmatprep.subr.bf16.mxu0 %v4353
    %5037 = vmatpush1.bf16.msra.mxu0 %v4352
    %5038 = vmatprep.subr.bf16.mxu0 %v4349
    %5039 = vmatpush1.bf16.msra.mxu0 %v4348
    %5040 = vmatprep.subr.bf16.mxu0 %v4345
    %5041 = vmatpush1.bf16.msra.mxu0 %v4344
    %5042 = vmatprep.subr.bf16.mxu0 %v4405
    %5043 = vmatpush2.bf16.msra.mxu0 %v4404
    %5044 = vmatprep.subr.bf16.mxu0 %v4401
    %5045 = vmatpush2.bf16.msra.mxu0 %v4400
    %5046 = vmatprep.subr.bf16.mxu0 %v4397
    %5047 = vmatpush2.bf16.msra.mxu0 %v4396
    %5048 = vmatprep.subr.bf16.mxu0 %v4393
    %5049 = vmatpush2.bf16.msra.mxu0 %v4392
    %5050 = vmatprep.subr.bf16.mxu0 %v4389
    %5051 = vmatpush2.bf16.msra.mxu0 %v4388
    %5052 = vmatprep.subr.bf16.mxu0 %v4385
    %5053 = vmatpush2.bf16.msra.mxu0 %v4384
    %5054 = vmatprep.subr.bf16.mxu0 %v4381
    %5055 = vmatpush2.bf16.msra.mxu0 %v4380
    %5056 = vmatprep.subr.bf16.mxu0 %v4377
    %5057 = vmatpush2.bf16.msra.mxu0 %v4376
    %5058 = vmatprep.mubr.bf16.mxu0 %v3289
    %5059 = vmatmul.mubr.bf16.gmra.mxu0 %v3288
    %v5060 = vpop.f32.mrf.mxu0
    %v5061 = vadd.f32 %v3565, %v5060
    %v5062 = vpop.f32.mrf.mxu0
    %v5063 = vadd.f32 %v3569, %v5062
    %v5064 = vpop.f32.mrf.mxu0
    %v5065 = vadd.f32 %v3565, %v5064
    %v5066 = vpop.f32.mrf.mxu0
    %v5067 = vadd.f32 %v3569, %v5066
    %5068 = vdwg.mxu0
    %5069 = vmatprep.subr.bf16.mxu0 %v4437
    %5070 = vmatpush1.bf16.msra.mxu0 %v4436
    %5071 = vmatprep.subr.bf16.mxu0 %v4433
    %5072 = vmatpush1.bf16.msra.mxu0 %v4432
    %5073 = vmatprep.subr.bf16.mxu0 %v4429
    %5074 = vmatpush1.bf16.msra.mxu0 %v4428
    %5075 = vmatprep.subr.bf16.mxu0 %v4425
    %5076 = vmatpush1.bf16.msra.mxu0 %v4424
    %5077 = vmatprep.subr.bf16.mxu0 %v4421
    %5078 = vmatpush1.bf16.msra.mxu0 %v4420
    %5079 = vmatprep.subr.bf16.mxu0 %v4417
    %5080 = vmatpush1.bf16.msra.mxu0 %v4416
    %5081 = vmatprep.subr.bf16.mxu0 %v4413
    %5082 = vmatpush1.bf16.msra.mxu0 %v4412
    %5083 = vmatprep.subr.bf16.mxu0 %v4409
    %5084 = vmatpush1.bf16.msra.mxu0 %v4408
    %5085 = vmatprep.subr.bf16.mxu0 %v4469
    %5086 = vmatpush2.bf16.msra.mxu0 %v4468
    %5087 = vmatprep.subr.bf16.mxu0 %v4465
    %5088 = vmatpush2.bf16.msra.mxu0 %v4464
    %5089 = vmatprep.subr.bf16.mxu0 %v4461
    %5090 = vmatpush2.bf16.msra.mxu0 %v4460
    %5091 = vmatprep.subr.bf16.mxu0 %v4457
    %5092 = vmatpush2.bf16.msra.mxu0 %v4456
    %5093 = vmatprep.subr.bf16.mxu0 %v4453
    %5094 = vmatpush2.bf16.msra.mxu0 %v4452
    %5095 = vmatprep.subr.bf16.mxu0 %v4449
    %5096 = vmatpush2.bf16.msra.mxu0 %v4448
    %5097 = vmatprep.subr.bf16.mxu0 %v4445
    %5098 = vmatpush2.bf16.msra.mxu0 %v4444
    %5099 = vmatprep.subr.bf16.mxu0 %v4441
    %5100 = vmatpush2.bf16.msra.mxu0 %v4440
    %5101 = vmatprep.mubr.bf16.mxu0 %v3291
    %5102 = vmatmul.mubr.bf16.gmra.mxu0 %v3290
    %v5103 = vpop.f32.mrf.mxu0
    %v5104 = vadd.f32 %v5061, %v5103
    %v5105 = vpop.f32.mrf.mxu0
    %v5106 = vadd.f32 %v5063, %v5105
    %v5107 = vpop.f32.mrf.mxu0
    %v5108 = vadd.f32 %v5065, %v5107
    %v5109 = vpop.f32.mrf.mxu0
    %v5110 = vadd.f32 %v5067, %v5109
    %5111 = vdwg.mxu0
    %5112 = vmatprep.subr.bf16.mxu0 %v4501
    %5113 = vmatpush1.bf16.msra.mxu0 %v4500
    %5114 = vmatprep.subr.bf16.mxu0 %v4497
    %5115 = vmatpush1.bf16.msra.mxu0 %v4496
    %5116 = vmatprep.subr.bf16.mxu0 %v4493
    %5117 = vmatpush1.bf16.msra.mxu0 %v4492
    %5118 = vmatprep.subr.bf16.mxu0 %v4489
    %5119 = vmatpush1.bf16.msra.mxu0 %v4488
    %5120 = vmatprep.subr.bf16.mxu0 %v4485
    %5121 = vmatpush1.bf16.msra.mxu0 %v4484
    %5122 = vmatprep.subr.bf16.mxu0 %v4481
    %5123 = vmatpush1.bf16.msra.mxu0 %v4480
    %5124 = vmatprep.subr.bf16.mxu0 %v4477
    %5125 = vmatpush1.bf16.msra.mxu0 %v4476
    %5126 = vmatprep.subr.bf16.mxu0 %v4473
    %5127 = vmatpush1.bf16.msra.mxu0 %v4472
    %5128 = vmatprep.subr.bf16.mxu0 %v4533
    %5129 = vmatpush2.bf16.msra.mxu0 %v4532
    %5130 = vmatprep.subr.bf16.mxu0 %v4529
    %5131 = vmatpush2.bf16.msra.mxu0 %v4528
    %5132 = vmatprep.subr.bf16.mxu0 %v4525
    %5133 = vmatpush2.bf16.msra.mxu0 %v4524
    %5134 = vmatprep.subr.bf16.mxu0 %v4521
    %5135 = vmatpush2.bf16.msra.mxu0 %v4520
    %5136 = vmatprep.subr.bf16.mxu0 %v4517
    %5137 = vmatpush2.bf16.msra.mxu0 %v4516
    %5138 = vmatprep.subr.bf16.mxu0 %v4513
    %5139 = vmatpush2.bf16.msra.mxu0 %v4512
    %5140 = vmatprep.subr.bf16.mxu0 %v4509
    %5141 = vmatpush2.bf16.msra.mxu0 %v4508
    %5142 = vmatprep.subr.bf16.mxu0 %v4505
    %5143 = vmatpush2.bf16.msra.mxu0 %v4504
    %5144 = vmatprep.mubr.bf16.mxu0 %v3293
    %5145 = vmatmul.mubr.bf16.gmra.mxu0 %v3292
    %v5146 = vpop.f32.mrf.mxu0
    %v5147 = vadd.f32 %v5104, %v5146
    %v5148 = vpop.f32.mrf.mxu0
    %v5149 = vadd.f32 %v5106, %v5148
    %v5150 = vpop.f32.mrf.mxu0
    %v5151 = vadd.f32 %v5108, %v5150
    %v5152 = vpop.f32.mrf.mxu0
    %v5153 = vadd.f32 %v5110, %v5152
    %5154 = vdwg.mxu0
    %5155 = vmatprep.subr.bf16.mxu0 %v4565
    %5156 = vmatpush1.bf16.msra.mxu0 %v4564
    %5157 = vmatprep.subr.bf16.mxu0 %v4561
    %5158 = vmatpush1.bf16.msra.mxu0 %v4560
    %5159 = vmatprep.subr.bf16.mxu0 %v4557
    %5160 = vmatpush1.bf16.msra.mxu0 %v4556
    %5161 = vmatprep.subr.bf16.mxu0 %v4553
    %5162 = vmatpush1.bf16.msra.mxu0 %v4552
    %5163 = vmatprep.subr.bf16.mxu0 %v4549
    %5164 = vmatpush1.bf16.msra.mxu0 %v4548
    %5165 = vmatprep.subr.bf16.mxu0 %v4545
    %5166 = vmatpush1.bf16.msra.mxu0 %v4544
    %5167 = vmatprep.subr.bf16.mxu0 %v4541
    %5168 = vmatpush1.bf16.msra.mxu0 %v4540
    %5169 = vmatprep.subr.bf16.mxu0 %v4537
    %5170 = vmatpush1.bf16.msra.mxu0 %v4536
    %5171 = vmatprep.subr.bf16.mxu0 %v4597
    %5172 = vmatpush2.bf16.msra.mxu0 %v4596
    %5173 = vmatprep.subr.bf16.mxu0 %v4593
    %5174 = vmatpush2.bf16.msra.mxu0 %v4592
    %5175 = vmatprep.subr.bf16.mxu0 %v4589
    %5176 = vmatpush2.bf16.msra.mxu0 %v4588
    %5177 = vmatprep.subr.bf16.mxu0 %v4585
    %5178 = vmatpush2.bf16.msra.mxu0 %v4584
    %5179 = vmatprep.subr.bf16.mxu0 %v4581
    %5180 = vmatpush2.bf16.msra.mxu0 %v4580
    %5181 = vmatprep.subr.bf16.mxu0 %v4577
    %5182 = vmatpush2.bf16.msra.mxu0 %v4576
    %5183 = vmatprep.subr.bf16.mxu0 %v4573
    %5184 = vmatpush2.bf16.msra.mxu0 %v4572
    %5185 = vmatprep.subr.bf16.mxu0 %v4569
    %5186 = vmatpush2.bf16.msra.mxu0 %v4568
    %5187 = vmatprep.mubr.bf16.mxu0 %v3295
    %5188 = vmatmul.mubr.bf16.gmra.mxu0 %v3294
    %v5189 = vpop.f32.mrf.mxu0
    %v5190 = vadd.f32 %v5147, %v5189
    %v5191 = vpop.f32.mrf.mxu0
    %v5192 = vadd.f32 %v5149, %v5191
    %v5193 = vpop.f32.mrf.mxu0
    %v5194 = vadd.f32 %v5151, %v5193
    %v5195 = vpop.f32.mrf.mxu0
    %v5196 = vadd.f32 %v5153, %v5195
    %5197 = vdwg.mxu0
    %v5198 = vmax.f32 %v5018, 0.0
    %v5199 = vmax.f32 %v5020, 0.0
    %v5200 = vmax.f32 %v5190, 0.0
    %v5201 = vmax.f32 %v5192, 0.0
    %v5202 = vmax.f32 %v5022, 0.0
    %v5203 = vmax.f32 %v5024, 0.0
    %v5204 = vmax.f32 %v5194, 0.0
    %v5205 = vmax.f32 %v5196, 0.0
    %v5206 = vpack.c.bf16 %v5202, %v5198
    %v5207 = vpack.c.bf16 %v5203, %v5199
    %v5208 = vpack.c.bf16 %v5204, %v5200
    %v5209 = vpack.c.bf16 %v5205, %v5201
    %v5210 = vld [vmem:[#allocation9] sm:$0xff]
    %v5211 = vld [vmem:[#allocation9 + $0x8] sm:$0xff]
    %v5212 = vld [vmem:[#allocation9 + $0x10] sm:$0xff]
    %v5213 = vld [vmem:[#allocation9 + $0x18] sm:$0xff]
    %v5214 = vld [vmem:[#allocation9 + $0x20] sm:$0xff]
    %v5215 = vld [vmem:[#allocation9 + $0x28] sm:$0xff]
    %v5216 = vld [vmem:[#allocation9 + $0x30] sm:$0xff]
    %v5217 = vld [vmem:[#allocation9 + $0x38] sm:$0xff]
    %v5218 = vld [vmem:[#allocation9 + $0x40] sm:$0xff]
    %v5219 = vld [vmem:[#allocation9 + $0x48] sm:$0xff]
    %v5220 = vld [vmem:[#allocation9 + $0x50] sm:$0xff]
    %v5221 = vld [vmem:[#allocation9 + $0x58] sm:$0xff]
    %v5222 = vld [vmem:[#allocation9 + $0x60] sm:$0xff]
    %v5223 = vld [vmem:[#allocation9 + $0x68] sm:$0xff]
    %v5224 = vld [vmem:[#allocation9 + $0x70] sm:$0xff]
    %v5225 = vld [vmem:[#allocation9 + $0x78] sm:$0xff]
    %v5226 = vld [vmem:[#allocation9 + $0x80] sm:$0xff]
    %v5227 = vld [vmem:[#allocation9 + $0x88] sm:$0xff]
    %v5228 = vld [vmem:[#allocation9 + $0x90] sm:$0xff]
    %v5229 = vld [vmem:[#allocation9 + $0x98] sm:$0xff]
    %v5230 = vld [vmem:[#allocation9 + $0xa0] sm:$0xff]
    %v5231 = vld [vmem:[#allocation9 + $0xa8] sm:$0xff]
    %v5232 = vld [vmem:[#allocation9 + $0xb0] sm:$0xff]
    %v5233 = vld [vmem:[#allocation9 + $0xb8] sm:$0xff]
    %v5234 = vld [vmem:[#allocation9 + $0xc0] sm:$0xff]
    %v5235 = vld [vmem:[#allocation9 + $0xc8] sm:$0xff]
    %v5236 = vld [vmem:[#allocation9 + $0xd0] sm:$0xff]
    %v5237 = vld [vmem:[#allocation9 + $0xd8] sm:$0xff]
    %v5238 = vld [vmem:[#allocation9 + $0xe0] sm:$0xff]
    %v5239 = vld [vmem:[#allocation9 + $0xe8] sm:$0xff]
    %v5240 = vld [vmem:[#allocation9 + $0xf0] sm:$0xff]
    %v5241 = vld [vmem:[#allocation9 + $0xf8] sm:$0xff]
    %v5242 = vld [vmem:[#allocation9 + $0x100] sm:$0xff]
    %v5243 = vld [vmem:[#allocation9 + $0x108] sm:$0xff]
    %v5244 = vld [vmem:[#allocation9 + $0x110] sm:$0xff]
    %v5245 = vld [vmem:[#allocation9 + $0x118] sm:$0xff]
    %v5246 = vld [vmem:[#allocation9 + $0x120] sm:$0xff]
    %v5247 = vld [vmem:[#allocation9 + $0x128] sm:$0xff]
    %v5248 = vld [vmem:[#allocation9 + $0x130] sm:$0xff]
    %v5249 = vld [vmem:[#allocation9 + $0x138] sm:$0xff]
    %v5250 = vld [vmem:[#allocation9 + $0x140] sm:$0xff]
    %v5251 = vld [vmem:[#allocation9 + $0x148] sm:$0xff]
    %v5252 = vld [vmem:[#allocation9 + $0x150] sm:$0xff]
    %v5253 = vld [vmem:[#allocation9 + $0x158] sm:$0xff]
    %v5254 = vld [vmem:[#allocation9 + $0x160] sm:$0xff]
    %v5255 = vld [vmem:[#allocation9 + $0x168] sm:$0xff]
    %v5256 = vld [vmem:[#allocation9 + $0x170] sm:$0xff]
    %v5257 = vld [vmem:[#allocation9 + $0x178] sm:$0xff]
    %v5258 = vld [vmem:[#allocation9 + $0x180] sm:$0xff]
    %v5259 = vld [vmem:[#allocation9 + $0x188] sm:$0xff]
    %v5260 = vld [vmem:[#allocation9 + $0x190] sm:$0xff]
    %v5261 = vld [vmem:[#allocation9 + $0x198] sm:$0xff]
    %v5262 = vld [vmem:[#allocation9 + $0x1a0] sm:$0xff]
    %v5263 = vld [vmem:[#allocation9 + $0x1a8] sm:$0xff]
    %v5264 = vld [vmem:[#allocation9 + $0x1b0] sm:$0xff]
    %v5265 = vld [vmem:[#allocation9 + $0x1b8] sm:$0xff]
    %v5266 = vld [vmem:[#allocation9 + $0x1c0] sm:$0xff]
    %v5267 = vld [vmem:[#allocation9 + $0x1c8] sm:$0xff]
    %v5268 = vld [vmem:[#allocation9 + $0x1d0] sm:$0xff]
    %v5269 = vld [vmem:[#allocation9 + $0x1d8] sm:$0xff]
    %v5270 = vld [vmem:[#allocation9 + $0x1e0] sm:$0xff]
    %v5271 = vld [vmem:[#allocation9 + $0x1e8] sm:$0xff]
    %v5272 = vld [vmem:[#allocation9 + $0x1f0] sm:$0xff]
    %v5273 = vld [vmem:[#allocation9 + $0x1f8] sm:$0xff]
    %v5274 = vld [vmem:[#allocation10] sm:$0x3]
    %v5276 = vlaneseq
    %v5277 = vshrl.u32 %v5276, 7
    %v5278 = vsub.s32 0, %v5277
    %v5279 = vrot.slane %v5274, %v5278
    %v5280 = vlaneseq
    %v5281 = vshrl.u32 %v5280, 7
    %v5282 = vsub.s32 1, %v5281
    %v5283 = vrot.slane %v5274, %v5282
    %v5350 = vunpack.c.l.b16 %v5210
    %v5351 = vunpack.c.h.b16 %v5210
    %v5352 = vunpack.c.l.b16 %v5211
    %v5353 = vunpack.c.h.b16 %v5211
    %v5354 = vunpack.c.l.b16 %v5212
    %v5355 = vunpack.c.h.b16 %v5212
    %v5356 = vunpack.c.l.b16 %v5213
    %v5357 = vunpack.c.h.b16 %v5213
    %v5358 = vunpack.c.l.b16 %v5214
    %v5359 = vunpack.c.h.b16 %v5214
    %v5360 = vunpack.c.l.b16 %v5215
    %v5361 = vunpack.c.h.b16 %v5215
    %v5362 = vunpack.c.l.b16 %v5216
    %v5363 = vunpack.c.h.b16 %v5216
    %v5364 = vunpack.c.l.b16 %v5217
    %v5365 = vunpack.c.h.b16 %v5217
    %v5366 = vunpack.c.l.b16 %v5218
    %v5367 = vunpack.c.h.b16 %v5218
    %v5368 = vunpack.c.l.b16 %v5219
    %v5369 = vunpack.c.h.b16 %v5219
    %v5370 = vunpack.c.l.b16 %v5220
    %v5371 = vunpack.c.h.b16 %v5220
    %v5372 = vunpack.c.l.b16 %v5221
    %v5373 = vunpack.c.h.b16 %v5221
    %v5374 = vunpack.c.l.b16 %v5222
    %v5375 = vunpack.c.h.b16 %v5222
    %v5376 = vunpack.c.l.b16 %v5223
    %v5377 = vunpack.c.h.b16 %v5223
    %v5378 = vunpack.c.l.b16 %v5224
    %v5379 = vunpack.c.h.b16 %v5224
    %v5380 = vunpack.c.l.b16 %v5225
    %v5381 = vunpack.c.h.b16 %v5225
    %v5382 = vunpack.c.l.b16 %v5226
    %v5383 = vunpack.c.h.b16 %v5226
    %v5384 = vunpack.c.l.b16 %v5227
    %v5385 = vunpack.c.h.b16 %v5227
    %v5386 = vunpack.c.l.b16 %v5228
    %v5387 = vunpack.c.h.b16 %v5228
    %v5388 = vunpack.c.l.b16 %v5229
    %v5389 = vunpack.c.h.b16 %v5229
    %v5390 = vunpack.c.l.b16 %v5230
    %v5391 = vunpack.c.h.b16 %v5230
    %v5392 = vunpack.c.l.b16 %v5231
    %v5393 = vunpack.c.h.b16 %v5231
    %v5394 = vunpack.c.l.b16 %v5232
    %v5395 = vunpack.c.h.b16 %v5232
    %v5396 = vunpack.c.l.b16 %v5233
    %v5397 = vunpack.c.h.b16 %v5233
    %v5398 = vunpack.c.l.b16 %v5234
    %v5399 = vunpack.c.h.b16 %v5234
    %v5400 = vunpack.c.l.b16 %v5235
    %v5401 = vunpack.c.h.b16 %v5235
    %v5402 = vunpack.c.l.b16 %v5236
    %v5403 = vunpack.c.h.b16 %v5236
    %v5404 = vunpack.c.l.b16 %v5237
    %v5405 = vunpack.c.h.b16 %v5237
    %v5406 = vunpack.c.l.b16 %v5238
    %v5407 = vunpack.c.h.b16 %v5238
    %v5408 = vunpack.c.l.b16 %v5239
    %v5409 = vunpack.c.h.b16 %v5239
    %v5410 = vunpack.c.l.b16 %v5240
    %v5411 = vunpack.c.h.b16 %v5240
    %v5412 = vunpack.c.l.b16 %v5241
    %v5413 = vunpack.c.h.b16 %v5241
    %v5414 = vunpack.c.l.b16 %v5242
    %v5415 = vunpack.c.h.b16 %v5242
    %v5416 = vunpack.c.l.b16 %v5243
    %v5417 = vunpack.c.h.b16 %v5243
    %v5418 = vunpack.c.l.b16 %v5244
    %v5419 = vunpack.c.h.b16 %v5244
    %v5420 = vunpack.c.l.b16 %v5245
    %v5421 = vunpack.c.h.b16 %v5245
    %v5422 = vunpack.c.l.b16 %v5246
    %v5423 = vunpack.c.h.b16 %v5246
    %v5424 = vunpack.c.l.b16 %v5247
    %v5425 = vunpack.c.h.b16 %v5247
    %v5426 = vunpack.c.l.b16 %v5248
    %v5427 = vunpack.c.h.b16 %v5248
    %v5428 = vunpack.c.l.b16 %v5249
    %v5429 = vunpack.c.h.b16 %v5249
    %v5430 = vunpack.c.l.b16 %v5250
    %v5431 = vunpack.c.h.b16 %v5250
    %v5432 = vunpack.c.l.b16 %v5251
    %v5433 = vunpack.c.h.b16 %v5251
    %v5434 = vunpack.c.l.b16 %v5252
    %v5435 = vunpack.c.h.b16 %v5252
    %v5436 = vunpack.c.l.b16 %v5253
    %v5437 = vunpack.c.h.b16 %v5253
    %v5438 = vunpack.c.l.b16 %v5254
    %v5439 = vunpack.c.h.b16 %v5254
    %v5440 = vunpack.c.l.b16 %v5255
    %v5441 = vunpack.c.h.b16 %v5255
    %v5442 = vunpack.c.l.b16 %v5256
    %v5443 = vunpack.c.h.b16 %v5256
    %v5444 = vunpack.c.l.b16 %v5257
    %v5445 = vunpack.c.h.b16 %v5257
    %v5446 = vunpack.c.l.b16 %v5258
    %v5447 = vunpack.c.h.b16 %v5258
    %v5448 = vunpack.c.l.b16 %v5259
    %v5449 = vunpack.c.h.b16 %v5259
    %v5450 = vunpack.c.l.b16 %v5260
    %v5451 = vunpack.c.h.b16 %v5260
    %v5452 = vunpack.c.l.b16 %v5261
    %v5453 = vunpack.c.h.b16 %v5261
    %v5454 = vunpack.c.l.b16 %v5262
    %v5455 = vunpack.c.h.b16 %v5262
    %v5456 = vunpack.c.l.b16 %v5263
    %v5457 = vunpack.c.h.b16 %v5263
    %v5458 = vunpack.c.l.b16 %v5264
    %v5459 = vunpack.c.h.b16 %v5264
    %v5460 = vunpack.c.l.b16 %v5265
    %v5461 = vunpack.c.h.b16 %v5265
    %v5462 = vunpack.c.l.b16 %v5266
    %v5463 = vunpack.c.h.b16 %v5266
    %v5464 = vunpack.c.l.b16 %v5267
    %v5465 = vunpack.c.h.b16 %v5267
    %v5466 = vunpack.c.l.b16 %v5268
    %v5467 = vunpack.c.h.b16 %v5268
    %v5468 = vunpack.c.l.b16 %v5269
    %v5469 = vunpack.c.h.b16 %v5269
    %v5470 = vunpack.c.l.b16 %v5270
    %v5471 = vunpack.c.h.b16 %v5270
    %v5472 = vunpack.c.l.b16 %v5271
    %v5473 = vunpack.c.h.b16 %v5271
    %v5474 = vunpack.c.l.b16 %v5272
    %v5475 = vunpack.c.h.b16 %v5272
    %v5476 = vunpack.c.l.b16 %v5273
    %v5477 = vunpack.c.h.b16 %v5273
    %v5478 = vpack.c.b16 %v5352, %v5350
    %v5479 = vpack.c.b16 %v5353, %v5351
    %v5480 = vpack.c.b16 %v5356, %v5354
    %v5481 = vpack.c.b16 %v5357, %v5355
    %v5482 = vpack.c.b16 %v5360, %v5358
    %v5483 = vpack.c.b16 %v5361, %v5359
    %v5484 = vpack.c.b16 %v5364, %v5362
    %v5485 = vpack.c.b16 %v5365, %v5363
    %v5486 = vpack.c.b16 %v5368, %v5366
    %v5487 = vpack.c.b16 %v5369, %v5367
    %v5488 = vpack.c.b16 %v5372, %v5370
    %v5489 = vpack.c.b16 %v5373, %v5371
    %v5490 = vpack.c.b16 %v5376, %v5374
    %v5491 = vpack.c.b16 %v5377, %v5375
    %v5492 = vpack.c.b16 %v5380, %v5378
    %v5493 = vpack.c.b16 %v5381, %v5379
    %v5494 = vpack.c.b16 %v5384, %v5382
    %v5495 = vpack.c.b16 %v5385, %v5383
    %v5496 = vpack.c.b16 %v5388, %v5386
    %v5497 = vpack.c.b16 %v5389, %v5387
    %v5498 = vpack.c.b16 %v5392, %v5390
    %v5499 = vpack.c.b16 %v5393, %v5391
    %v5500 = vpack.c.b16 %v5396, %v5394
    %v5501 = vpack.c.b16 %v5397, %v5395
    %v5502 = vpack.c.b16 %v5400, %v5398
    %v5503 = vpack.c.b16 %v5401, %v5399
    %v5504 = vpack.c.b16 %v5404, %v5402
    %v5505 = vpack.c.b16 %v5405, %v5403
    %v5506 = vpack.c.b16 %v5408, %v5406
    %v5507 = vpack.c.b16 %v5409, %v5407
    %v5508 = vpack.c.b16 %v5412, %v5410
    %v5509 = vpack.c.b16 %v5413, %v5411
    %v5510 = vpack.c.b16 %v5416, %v5414
    %v5511 = vpack.c.b16 %v5417, %v5415
    %v5512 = vpack.c.b16 %v5420, %v5418
    %v5513 = vpack.c.b16 %v5421, %v5419
    %v5514 = vpack.c.b16 %v5424, %v5422
    %v5515 = vpack.c.b16 %v5425, %v5423
    %v5516 = vpack.c.b16 %v5428, %v5426
    %v5517 = vpack.c.b16 %v5429, %v5427
    %v5518 = vpack.c.b16 %v5432, %v5430
    %v5519 = vpack.c.b16 %v5433, %v5431
    %v5520 = vpack.c.b16 %v5436, %v5434
    %v5521 = vpack.c.b16 %v5437, %v5435
    %v5522 = vpack.c.b16 %v5440, %v5438
    %v5523 = vpack.c.b16 %v5441, %v5439
    %v5524 = vpack.c.b16 %v5444, %v5442
    %v5525 = vpack.c.b16 %v5445, %v5443
    %v5526 = vpack.c.b16 %v5448, %v5446
    %v5527 = vpack.c.b16 %v5449, %v5447
    %v5528 = vpack.c.b16 %v5452, %v5450
    %v5529 = vpack.c.b16 %v5453, %v5451
    %v5530 = vpack.c.b16 %v5456, %v5454
    %v5531 = vpack.c.b16 %v5457, %v5455
    %v5532 = vpack.c.b16 %v5460, %v5458
    %v5533 = vpack.c.b16 %v5461, %v5459
    %v5534 = vpack.c.b16 %v5464, %v5462
    %v5535 = vpack.c.b16 %v5465, %v5463
    %v5536 = vpack.c.b16 %v5468, %v5466
    %v5537 = vpack.c.b16 %v5469, %v5467
    %v5538 = vpack.c.b16 %v5472, %v5470
    %v5539 = vpack.c.b16 %v5473, %v5471
    %v5540 = vpack.c.b16 %v5476, %v5474
    %v5541 = vpack.c.b16 %v5477, %v5475
    %5606 = vmatprep.subr.bf16.mxu0 %v5493
    %5607 = vmatpush1.bf16.msra.mxu0 %v5492
    %5608 = vmatprep.subr.bf16.mxu0 %v5491
    %5609 = vmatpush1.bf16.msra.mxu0 %v5490
    %5610 = vmatprep.subr.bf16.mxu0 %v5489
    %5611 = vmatpush1.bf16.msra.mxu0 %v5488
    %5612 = vmatprep.subr.bf16.mxu0 %v5487
    %5613 = vmatpush1.bf16.msra.mxu0 %v5486
    %5614 = vmatprep.subr.bf16.mxu0 %v5485
    %5615 = vmatpush1.bf16.msra.mxu0 %v5484
    %5616 = vmatprep.subr.bf16.mxu0 %v5483
    %5617 = vmatpush1.bf16.msra.mxu0 %v5482
    %5618 = vmatprep.subr.bf16.mxu0 %v5481
    %5619 = vmatpush1.bf16.msra.mxu0 %v5480
    %5620 = vmatprep.subr.bf16.mxu0 %v5479
    %5621 = vmatpush1.bf16.msra.mxu0 %v5478
    %5622 = vmatprep.subr.bf16.mxu0 %v5509
    %5623 = vmatpush2.bf16.msra.mxu0 %v5508
    %5624 = vmatprep.subr.bf16.mxu0 %v5507
    %5625 = vmatpush2.bf16.msra.mxu0 %v5506
    %5626 = vmatprep.subr.bf16.mxu0 %v5505
    %5627 = vmatpush2.bf16.msra.mxu0 %v5504
    %5628 = vmatprep.subr.bf16.mxu0 %v5503
    %5629 = vmatpush2.bf16.msra.mxu0 %v5502
    %5630 = vmatprep.subr.bf16.mxu0 %v5501
    %5631 = vmatpush2.bf16.msra.mxu0 %v5500
    %5632 = vmatprep.subr.bf16.mxu0 %v5499
    %5633 = vmatpush2.bf16.msra.mxu0 %v5498
    %5634 = vmatprep.subr.bf16.mxu0 %v5497
    %5635 = vmatpush2.bf16.msra.mxu0 %v5496
    %5636 = vmatprep.subr.bf16.mxu0 %v5495
    %5637 = vmatpush2.bf16.msra.mxu0 %v5494
    %5638 = vmatprep.mubr.bf16.mxu0 %v5207
    %5639 = vmatmul.mubr.bf16.gmra.mxu0 %v5206
    %v5640 = vpop.f32.mrf.mxu0
    %v5641 = vadd.f32 %v5279, %v5640
    %v5642 = vpop.f32.mrf.mxu0
    %v5643 = vadd.f32 %v5283, %v5642
    %v5644 = vpop.f32.mrf.mxu0
    %v5645 = vadd.f32 %v5279, %v5644
    %v5646 = vpop.f32.mrf.mxu0
    %v5647 = vadd.f32 %v5283, %v5646
    %5648 = vdwg.mxu0
    %5649 = vmatprep.subr.bf16.mxu0 %v5525
    %5650 = vmatpush1.bf16.msra.mxu0 %v5524
    %5651 = vmatprep.subr.bf16.mxu0 %v5523
    %5652 = vmatpush1.bf16.msra.mxu0 %v5522
    %5653 = vmatprep.subr.bf16.mxu0 %v5521
    %5654 = vmatpush1.bf16.msra.mxu0 %v5520
    %5655 = vmatprep.subr.bf16.mxu0 %v5519
    %5656 = vmatpush1.bf16.msra.mxu0 %v5518
    %5657 = vmatprep.subr.bf16.mxu0 %v5517
    %5658 = vmatpush1.bf16.msra.mxu0 %v5516
    %5659 = vmatprep.subr.bf16.mxu0 %v5515
    %5660 = vmatpush1.bf16.msra.mxu0 %v5514
    %5661 = vmatprep.subr.bf16.mxu0 %v5513
    %5662 = vmatpush1.bf16.msra.mxu0 %v5512
    %5663 = vmatprep.subr.bf16.mxu0 %v5511
    %5664 = vmatpush1.bf16.msra.mxu0 %v5510
    %5665 = vmatprep.subr.bf16.mxu0 %v5541
    %5666 = vmatpush2.bf16.msra.mxu0 %v5540
    %5667 = vmatprep.subr.bf16.mxu0 %v5539
    %5668 = vmatpush2.bf16.msra.mxu0 %v5538
    %5669 = vmatprep.subr.bf16.mxu0 %v5537
    %5670 = vmatpush2.bf16.msra.mxu0 %v5536
    %5671 = vmatprep.subr.bf16.mxu0 %v5535
    %5672 = vmatpush2.bf16.msra.mxu0 %v5534
    %5673 = vmatprep.subr.bf16.mxu0 %v5533
    %5674 = vmatpush2.bf16.msra.mxu0 %v5532
    %5675 = vmatprep.subr.bf16.mxu0 %v5531
    %5676 = vmatpush2.bf16.msra.mxu0 %v5530
    %5677 = vmatprep.subr.bf16.mxu0 %v5529
    %5678 = vmatpush2.bf16.msra.mxu0 %v5528
    %5679 = vmatprep.subr.bf16.mxu0 %v5527
    %5680 = vmatpush2.bf16.msra.mxu0 %v5526
    %5681 = vmatprep.mubr.bf16.mxu0 %v5209
    %5682 = vmatmul.mubr.bf16.gmra.mxu0 %v5208
    %v5683 = vpop.f32.mrf.mxu0
    %v5684 = vadd.f32 %v5641, %v5683
    %v5685 = vpop.f32.mrf.mxu0
    %v5686 = vadd.f32 %v5643, %v5685
    %v5687 = vpop.f32.mrf.mxu0
    %v5688 = vadd.f32 %v5645, %v5687
    %v5689 = vpop.f32.mrf.mxu0
    %v5690 = vadd.f32 %v5647, %v5689
    %5691 = vdwg.mxu0
    %v5692 = vmax.f32 %v5684, 0.0
    %v5693 = vmax.f32 %v5686, 0.0
    %v5694 = vmax.f32 %v5688, 0.0
    %v5695 = vmax.f32 %v5690, 0.0
    %v5696 = vpack.c.bf16 %v5694, %v5692
    %v5697 = vpack.c.bf16 %v5695, %v5693
    %v5698 = vld [vmem:[#allocation12] sm:$0xf]
    %v5699 = vld [vmem:[#allocation12 + $0x4] sm:$0xf]
    %v5700 = vld [vmem:[#allocation12 + $0x8] sm:$0xf]
    %v5701 = vld [vmem:[#allocation12 + $0xc] sm:$0xf]
    %v5702 = vld [vmem:[#allocation12 + $0x10] sm:$0xf]
    %v5703 = vld [vmem:[#allocation12 + $0x14] sm:$0xf]
    %v5704 = vld [vmem:[#allocation12 + $0x18] sm:$0xf]
    %v5705 = vld [vmem:[#allocation12 + $0x1c] sm:$0xf]
    %v5706 = vld [vmem:[#allocation12 + $0x20] sm:$0xf]
    %v5707 = vld [vmem:[#allocation12 + $0x24] sm:$0xf]
    %v5708 = vld [vmem:[#allocation12 + $0x28] sm:$0xf]
    %v5709 = vld [vmem:[#allocation12 + $0x2c] sm:$0xf]
    %v5710 = vld [vmem:[#allocation12 + $0x30] sm:$0xf]
    %v5711 = vld [vmem:[#allocation12 + $0x34] sm:$0xf]
    %v5712 = vld [vmem:[#allocation12 + $0x38] sm:$0xf]
    %v5713 = vld [vmem:[#allocation12 + $0x3c] sm:$0xf]
    %v5714 = vld [vmem:[#allocation12 + $0x40] sm:$0xf]
    %v5715 = vld [vmem:[#allocation12 + $0x44] sm:$0xf]
    %v5716 = vld [vmem:[#allocation12 + $0x48] sm:$0xf]
    %v5717 = vld [vmem:[#allocation12 + $0x4c] sm:$0xf]
    %v5718 = vld [vmem:[#allocation12 + $0x50] sm:$0xf]
    %v5719 = vld [vmem:[#allocation12 + $0x54] sm:$0xf]
    %v5720 = vld [vmem:[#allocation12 + $0x58] sm:$0xf]
    %v5721 = vld [vmem:[#allocation12 + $0x5c] sm:$0xf]
    %v5722 = vld [vmem:[#allocation12 + $0x60] sm:$0xf]
    %v5723 = vld [vmem:[#allocation12 + $0x64] sm:$0xf]
    %v5724 = vld [vmem:[#allocation12 + $0x68] sm:$0xf]
    %v5725 = vld [vmem:[#allocation12 + $0x6c] sm:$0xf]
    %v5726 = vld [vmem:[#allocation12 + $0x70] sm:$0xf]
    %v5727 = vld [vmem:[#allocation12 + $0x74] sm:$0xf]
    %v5728 = vld [vmem:[#allocation12 + $0x78] sm:$0xf]
    %v5729 = vld [vmem:[#allocation12 + $0x7c] sm:$0xf]
    %v5730 = vld [vmem:[#allocation13] sm:$0x1]
    %v5732 = vlaneseq
    %v5733 = vshrl.u32 %v5732, 7
    %v5734 = vsub.s32 0, %v5733
    %v5735 = vrot.slane %v5730, %v5734
    %v5769 = vunpack.c.l.b16 %v5698
    %v5770 = vunpack.c.l.b16 %v5699
    %v5771 = vunpack.c.l.b16 %v5700
    %v5772 = vunpack.c.l.b16 %v5701
    %v5773 = vunpack.c.l.b16 %v5702
    %v5774 = vunpack.c.l.b16 %v5703
    %v5775 = vunpack.c.l.b16 %v5704
    %v5776 = vunpack.c.l.b16 %v5705
    %v5777 = vunpack.c.l.b16 %v5706
    %v5778 = vunpack.c.l.b16 %v5707
    %v5779 = vunpack.c.l.b16 %v5708
    %v5780 = vunpack.c.l.b16 %v5709
    %v5781 = vunpack.c.l.b16 %v5710
    %v5782 = vunpack.c.l.b16 %v5711
    %v5783 = vunpack.c.l.b16 %v5712
    %v5784 = vunpack.c.l.b16 %v5713
    %v5785 = vunpack.c.l.b16 %v5714
    %v5786 = vunpack.c.l.b16 %v5715
    %v5787 = vunpack.c.l.b16 %v5716
    %v5788 = vunpack.c.l.b16 %v5717
    %v5789 = vunpack.c.l.b16 %v5718
    %v5790 = vunpack.c.l.b16 %v5719
    %v5791 = vunpack.c.l.b16 %v5720
    %v5792 = vunpack.c.l.b16 %v5721
    %v5793 = vunpack.c.l.b16 %v5722
    %v5794 = vunpack.c.l.b16 %v5723
    %v5795 = vunpack.c.l.b16 %v5724
    %v5796 = vunpack.c.l.b16 %v5725
    %v5797 = vunpack.c.l.b16 %v5726
    %v5798 = vunpack.c.l.b16 %v5727
    %v5799 = vunpack.c.l.b16 %v5728
    %v5800 = vunpack.c.l.b16 %v5729
    %v5801 = vpack.c.b16 %v5770, %v5769
    %v5802 = vpack.c.b16 %v5772, %v5771
    %v5803 = vpack.c.b16 %v5774, %v5773
    %v5804 = vpack.c.b16 %v5776, %v5775
    %v5805 = vpack.c.b16 %v5778, %v5777
    %v5806 = vpack.c.b16 %v5780, %v5779
    %v5807 = vpack.c.b16 %v5782, %v5781
    %v5808 = vpack.c.b16 %v5784, %v5783
    %v5809 = vpack.c.b16 %v5786, %v5785
    %v5810 = vpack.c.b16 %v5788, %v5787
    %v5811 = vpack.c.b16 %v5790, %v5789
    %v5812 = vpack.c.b16 %v5792, %v5791
    %v5813 = vpack.c.b16 %v5794, %v5793
    %v5814 = vpack.c.b16 %v5796, %v5795
    %v5815 = vpack.c.b16 %v5798, %v5797
    %v5816 = vpack.c.b16 %v5800, %v5799
    %5833 = vmatprep.subr.bf16.mxu0 0
    %5834 = vmatpush1.bf16.msra.mxu0 %v5808
    %5835 = vmatprep.subr.bf16.mxu0 0
    %5836 = vmatpush1.bf16.msra.mxu0 %v5807
    %5837 = vmatprep.subr.bf16.mxu0 0
    %5838 = vmatpush1.bf16.msra.mxu0 %v5806
    %5839 = vmatprep.subr.bf16.mxu0 0
    %5840 = vmatpush1.bf16.msra.mxu0 %v5805
    %5841 = vmatprep.subr.bf16.mxu0 0
    %5842 = vmatpush1.bf16.msra.mxu0 %v5804
    %5843 = vmatprep.subr.bf16.mxu0 0
    %5844 = vmatpush1.bf16.msra.mxu0 %v5803
    %5845 = vmatprep.subr.bf16.mxu0 0
    %5846 = vmatpush1.bf16.msra.mxu0 %v5802
    %5847 = vmatprep.subr.bf16.mxu0 0
    %5848 = vmatpush1.bf16.msra.mxu0 %v5801
    %5849 = vmatprep.subr.bf16.mxu0 0
    %5850 = vmatpush2.bf16.msra.mxu0 %v5816
    %5851 = vmatprep.subr.bf16.mxu0 0
    %5852 = vmatpush2.bf16.msra.mxu0 %v5815
    %5853 = vmatprep.subr.bf16.mxu0 0
    %5854 = vmatpush2.bf16.msra.mxu0 %v5814
    %5855 = vmatprep.subr.bf16.mxu0 0
    %5856 = vmatpush2.bf16.msra.mxu0 %v5813
    %5857 = vmatprep.subr.bf16.mxu0 0
    %5858 = vmatpush2.bf16.msra.mxu0 %v5812
    %5859 = vmatprep.subr.bf16.mxu0 0
    %5860 = vmatpush2.bf16.msra.mxu0 %v5811
    %5861 = vmatprep.subr.bf16.mxu0 0
    %5862 = vmatpush2.bf16.msra.mxu0 %v5810
    %5863 = vmatprep.subr.bf16.mxu0 0
    %5864 = vmatpush2.bf16.msra.mxu0 %v5809
    %5865 = vmatprep.mubr.bf16.mxu0 %v5697
    %5866 = vmatmul.mubr.bf16.gmra.mxu0 %v5696
    %v5867 = vpop.f32.mrf.mxu0
    %v5868 = vadd.f32 %v5735, %v5867
    %v5869 = vpop.f32.mrf.mxu0
    %v5870 = vpop.f32.mrf.mxu0
    %v5871 = vadd.f32 %v5735, %v5870
    %v5872 = vpop.f32.mrf.mxu0
    %5873 = vdwg.mxu0
    %v5874 = vmax.f32 %v5868, 0.0
    %v5875 = vmax.f32 %v5871, 0.0
    %v5876 = vpack.c.bf16 %v5875, %v5874
    %v5877 = vld [vmem:[#allocation15] sm:$0xf]
    %v5878 = vld [vmem:[#allocation15 + $0x4] sm:$0xf]
    %v5879 = vld [vmem:[#allocation15 + $0x8] sm:$0xf]
    %v5880 = vld [vmem:[#allocation15 + $0xc] sm:$0xf]
    %v5881 = vld [vmem:[#allocation15 + $0x10] sm:$0xf]
    %v5882 = vld [vmem:[#allocation15 + $0x14] sm:$0xf]
    %v5883 = vld [vmem:[#allocation15 + $0x18] sm:$0xf]
    %v5884 = vld [vmem:[#allocation15 + $0x1c] sm:$0xf]
    %v5885 = vld [vmem:[#allocation15 + $0x20] sm:$0xf]
    %v5886 = vld [vmem:[#allocation15 + $0x24] sm:$0xf]
    %v5887 = vld [vmem:[#allocation15 + $0x28] sm:$0xf]
    %v5888 = vld [vmem:[#allocation15 + $0x2c] sm:$0xf]
    %v5889 = vld [vmem:[#allocation15 + $0x30] sm:$0xf]
    %v5890 = vld [vmem:[#allocation15 + $0x34] sm:$0xf]
    %v5891 = vld [vmem:[#allocation15 + $0x38] sm:$0xf]
    %v5892 = vld [vmem:[#allocation15 + $0x3c] sm:$0xf]
    %v5893 = vld [vmem:[#allocation16] sm:$0x1]
    %v5895 = vlaneseq
    %v5896 = vshrl.u32 %v5895, 7
    %v5897 = vsub.s32 0, %v5896
    %v5898 = vrot.slane %v5893, %v5897
    %v5916 = vunpack.c.l.b16 %v5877
    %v5917 = vunpack.c.l.b16 %v5878
    %v5918 = vunpack.c.l.b16 %v5879
    %v5919 = vunpack.c.l.b16 %v5880
    %v5920 = vunpack.c.l.b16 %v5881
    %v5921 = vunpack.c.l.b16 %v5882
    %v5922 = vunpack.c.l.b16 %v5883
    %v5923 = vunpack.c.l.b16 %v5884
    %v5924 = vunpack.c.l.b16 %v5885
    %v5925 = vunpack.c.l.b16 %v5886
    %v5926 = vunpack.c.l.b16 %v5887
    %v5927 = vunpack.c.l.b16 %v5888
    %v5928 = vunpack.c.l.b16 %v5889
    %v5929 = vunpack.c.l.b16 %v5890
    %v5930 = vunpack.c.l.b16 %v5891
    %v5931 = vunpack.c.l.b16 %v5892
    %v5932 = vpack.c.b16 %v5917, %v5916
    %v5933 = vpack.c.b16 %v5919, %v5918
    %v5934 = vpack.c.b16 %v5921, %v5920
    %v5935 = vpack.c.b16 %v5923, %v5922
    %v5936 = vpack.c.b16 %v5925, %v5924
    %v5937 = vpack.c.b16 %v5927, %v5926
    %v5938 = vpack.c.b16 %v5929, %v5928
    %v5939 = vpack.c.b16 %v5931, %v5930
    %5948 = vmatprep.subr.bf16.mxu0 0
    %5949 = vmatpush1.bf16.msra.mxu0 %v5939
    %5950 = vmatprep.subr.bf16.mxu0 0
    %5951 = vmatpush1.bf16.msra.mxu0 %v5938
    %5952 = vmatprep.subr.bf16.mxu0 0
    %5953 = vmatpush1.bf16.msra.mxu0 %v5937
    %5954 = vmatprep.subr.bf16.mxu0 0
    %5955 = vmatpush1.bf16.msra.mxu0 %v5936
    %5956 = vmatprep.subr.bf16.mxu0 0
    %5957 = vmatpush1.bf16.msra.mxu0 %v5935
    %5958 = vmatprep.subr.bf16.mxu0 0
    %5959 = vmatpush1.bf16.msra.mxu0 %v5934
    %5960 = vmatprep.subr.bf16.mxu0 0
    %5961 = vmatpush1.bf16.msra.mxu0 %v5933
    %5962 = vmatprep.subr.bf16.mxu0 0
    %5963 = vmatpush1.bf16.msra.mxu0 %v5932
    %5964 = vmatprep.subr.bf16.mxu0 0
    %5965 = vmatpush2.bf16.msra.mxu0 0
    %5966 = vmatprep.subr.bf16.mxu0 0
    %5967 = vmatpush2.bf16.msra.mxu0 0
    %5968 = vmatprep.subr.bf16.mxu0 0
    %5969 = vmatpush2.bf16.msra.mxu0 0
    %5970 = vmatprep.subr.bf16.mxu0 0
    %5971 = vmatpush2.bf16.msra.mxu0 0
    %5972 = vmatprep.subr.bf16.mxu0 0
    %5973 = vmatpush2.bf16.msra.mxu0 0
    %5974 = vmatprep.subr.bf16.mxu0 0
    %5975 = vmatpush2.bf16.msra.mxu0 0
    %5976 = vmatprep.subr.bf16.mxu0 0
    %5977 = vmatpush2.bf16.msra.mxu0 0
    %5978 = vmatprep.subr.bf16.mxu0 0
    %5979 = vmatpush2.bf16.msra.mxu0 0
    %5980 = vmatprep.mubr.bf16.mxu0 0
    %5981 = vmatmul.mubr.bf16.gmra.mxu0 %v5876
    %v5982 = vpop.f32.mrf.mxu0
    %v5983 = vadd.f32 %v5898, %v5982
    %v5984 = vpop.f32.mrf.mxu0
    %v5985 = vpop.f32.mrf.mxu0
    %v5986 = vadd.f32 %v5898, %v5985
    %v5987 = vpop.f32.mrf.mxu0
    %5988 = vdwg.mxu0
    %5989 = vst [vmem:[%s11] sm:$0xff] %v5983
    %5990 = vst [vmem:[%s11 + $0x8] sm:$0xff] %v5986
    // Predicated region
    $region86: #{nn2_forward.1} parent=1 // pred_check
      _
    $region87: #{nn2_forward.1} parent=1 // pred_check_branch
      %5992 = sbr.rel (0) target = $region89
    $region88: #{nn2_forward.1} parent=1 // pred_region
      _
    $region89: #{nn2_forward.1} parent=1 // pred_fallthru
      _
    // Predicated region
    $region90: #{nn2_forward.1} parent=1 // pred_check
      _
    $region91: #{nn2_forward.1} parent=1 // pred_check_branch
      %5994 = sbr.rel (0) target = $region93
    $region92: #{nn2_forward.1} parent=1 // pred_region
      _
    $region93: #{nn2_forward.1} parent=1 // pred_fallthru
      _
    %5995 = vsyncpa [#allocation3], 1
    %5996 = vsyncpa [#allocation5], 1
    %5997 = vsyncpa [#allocation8], 1
    %5998 = vsyncpa [#allocation11], 1
    %5999 = vsyncpa [#allocation14], 1
    %6000 = vsyncpa [#allocation17], 1

</llo_original>
